<compile_context>
chip_gen: v6e
topology: v6e:2x2x1
jax: 0.10.0
libtpu: 0.0.40
codegen_flags: <defaults>
</compile_context>

<pallas_src>
import functools

import jax
import jax.numpy as jnp
from jax import lax
from jax.experimental import pallas as pl
from jax.experimental.pallas import tpu as pltpu

LEAK = 0.2
BN_EPS = 1e-5


# ------------------------------ Pallas kernel ------------------------------ #
def _conv_mm_kernel(p_ref, w_ref, shift_ref, o_ref, *, apply_lrelu):
    # Single full-K MXU matmul; BN shift + (next layer's) LeakyReLU fused into
    # the store epilogue.
    r = jnp.dot(p_ref[...], w_ref[...], preferred_element_type=jnp.float32)
    r = r + shift_ref[...]
    if apply_lrelu:
        r = jnp.where(r >= 0, r, LEAK * r)
    o_ref[...] = r.astype(o_ref.dtype)


def _round_up(x, m):
    return ((x + m - 1) // m) * m


def conv_matmul_pallas(patches, w_mat, shift, *, apply_lrelu, out_dtype):
    """out[:M,:Cout] = maybe_lrelu(patches @ w_mat + shift)."""
    M, K = patches.shape
    Cout = w_mat.shape[1]

    # Adaptive tiles: lane-dense N, full-K block, TM clamped to the real M
    # (multiple of 16 for bf16 sublane packing).
    TN = min(_round_up(Cout, 128), 512)
    TM = min(_round_up(M, 16), 512)
    Kp = _round_up(K, 128)
    Mp = _round_up(M, TM)
    Np = _round_up(Cout, TN)

    p = jnp.pad(patches.astype(jnp.bfloat16), ((0, Mp - M), (0, Kp - K)))
    w = jnp.pad(w_mat.astype(jnp.bfloat16), ((0, Kp - K), (0, Np - Cout)))
    sh = jnp.pad(shift.astype(jnp.float32).reshape(1, -1),
                 ((0, 0), (0, Np - Cout)))

    grid = (Mp // TM, Np // TN)
    kernel = functools.partial(_conv_mm_kernel, apply_lrelu=apply_lrelu)

    out = pl.pallas_call(
        kernel,
        out_shape=jax.ShapeDtypeStruct((Mp, Np), out_dtype),
        grid_spec=pltpu.PrefetchScalarGridSpec(
            num_scalar_prefetch=0,
            grid=grid,
            in_specs=[
                pl.BlockSpec((TM, Kp), lambda i, j: (i, 0)),   # patches (full K)
                pl.BlockSpec((Kp, TN), lambda i, j: (0, j)),   # BN-scaled weight
                pl.BlockSpec((1, TN), lambda i, j: (0, j)),    # BN shift
            ],
            out_specs=pl.BlockSpec((TM, TN), lambda i, j: (i, j)),
        ),
        compiler_params=pltpu.CompilerParams(
            dimension_semantics=("parallel", "parallel")),
    )(p, w, sh)
    return out[:M, :Cout]


# ------------------------------ JAX glue ----------------------------------- #
def im2col_nhwc(x, k, stride, pad, dilation):
    """x: (N, H, W, C) -> patches (N*Ho*Wo, k*k*C); K ordering = (kh, kw, C)."""
    N, H, W, C = x.shape
    Ho = (H + 2 * pad - dilation * (k - 1) - 1) // stride + 1
    Wo = (W + 2 * pad - dilation * (k - 1) - 1) // stride + 1
    xp = jnp.pad(x, ((0, 0), (pad, pad), (pad, pad), (0, 0)))
    cols = []
    for ki in range(k):
        for kj in range(k):
            hs, ws = ki * dilation, kj * dilation
            cols.append(xp[:, hs: hs + (Ho - 1) * stride + 1: stride,
                              ws: ws + (Wo - 1) * stride + 1: stride, :])
    patches = jnp.concatenate(cols, axis=-1)          # (N, Ho, Wo, k*k*C)
    return patches.reshape(N * Ho * Wo, k * k * C), Ho, Wo


def conv_block(x, w, bn_params, *, k, stride, pad, dilation, bn,
               epilogue_lrelu, out_dtype):
    """x: NHWC activations, w: PyTorch OIHW weight. Returns NHWC output."""
    N = x.shape[0]
    Cout = w.shape[0]
    patches, Ho, Wo = im2col_nhwc(x, k, stride, pad, dilation)
    # OIHW -> (kh, kw, Cin, Cout) to match the patch K ordering (kh, kw, C).
    w_mat = jnp.transpose(w, (2, 3, 1, 0)).reshape(-1, Cout)
    if bn:
        gamma, beta, mean, var = bn_params
        scale = gamma / jnp.sqrt(var + BN_EPS)
        shift = beta - mean * scale
    else:
        scale = jnp.ones((Cout,), jnp.float32)
        shift = jnp.zeros((Cout,), jnp.float32)
    w_scaled = w_mat * scale[None, :]        # fold BN scale into the weight
    out = conv_matmul_pallas(patches, w_scaled, shift,
                             apply_lrelu=epilogue_lrelu, out_dtype=out_dtype)
    return out.reshape(N, Ho, Wo, Cout)


def init_params(key, img_dim, conv_dim):
    cfg = [
        dict(cin=img_dim,      cout=conv_dim,     k=5, stride=2, pad=2, dilation=2, lrelu=False, bn=False),
        dict(cin=conv_dim,     cout=conv_dim * 2, k=5, stride=4, pad=2, dilation=2, lrelu=True,  bn=True),
        dict(cin=conv_dim * 2, cout=conv_dim * 4, k=4, stride=4, pad=1, dilation=1, lrelu=True,  bn=True),
        dict(cin=conv_dim * 4, cout=conv_dim * 8, k=4, stride=2, pad=1, dilation=1, lrelu=True,  bn=True),
        dict(cin=conv_dim * 8, cout=conv_dim * 8, k=4, stride=2, pad=1, dilation=1, lrelu=True,  bn=True),
    ]
    params = []
    for c in cfg:
        key, wk = jax.random.split(key)
        w = jax.random.normal(wk, (c["cout"], c["cin"], c["k"], c["k"]), jnp.float32) * 0.05
        if c["bn"]:
            co = c["cout"]
            idx = jnp.arange(co, dtype=jnp.float32)
            bn_p = (1.0 + 0.1 * idx / co,      # gamma
                    0.01 * idx,                # beta
                    0.02 * idx / co,           # running_mean
                    1.0 + 0.05 * idx / co)     # running_var
        else:
            bn_p = None
        params.append((c, w, bn_p))
    return params


def encoder_category_forward(x_nchw, params):
    x = jnp.transpose(x_nchw, (0, 2, 3, 1))          # NHWC internally
    n = len(params)
    for i, (c, w, bn_p) in enumerate(params):
        # LeakyReLU that PyTorch applies at the INPUT of layer i+1 is fused
        # into layer i's epilogue.  First layer has lrelu=False and the final
        # output has no trailing LeakyReLU -> semantics unchanged.
        epi_lrelu = params[i + 1][0]["lrelu"] if i + 1 < n else False
        out_dtype = jnp.float32 if i == n - 1 else jnp.bfloat16
        x = conv_block(x, w, bn_p, k=c["k"], stride=c["stride"], pad=c["pad"],
                       dilation=c["dilation"], bn=c["bn"],
                       epilogue_lrelu=epi_lrelu, out_dtype=out_dtype)
    return jnp.transpose(x, (0, 3, 1, 2))            # back to NCHW


def reference_forward(x, params):
    """Pure-JAX f32 reference (lax conv) mirroring the PyTorch semantics."""
    for c, w, bn_p in params:
        if c["lrelu"]:
            x = jnp.where(x >= 0, x, LEAK * x)
        x = lax.conv_general_dilated(
            x, w, window_strides=(c["stride"],) * 2,
            padding=[(c["pad"], c["pad"])] * 2,
            rhs_dilation=(c["dilation"],) * 2,
            dimension_numbers=("NCHW", "OIHW", "NCHW"))
        if c["bn"]:
            gamma, beta, mean, var = bn_p
            s = gamma / jnp.sqrt(var + BN_EPS)
            x = x * s.reshape(1, -1, 1, 1) + (beta - mean * s).reshape(1, -1, 1, 1)
    return x


if __name__ == "__main__":
    # Small config: img_dim=4 input channels, conv_dim=8, 128x128 images, batch=2.
    # (128 is the minimal spatial size for which all five strided convs are valid.)
    key = jax.random.PRNGKey(0)
    key, xk = jax.random.split(key)
    x = jax.random.normal(xk, (2, 4, 128, 128), jnp.float32)

    params = init_params(key, img_dim=4, conv_dim=8)

    fwd = jax.jit(lambda xx: encoder_category_forward(xx, params))
    out = jax.block_until_ready(fwd(x))
    assert out.shape == (2, 64, 1, 1), out.shape

    ref = jax.block_until_ready(reference_forward(x, params))
    # bf16 patches/weights/activations -> compare with a relative tolerance.
    err = float(jnp.max(jnp.abs(out - ref)) / (jnp.max(jnp.abs(ref)) + 1e-6))
    assert err < 8e-2, err

    print("KERNEL_OK")
</pallas_src>

<mosaic_0001>
module attributes {stable_mosaic.version = 11 : i64} {
  func.func @_conv_mm_kernel(%arg0: i32, %arg1: i32, %arg2: memref<512x128xbf16, #tpu.memory_space<vmem>>, %arg3: memref<128x128xbf16, #tpu.memory_space<vmem>>, %arg4: memref<1x128xf32, #tpu.memory_space<vmem>>, %arg5: memref<512x128xbf16, #tpu.memory_space<vmem>>) attributes {dimension_semantics = [#tpu.dimension_semantics<parallel>, #tpu.dimension_semantics<parallel>], iteration_bounds = array<i64: 16, 1>, scalar_prefetch = 0 : i64, scratch_operands = 0 : i64, tpu.core_type = #tpu.core_type<tc>, window_params = [{transform_indices = @transform_0, window_bounds = array<i64: 512, 128>}, {transform_indices = @transform_1, window_bounds = array<i64: 128, 128>}, {transform_indices = @transform_2, window_bounds = array<i64: 1, 128>}, {transform_indices = @transform_3, window_bounds = array<i64: 512, 128>}]} {
    %c0 = arith.constant 0 : index
    %c0_0 = arith.constant 0 : index
    %0 = vector.load %arg2[%c0, %c0_0] : memref<512x128xbf16, #tpu.memory_space<vmem>>, vector<512x128xbf16>
    %c0_1 = arith.constant 0 : index
    %c0_2 = arith.constant 0 : index
    %1 = vector.load %arg3[%c0_1, %c0_2] : memref<128x128xbf16, #tpu.memory_space<vmem>>, vector<128x128xbf16>
    %cst = arith.constant dense<0.000000e+00> : vector<512x128xf32>
    %2 = tpu.matmul %0, %1, %cst {dimension_numbers = #tpu.dot_dimension_numbers<[1], [0], [0], [1], [0, 0, 1, 1], [], []>} : vector<512x128xbf16>, vector<128x128xbf16>, vector<512x128xf32> -> vector<512x128xf32>
    %c0_3 = arith.constant 0 : index
    %c0_4 = arith.constant 0 : index
    %3 = vector.load %arg4[%c0_3, %c0_4] : memref<1x128xf32, #tpu.memory_space<vmem>>, vector<1x128xf32>
    %4 = vector.broadcast %3 : vector<1x128xf32> to vector<512x128xf32>
    %5 = arith.addf %2, %4 : vector<512x128xf32>
    %cst_5 = arith.constant 0.000000e+00 : f32
    %6 = vector.broadcast %cst_5 : f32 to vector<512x128xf32>
    %7 = arith.cmpf oge, %5, %6 : vector<512x128xf32>
    %cst_6 = arith.constant 2.000000e-01 : f32
    %8 = vector.broadcast %cst_6 : f32 to vector<512x128xf32>
    %9 = arith.mulf %8, %5 : vector<512x128xf32>
    %10 = arith.select %7, %5, %9 : vector<512x128xi1>, vector<512x128xf32>
    %11 = arith.truncf %10 : vector<512x128xf32> to vector<512x128xbf16>
    %c0_7 = arith.constant 0 : index
    %c0_8 = arith.constant 0 : index
    %12 = vector.load %arg5[%c0_7, %c0_8] : memref<512x128xbf16, #tpu.memory_space<vmem>>, vector<512x128xbf16>
    tpu.vector_store %arg5[%c0_7, %c0_8], %11 {strides = array<i32>} : memref<512x128xbf16, #tpu.memory_space<vmem>>, vector<512x128xbf16>,
    return
  }
  func.func @transform_0(%arg0: i32, %arg1: i32) -> (i32, i32) {
    %c0_i32 = arith.constant 0 : i32
    %c0_i32_0 = arith.constant 0 : i32
    return %arg0, %c0_i32 : i32, i32
  }
  func.func @transform_1(%arg0: i32, %arg1: i32) -> (i32, i32) {
    %c0_i32 = arith.constant 0 : i32
    %c0_i32_0 = arith.constant 0 : i32
    return %c0_i32, %arg1 : i32, i32
  }
  func.func @transform_2(%arg0: i32, %arg1: i32) -> (i32, i32) {
    %c0_i32 = arith.constant 0 : i32
    %c0_i32_0 = arith.constant 0 : i32
    return %c0_i32, %arg1 : i32, i32
  }
  func.func @transform_3(%arg0: i32, %arg1: i32) -> (i32, i32) {
    %c0_i32 = arith.constant 0 : i32
    return %arg0, %arg1 : i32, i32
  }
}

module attributes {stable_mosaic.version = 11 : i64} {
  func.func @_conv_mm_kernel(%arg0: i32, %arg1: i32, %arg2: memref<464x256xbf16, #tpu.memory_space<vmem>>, %arg3: memref<256x128xbf16, #tpu.memory_space<vmem>>, %arg4: memref<1x128xf32, #tpu.memory_space<vmem>>, %arg5: memref<464x128xbf16, #tpu.memory_space<vmem>>) attributes {dimension_semantics = [#tpu.dimension_semantics<parallel>, #tpu.dimension_semantics<parallel>], iteration_bounds = array<i64: 1, 1>, scalar_prefetch = 0 : i64, scratch_operands = 0 : i64, tpu.core_type = #tpu.core_type<tc>, window_params = [{transform_indices = @transform_0, window_bounds = array<i64: 464, 256>}, {transform_indices = @transform_1, window_bounds = array<i64: 256, 128>}, {transform_indices = @transform_2, window_bounds = array<i64: 1, 128>}, {transform_indices = @transform_3, window_bounds = array<i64: 464, 128>}]} {
    %c0 = arith.constant 0 : index
    %c0_0 = arith.constant 0 : index
    %0 = vector.load %arg2[%c0, %c0_0] : memref<464x256xbf16, #tpu.memory_space<vmem>>, vector<464x256xbf16>
    %c0_1 = arith.constant 0 : index
    %c0_2 = arith.constant 0 : index
    %1 = vector.load %arg3[%c0_1, %c0_2] : memref<256x128xbf16, #tpu.memory_space<vmem>>, vector<256x128xbf16>
    %cst = arith.constant dense<0.000000e+00> : vector<464x128xf32>
    %2 = tpu.matmul %0, %1, %cst {dimension_numbers = #tpu.dot_dimension_numbers<[1], [0], [0], [1], [0, 0, 1, 1], [], []>} : vector<464x256xbf16>, vector<256x128xbf16>, vector<464x128xf32> -> vector<464x128xf32>
    %c0_3 = arith.constant 0 : index
    %c0_4 = arith.constant 0 : index
    %3 = vector.load %arg4[%c0_3, %c0_4] : memref<1x128xf32, #tpu.memory_space<vmem>>, vector<1x128xf32>
    %4 = vector.broadcast %3 : vector<1x128xf32> to vector<464x128xf32>
    %5 = arith.addf %2, %4 : vector<464x128xf32>
    %cst_5 = arith.constant 0.000000e+00 : f32
    %6 = vector.broadcast %cst_5 : f32 to vector<464x128xf32>
    %7 = arith.cmpf oge, %5, %6 : vector<464x128xf32>
    %cst_6 = arith.constant 2.000000e-01 : f32
    %8 = vector.broadcast %cst_6 : f32 to vector<464x128xf32>
    %9 = arith.mulf %8, %5 : vector<464x128xf32>
    %10 = arith.select %7, %5, %9 : vector<464x128xi1>, vector<464x128xf32>
    %11 = arith.truncf %10 : vector<464x128xf32> to vector<464x128xbf16>
    %c0_7 = arith.constant 0 : index
    %c0_8 = arith.constant 0 : index
    %12 = vector.load %arg5[%c0_7, %c0_8] : memref<464x128xbf16, #tpu.memory_space<vmem>>, vector<464x128xbf16>
    tpu.vector_store %arg5[%c0_7, %c0_8], %11 {strides = array<i32>} : memref<464x128xbf16, #tpu.memory_space<vmem>>, vector<464x128xbf16>,
    return
  }
  func.func @transform_0(%arg0: i32, %arg1: i32) -> (i32, i32) {
    %c0_i32 = arith.constant 0 : i32
    %c0_i32_0 = arith.constant 0 : i32
    return %arg0, %c0_i32 : i32, i32
  }
  func.func @transform_1(%arg0: i32, %arg1: i32) -> (i32, i32) {
    %c0_i32 = arith.constant 0 : i32
    %c0_i32_0 = arith.constant 0 : i32
    return %c0_i32, %arg1 : i32, i32
  }
  func.func @transform_2(%arg0: i32, %arg1: i32) -> (i32, i32) {
    %c0_i32 = arith.constant 0 : i32
    %c0_i32_0 = arith.constant 0 : i32
    return %c0_i32, %arg1 : i32, i32
  }
  func.func @transform_3(%arg0: i32, %arg1: i32) -> (i32, i32) {
    %c0_i32 = arith.constant 0 : i32
    return %arg0, %arg1 : i32, i32
  }
}

module attributes {stable_mosaic.version = 11 : i64} {
  func.func @_conv_mm_kernel(%arg0: i32, %arg1: i32, %arg2: memref<32x256xbf16, #tpu.memory_space<vmem>>, %arg3: memref<256x128xbf16, #tpu.memory_space<vmem>>, %arg4: memref<1x128xf32, #tpu.memory_space<vmem>>, %arg5: memref<32x128xbf16, #tpu.memory_space<vmem>>) attributes {dimension_semantics = [#tpu.dimension_semantics<parallel>, #tpu.dimension_semantics<parallel>], iteration_bounds = array<i64: 1, 1>, scalar_prefetch = 0 : i64, scratch_operands = 0 : i64, tpu.core_type = #tpu.core_type<tc>, window_params = [{transform_indices = @transform_0, window_bounds = array<i64: 32, 256>}, {transform_indices = @transform_1, window_bounds = array<i64: 256, 128>}, {transform_indices = @transform_2, window_bounds = array<i64: 1, 128>}, {transform_indices = @transform_3, window_bounds = array<i64: 32, 128>}]} {
    %c0 = arith.constant 0 : index
    %c0_0 = arith.constant 0 : index
    %0 = vector.load %arg2[%c0, %c0_0] : memref<32x256xbf16, #tpu.memory_space<vmem>>, vector<32x256xbf16>
    %c0_1 = arith.constant 0 : index
    %c0_2 = arith.constant 0 : index
    %1 = vector.load %arg3[%c0_1, %c0_2] : memref<256x128xbf16, #tpu.memory_space<vmem>>, vector<256x128xbf16>
    %cst = arith.constant dense<0.000000e+00> : vector<32x128xf32>
    %2 = tpu.matmul %0, %1, %cst {dimension_numbers = #tpu.dot_dimension_numbers<[1], [0], [0], [1], [0, 0, 1, 1], [], []>} : vector<32x256xbf16>, vector<256x128xbf16>, vector<32x128xf32> -> vector<32x128xf32>
    %c0_3 = arith.constant 0 : index
    %c0_4 = arith.constant 0 : index
    %3 = vector.load %arg4[%c0_3, %c0_4] : memref<1x128xf32, #tpu.memory_space<vmem>>, vector<1x128xf32>
    %4 = vector.broadcast %3 : vector<1x128xf32> to vector<32x128xf32>
    %5 = arith.addf %2, %4 : vector<32x128xf32>
    %cst_5 = arith.constant 0.000000e+00 : f32
    %6 = vector.broadcast %cst_5 : f32 to vector<32x128xf32>
    %7 = arith.cmpf oge, %5, %6 : vector<32x128xf32>
    %cst_6 = arith.constant 2.000000e-01 : f32
    %8 = vector.broadcast %cst_6 : f32 to vector<32x128xf32>
    %9 = arith.mulf %8, %5 : vector<32x128xf32>
    %10 = arith.select %7, %5, %9 : vector<32x128xi1>, vector<32x128xf32>
    %11 = arith.truncf %10 : vector<32x128xf32> to vector<32x128xbf16>
    %c0_7 = arith.constant 0 : index
    %c0_8 = arith.constant 0 : index
    %12 = vector.load %arg5[%c0_7, %c0_8] : memref<32x128xbf16, #tpu.memory_space<vmem>>, vector<32x128xbf16>
    tpu.vector_store %arg5[%c0_7, %c0_8], %11 {strides = array<i32>} : memref<32x128xbf16, #tpu.memory_space<vmem>>, vector<32x128xbf16>,
    return
  }
  func.func @transform_0(%arg0: i32, %arg1: i32) -> (i32, i32) {
    %c0_i32 = arith.constant 0 : i32
    %c0_i32_0 = arith.constant 0 : i32
    return %arg0, %c0_i32 : i32, i32
  }
  func.func @transform_1(%arg0: i32, %arg1: i32) -> (i32, i32) {
    %c0_i32 = arith.constant 0 : i32
    %c0_i32_0 = arith.constant 0 : i32
    return %c0_i32, %arg1 : i32, i32
  }
  func.func @transform_2(%arg0: i32, %arg1: i32) -> (i32, i32) {
    %c0_i32 = arith.constant 0 : i32
    %c0_i32_0 = arith.constant 0 : i32
    return %c0_i32, %arg1 : i32, i32
  }
  func.func @transform_3(%arg0: i32, %arg1: i32) -> (i32, i32) {
    %c0_i32 = arith.constant 0 : i32
    return %arg0, %arg1 : i32, i32
  }
}

module attributes {stable_mosaic.version = 11 : i64} {
  func.func @_conv_mm_kernel(%arg0: i32, %arg1: i32, %arg2: memref<16x512xbf16, #tpu.memory_space<vmem>>, %arg3: memref<512x128xbf16, #tpu.memory_space<vmem>>, %arg4: memref<1x128xf32, #tpu.memory_space<vmem>>, %arg5: memref<16x128xbf16, #tpu.memory_space<vmem>>) attributes {dimension_semantics = [#tpu.dimension_semantics<parallel>, #tpu.dimension_semantics<parallel>], iteration_bounds = array<i64: 1, 1>, scalar_prefetch = 0 : i64, scratch_operands = 0 : i64, tpu.core_type = #tpu.core_type<tc>, window_params = [{transform_indices = @transform_0, window_bounds = array<i64: 16, 512>}, {transform_indices = @transform_1, window_bounds = array<i64: 512, 128>}, {transform_indices = @transform_2, window_bounds = array<i64: 1, 128>}, {transform_indices = @transform_3, window_bounds = array<i64: 16, 128>}]} {
    %c0 = arith.constant 0 : index
    %c0_0 = arith.constant 0 : index
    %0 = vector.load %arg2[%c0, %c0_0] : memref<16x512xbf16, #tpu.memory_space<vmem>>, vector<16x512xbf16>
    %c0_1 = arith.constant 0 : index
    %c0_2 = arith.constant 0 : index
    %1 = vector.load %arg3[%c0_1, %c0_2] : memref<512x128xbf16, #tpu.memory_space<vmem>>, vector<512x128xbf16>
    %cst = arith.constant dense<0.000000e+00> : vector<16x128xf32>
    %2 = tpu.matmul %0, %1, %cst {dimension_numbers = #tpu.dot_dimension_numbers<[1], [0], [0], [1], [0, 0, 1, 1], [], []>} : vector<16x512xbf16>, vector<512x128xbf16>, vector<16x128xf32> -> vector<16x128xf32>
    %c0_3 = arith.constant 0 : index
    %c0_4 = arith.constant 0 : index
    %3 = vector.load %arg4[%c0_3, %c0_4] : memref<1x128xf32, #tpu.memory_space<vmem>>, vector<1x128xf32>
    %4 = vector.broadcast %3 : vector<1x128xf32> to vector<16x128xf32>
    %5 = arith.addf %2, %4 : vector<16x128xf32>
    %cst_5 = arith.constant 0.000000e+00 : f32
    %6 = vector.broadcast %cst_5 : f32 to vector<16x128xf32>
    %7 = arith.cmpf oge, %5, %6 : vector<16x128xf32>
    %cst_6 = arith.constant 2.000000e-01 : f32
    %8 = vector.broadcast %cst_6 : f32 to vector<16x128xf32>
    %9 = arith.mulf %8, %5 : vector<16x128xf32>
    %10 = arith.select %7, %5, %9 : vector<16x128xi1>, vector<16x128xf32>
    %11 = arith.truncf %10 : vector<16x128xf32> to vector<16x128xbf16>
    %c0_7 = arith.constant 0 : index
    %c0_8 = arith.constant 0 : index
    %12 = vector.load %arg5[%c0_7, %c0_8] : memref<16x128xbf16, #tpu.memory_space<vmem>>, vector<16x128xbf16>
    tpu.vector_store %arg5[%c0_7, %c0_8], %11 {strides = array<i32>} : memref<16x128xbf16, #tpu.memory_space<vmem>>, vector<16x128xbf16>,
    return
  }
  func.func @transform_0(%arg0: i32, %arg1: i32) -> (i32, i32) {
    %c0_i32 = arith.constant 0 : i32
    %c0_i32_0 = arith.constant 0 : i32
    return %arg0, %c0_i32 : i32, i32
  }
  func.func @transform_1(%arg0: i32, %arg1: i32) -> (i32, i32) {
    %c0_i32 = arith.constant 0 : i32
    %c0_i32_0 = arith.constant 0 : i32
    return %c0_i32, %arg1 : i32, i32
  }
  func.func @transform_2(%arg0: i32, %arg1: i32) -> (i32, i32) {
    %c0_i32 = arith.constant 0 : i32
    %c0_i32_0 = arith.constant 0 : i32
    return %c0_i32, %arg1 : i32, i32
  }
  func.func @transform_3(%arg0: i32, %arg1: i32) -> (i32, i32) {
    %c0_i32 = arith.constant 0 : i32
    return %arg0, %arg1 : i32, i32
  }
}

module attributes {stable_mosaic.version = 11 : i64} {
  func.func @_conv_mm_kernel(%arg0: i32, %arg1: i32, %arg2: memref<16x1024xbf16, #tpu.memory_space<vmem>>, %arg3: memref<1024x128xbf16, #tpu.memory_space<vmem>>, %arg4: memref<1x128xf32, #tpu.memory_space<vmem>>, %arg5: memref<16x128xf32, #tpu.memory_space<vmem>>) attributes {dimension_semantics = [#tpu.dimension_semantics<parallel>, #tpu.dimension_semantics<parallel>], iteration_bounds = array<i64: 1, 1>, scalar_prefetch = 0 : i64, scratch_operands = 0 : i64, tpu.core_type = #tpu.core_type<tc>, window_params = [{transform_indices = @transform_0, window_bounds = array<i64: 16, 1024>}, {transform_indices = @transform_1, window_bounds = array<i64: 1024, 128>}, {transform_indices = @transform_2, window_bounds = array<i64: 1, 128>}, {transform_indices = @transform_3, window_bounds = array<i64: 16, 128>}]} {
    %c0 = arith.constant 0 : index
    %c0_0 = arith.constant 0 : index
    %0 = vector.load %arg2[%c0, %c0_0] : memref<16x1024xbf16, #tpu.memory_space<vmem>>, vector<16x1024xbf16>
    %c0_1 = arith.constant 0 : index
    %c0_2 = arith.constant 0 : index
    %1 = vector.load %arg3[%c0_1, %c0_2] : memref<1024x128xbf16, #tpu.memory_space<vmem>>, vector<1024x128xbf16>
    %cst = arith.constant dense<0.000000e+00> : vector<16x128xf32>
    %2 = tpu.matmul %0, %1, %cst {dimension_numbers = #tpu.dot_dimension_numbers<[1], [0], [0], [1], [0, 0, 1, 1], [], []>} : vector<16x1024xbf16>, vector<1024x128xbf16>, vector<16x128xf32> -> vector<16x128xf32>
    %c0_3 = arith.constant 0 : index
    %c0_4 = arith.constant 0 : index
    %3 = vector.load %arg4[%c0_3, %c0_4] : memref<1x128xf32, #tpu.memory_space<vmem>>, vector<1x128xf32>
    %4 = vector.broadcast %3 : vector<1x128xf32> to vector<16x128xf32>
    %5 = arith.addf %2, %4 : vector<16x128xf32>
    %c0_5 = arith.constant 0 : index
    %c0_6 = arith.constant 0 : index
    %6 = vector.load %arg5[%c0_5, %c0_6] : memref<16x128xf32, #tpu.memory_space<vmem>>, vector<16x128xf32>
    tpu.vector_store %arg5[%c0_5, %c0_6], %5 {strides = array<i32>} : memref<16x128xf32, #tpu.memory_space<vmem>>, vector<16x128xf32>,
    return
  }
  func.func @transform_0(%arg0: i32, %arg1: i32) -> (i32, i32) {
    %c0_i32 = arith.constant 0 : i32
    %c0_i32_0 = arith.constant 0 : i32
    return %arg0, %c0_i32 : i32, i32
  }
  func.func @transform_1(%arg0: i32, %arg1: i32) -> (i32, i32) {
    %c0_i32 = arith.constant 0 : i32
    %c0_i32_0 = arith.constant 0 : i32
    return %c0_i32, %arg1 : i32, i32
  }
  func.func @transform_2(%arg0: i32, %arg1: i32) -> (i32, i32) {
    %c0_i32 = arith.constant 0 : i32
    %c0_i32_0 = arith.constant 0 : i32
    return %c0_i32, %arg1 : i32, i32
  }
  func.func @transform_3(%arg0: i32, %arg1: i32) -> (i32, i32) {
    %c0_i32 = arith.constant 0 : i32
    return %arg0, %arg1 : i32, i32
  }
}

</mosaic_0001>

<llo_original>
// kernel: _lambda_.5
$region0: #{_lambda_.5}
  #allocation0 [shape = 'u32[]', space=smem, size = 0x4, offset = 0x4, fixed_abs, tag = 'smem constant byte address 0x4 - core index']
  #allocation1 [shape = 'u32[144,128]{1,0:T(1,128)}', space=vmem, size = 0x12000, scoped, tag = 'internal scratch']
  %s0 = inlined_call_operand.vmem [shape: bf16[8192,128], index: 0, kind: input, shape index: {}]
  %s1 = inlined_call_operand.vmem [shape: bf16[128,128], index: 1, kind: input, shape index: {}]
  %s2 = inlined_call_operand.vmem [shape: f32[1,128], index: 2, kind: input, shape index: {}]
  %s3 = inlined_call_operand.vmem [shape: bf16[8192,128], index: 3, kind: output, shape index: {}]
  %s4 = sld [smem:[#allocation0]]
  $region45: #{_lambda_.5} parent=0
    _
  %s6 = ssub.s32 1, %s4
  %s7 = scalar_select 0, %s6, %s4
  loop: start=0, step=1, limit=18
  $region2: #{_lambda_.5} parent=0 // loop_pre_header
    _
  $region3: #{_lambda_.5} parent=0 // loop_header
    %s9 = sphi 0, %s13
    %p10 = scmp.ge.s32.totalorder %s9, 18
    %s16 = sphi 0, %s28
    %s17 = sphi 0, %s24
    %s18 = sphi 0, %s16
    %s19 = sphi 0, %s17
    %s20 = sphi 0, %s18
    %s21 = sphi 0, %s19
    %s31 = sphi 0, %s33
    %s34 = sphi 0, %s31
    %s35 = sphi 0, %s34
    %s51 = sphi 0, %s35
    %s57 = sphi 0, %s59
    %s60 = sphi 0, %s57
    %s61 = sphi 0, %s60
    %s77 = sphi 0, %s61
    %s83 = sphi 0, %s85
    %s86 = sphi 0, %s83
    %s87 = sphi 0, %s86
    %s103 = sphi 0, %s87
    %s111 = sphi 0, %s113
    %s114 = sphi 0, %s111
    %s115 = sphi 0, %s114
    %s131 = sphi 0, %s115
  $region4: #{_lambda_.5} parent=0 // loop_header_branch
    %12 = sbr.rel (%p10) target = $region8
  $region5: #{_lambda_.5} parent=0 // loop_body
    %s14 = ssub.s32 %s9, 1
    %s15 = ssub.s32 %s9, 2
    %s22 = sadd.s32 1, %s17
    %p23 = scmp.ge.s32.totalorder %s22, 1
    %s24 = scalar_select %p23, 0, %s22
    %s25 = sadd.s32 1, %s16
    %s26 = scalar_select %p23, %s25, %s16
    %p27 = scmp.ge.s32.totalorder %s26, 16
    %s28 = scalar_select %p27, 0, %s26
    %s29 = ssub.s32 %s16, %s28
    %p30 = scmp.eq.s32.totalorder %s29, 0
    %s32 = sadd.s32 %s31, 1
    %s33 = scalar_select %p30, %s31, %s32
    %p36 = pneg %p30
    %p37 = scmp.eq.s32.totalorder %s9, 15
    %p38 = por %p36, %p37
    %p39 = scmp.ne.s32.totalorder %s31, %s34
    %p40 = scmp.eq.s32.totalorder %s9, 0
    %p41 = por %p39, %p40
    %p42 = scmp.ne.s32.totalorder %s31, %s34
    %p43 = scmp.eq.s32.totalorder %s14, 15
    %p44 = por %p42, %p43
    %p45 = scmp.ne.s32.totalorder %s34, %s35
    %p46 = scmp.eq.s32.totalorder %s14, 0
    %p47 = por %p45, %p46
    %p48 = scmp.ne.s32.totalorder %s34, %s35
    %p49 = scmp.eq.s32.totalorder %s15, 15
    %p50 = por %p48, %p49
    %p52 = scmp.ne.s32.totalorder %s35, %s51
    %p53 = scmp.eq.s32.totalorder %s15, 0
    %p54 = por %p52, %p53
    %s55 = ssub.s32 %s17, %s24
    %p56 = scmp.eq.s32.totalorder %s55, 0
    %s58 = sadd.s32 %s57, 1
    %s59 = scalar_select %p56, %s57, %s58
    %p62 = pneg %p56
    %p63 = scmp.eq.s32.totalorder %s9, 15
    %p64 = por %p62, %p63
    %p65 = scmp.ne.s32.totalorder %s57, %s60
    %p66 = scmp.eq.s32.totalorder %s9, 0
    %p67 = por %p65, %p66
    %p68 = scmp.ne.s32.totalorder %s57, %s60
    %p69 = scmp.eq.s32.totalorder %s14, 15
    %p70 = por %p68, %p69
    %p71 = scmp.ne.s32.totalorder %s60, %s61
    %p72 = scmp.eq.s32.totalorder %s14, 0
    %p73 = por %p71, %p72
    %p74 = scmp.ne.s32.totalorder %s60, %s61
    %p75 = scmp.eq.s32.totalorder %s15, 15
    %p76 = por %p74, %p75
    %p78 = scmp.ne.s32.totalorder %s61, %s77
    %p79 = scmp.eq.s32.totalorder %s15, 0
    %p80 = por %p78, %p79
    %s81 = ssub.s32 %s17, %s24
    %p82 = scmp.eq.s32.totalorder %s81, 0
    %s84 = sadd.s32 %s83, 1
    %s85 = scalar_select %p82, %s83, %s84
    %p88 = pneg %p82
    %p89 = scmp.eq.s32.totalorder %s9, 15
    %p90 = por %p88, %p89
    %p91 = scmp.ne.s32.totalorder %s83, %s86
    %p92 = scmp.eq.s32.totalorder %s9, 0
    %p93 = por %p91, %p92
    %p94 = scmp.ne.s32.totalorder %s83, %s86
    %p95 = scmp.eq.s32.totalorder %s14, 15
    %p96 = por %p94, %p95
    %p97 = scmp.ne.s32.totalorder %s86, %s87
    %p98 = scmp.eq.s32.totalorder %s14, 0
    %p99 = por %p97, %p98
    %p100 = scmp.ne.s32.totalorder %s86, %s87
    %p101 = scmp.eq.s32.totalorder %s15, 15
    %p102 = por %p100, %p101
    %p104 = scmp.ne.s32.totalorder %s87, %s103
    %p105 = scmp.eq.s32.totalorder %s15, 0
    %p106 = por %p104, %p105
    %s107 = ssub.s32 %s16, %s28
    %s108 = ssub.s32 %s17, %s24
    %s109 = sor.u32 %s107, %s108
    %p110 = scmp.eq.s32.totalorder %s109, 0
    %s112 = sadd.s32 %s111, 1
    %s113 = scalar_select %p110, %s111, %s112
    %p116 = pneg %p110
    %p117 = scmp.eq.s32.totalorder %s9, 15
    %p118 = por %p116, %p117
    %p119 = scmp.ne.s32.totalorder %s111, %s114
    %p120 = scmp.eq.s32.totalorder %s9, 0
    %p121 = por %p119, %p120
    %p122 = scmp.ne.s32.totalorder %s111, %s114
    %p123 = scmp.eq.s32.totalorder %s14, 15
    %p124 = por %p122, %p123
    %p125 = scmp.ne.s32.totalorder %s114, %s115
    %p126 = scmp.eq.s32.totalorder %s14, 0
    %p127 = por %p125, %p126
    %p128 = scmp.ne.s32.totalorder %s114, %s115
    %p129 = scmp.eq.s32.totalorder %s15, 15
    %p130 = por %p128, %p129
    %p132 = scmp.ne.s32.totalorder %s115, %s131
    %p133 = scmp.eq.s32.totalorder %s15, 0
    %p134 = por %p132, %p133
    %p135 = scmp.le.s32.totalorder 1, %s9
    %p136 = scmp.lt.s32.totalorder %s9, 17
    %p137 = pnand %p135, %p136
    %p138 = pneg %p137
    // Predicated region
    $region9: #{_lambda_.5} parent=5 // pred_check
      _
    $region10: #{_lambda_.5} parent=5 // pred_check_branch
      %140 = sbr.rel (%p137) target = $region12
    $region11: #{_lambda_.5} parent=5 // pred_region
      %s141 = ssub.s32 %s9, 1
      // Predicated region
      $region13: #{_lambda_.5} parent=11 // pred_check
        %p142 = pneg %p73
      $region14: #{_lambda_.5} parent=11 // pred_check_branch
        %144 = sbr.rel (%p142) target = $region16
      $region15: #{_lambda_.5} parent=11 // pred_region
        %p145 = scmp.lt.s32.totalorder %s19, 0
        %s146 = scalar_select %p145, %s19, 0
        %s147 = smul.addr %s146, 4
        %s148 = scalar_lea.vmem %s1, %s147
      $region16: #{_lambda_.5} parent=11 // pred_fallthru
        _
      // Predicated region
      $region17: #{_lambda_.5} parent=11 // pred_check
        %p149 = pneg %p99
      $region18: #{_lambda_.5} parent=11 // pred_check_branch
        %151 = sbr.rel (%p149) target = $region20
      $region19: #{_lambda_.5} parent=11 // pred_region
        %p152 = scmp.lt.s32.totalorder %s19, 0
        %s153 = scalar_select %p152, %s19, 0
        %s154 = scalar_lea.vmem %s2, %s153
      $region20: #{_lambda_.5} parent=11 // pred_fallthru
        _
    $region12: #{_lambda_.5} parent=5 // pred_fallthru
      _
    %p155 = scmp.lt.s32.totalorder %s9, 16
    // Predicated region
    $region21: #{_lambda_.5} parent=5 // pred_check
      %p156 = pneg %p155
    $region22: #{_lambda_.5} parent=5 // pred_check_branch
      %158 = sbr.rel (%p156) target = $region24
    $region23: #{_lambda_.5} parent=5 // pred_region
      // Predicated region
      $region25: #{_lambda_.5} parent=23 // pred_check
        %p159 = pneg %p41
      $region26: #{_lambda_.5} parent=23 // pred_check_branch
        %161 = sbr.rel (%p159) target = $region28
      $region27: #{_lambda_.5} parent=23 // pred_region
        %s162 = smul.u32 64, %s16
        %p163 = scmp.lt.s32.totalorder %s162, 1023
        %s164 = scalar_select %p163, %s162, 1023
        %s165 = smul.addr %s164, 4
        %s166 = scalar_lea.vmem %s0, %s165
        %s167 = smul.u32 64, %s16
      $region28: #{_lambda_.5} parent=23 // pred_fallthru
        _
    $region24: #{_lambda_.5} parent=5 // pred_fallthru
      _
    %p168 = scmp.le.s32.totalorder 1, %s9
    %p169 = scmp.lt.s32.totalorder %s9, 17
    %p170 = pnand %p168, %p169
    %p171 = pneg %p170
    // Predicated region
    $region29: #{_lambda_.5} parent=5 // pred_check
      _
    $region30: #{_lambda_.5} parent=5 // pred_check_branch
      %173 = sbr.rel (%p170) target = $region32
    $region31: #{_lambda_.5} parent=5 // pred_region
      %s174 = ssub.s32 %s9, 1
      %s175 = smul.u32 64, %s18
      %p176 = scmp.lt.s32.totalorder %s175, 1023
      %s177 = scalar_select %p176, %s175, 1023
      %s178 = smul.addr %s177, 4
      %s179 = scalar_lea.vmem %s0, %s178
      %p180 = pneg %p47
      %p181 = pneg %p44
      %p182 = scmp.lt.s32.totalorder %s19, 0
      %s183 = scalar_select %p182, %s19, 0
      %s184 = smul.addr %s183, 4
      %s185 = scalar_lea.vmem %s1, %s184
      %p186 = pneg %p73
      %p187 = pneg %p70
      %p188 = scmp.lt.s32.totalorder %s19, 0
      %s189 = scalar_select %p188, %s19, 0
      %s190 = scalar_lea.vmem %s2, %s189
      %p191 = pneg %p99
      %p192 = pneg %p96
      %p193 = pneg %p127
      %p194 = pneg %p124
      %s195 = smul.u32 64, %s18
      %p196 = scmp.lt.s32.totalorder %s195, 1023
      %s197 = scalar_select %p196, %s195, 1023
      %p198 = scmp.lt.s32.totalorder %s19, 0
      %s199 = scalar_select %p198, %s19, 0
      %s200 = sadd.s32 %s199, %s197
      %s201 = smul.addr %s200, 4
      %s202 = scalar_lea.vmem %s3, %s201
      %s203 = smul.u32 64, %s18
      %p204 = scmp.lt.s32.totalorder %s203, 1023
      %s205 = scalar_select %p204, %s203, 1023
      %s206 = smul.addr %s205, 4
      %s207 = scalar_lea.vmem %s0, %s206
      %s208 = smul.u32 64, %s18
      %p209 = scmp.lt.s32.totalorder %s19, 0
      %s210 = scalar_select %p209, %s19, 0
      %s211 = smul.addr %s210, 4
      %s212 = scalar_lea.vmem %s1, %s211
      %p213 = scmp.lt.s32.totalorder %s19, 0
      %s214 = scalar_select %p213, %s19, 0
      %s215 = scalar_lea.vmem %s2, %s214
      %s216 = smul.u32 64, %s18
      %p217 = scmp.lt.s32.totalorder %s216, 1023
      %s218 = scalar_select %p217, %s216, 1023
      %p219 = scmp.lt.s32.totalorder %s19, 0
      %s220 = scalar_select %p219, %s19, 0
      %s221 = sadd.s32 %s220, %s218
      %s222 = smul.addr %s221, 4
      %s223 = scalar_lea.vmem %s3, %s222
      %s224 = smul.u32 64, %s18
      %v226 = vld [vmem:[%s207] sm:$0xf]
      %v227 = vld [vmem:[%s207 + $0x4] sm:$0xf]
      %v228 = vld [vmem:[%s207 + $0x8] sm:$0xf]
      %v229 = vld [vmem:[%s207 + $0xc] sm:$0xf]
      %v230 = vld [vmem:[%s207 + $0x10] sm:$0xf]
      %v231 = vld [vmem:[%s207 + $0x14] sm:$0xf]
      %v232 = vld [vmem:[%s207 + $0x18] sm:$0xf]
      %v233 = vld [vmem:[%s207 + $0x1c] sm:$0xf]
      %v234 = vld [vmem:[%s207 + $0x20] sm:$0xf]
      %v235 = vld [vmem:[%s207 + $0x24] sm:$0xf]
      %v236 = vld [vmem:[%s207 + $0x28] sm:$0xf]
      %v237 = vld [vmem:[%s207 + $0x2c] sm:$0xf]
      %v238 = vld [vmem:[%s207 + $0x30] sm:$0xf]
      %v239 = vld [vmem:[%s207 + $0x34] sm:$0xf]
      %v240 = vld [vmem:[%s207 + $0x38] sm:$0xf]
      %v241 = vld [vmem:[%s207 + $0x3c] sm:$0xf]
      %v242 = vld [vmem:[%s207 + $0x40] sm:$0xf]
      %v243 = vld [vmem:[%s207 + $0x44] sm:$0xf]
      %v244 = vld [vmem:[%s207 + $0x48] sm:$0xf]
      %v245 = vld [vmem:[%s207 + $0x4c] sm:$0xf]
      %v246 = vld [vmem:[%s207 + $0x50] sm:$0xf]
      %v247 = vld [vmem:[%s207 + $0x54] sm:$0xf]
      %v248 = vld [vmem:[%s207 + $0x58] sm:$0xf]
      %v249 = vld [vmem:[%s207 + $0x5c] sm:$0xf]
      %v250 = vld [vmem:[%s207 + $0x60] sm:$0xf]
      %v251 = vld [vmem:[%s207 + $0x64] sm:$0xf]
      %v252 = vld [vmem:[%s207 + $0x68] sm:$0xf]
      %v253 = vld [vmem:[%s207 + $0x6c] sm:$0xf]
      %v254 = vld [vmem:[%s207 + $0x70] sm:$0xf]
      %v255 = vld [vmem:[%s207 + $0x74] sm:$0xf]
      %v256 = vld [vmem:[%s207 + $0x78] sm:$0xf]
      %v257 = vld [vmem:[%s207 + $0x7c] sm:$0xf]
      %v258 = vld [vmem:[%s207 + $0x80] sm:$0xf]
      %v259 = vld [vmem:[%s207 + $0x84] sm:$0xf]
      %v260 = vld [vmem:[%s207 + $0x88] sm:$0xf]
      %v261 = vld [vmem:[%s207 + $0x8c] sm:$0xf]
      %v262 = vld [vmem:[%s207 + $0x90] sm:$0xf]
      %v263 = vld [vmem:[%s207 + $0x94] sm:$0xf]
      %v264 = vld [vmem:[%s207 + $0x98] sm:$0xf]
      %v265 = vld [vmem:[%s207 + $0x9c] sm:$0xf]
      %v266 = vld [vmem:[%s207 + $0xa0] sm:$0xf]
      %v267 = vld [vmem:[%s207 + $0xa4] sm:$0xf]
      %v268 = vld [vmem:[%s207 + $0xa8] sm:$0xf]
      %v269 = vld [vmem:[%s207 + $0xac] sm:$0xf]
      %v270 = vld [vmem:[%s207 + $0xb0] sm:$0xf]
      %v271 = vld [vmem:[%s207 + $0xb4] sm:$0xf]
      %v272 = vld [vmem:[%s207 + $0xb8] sm:$0xf]
      %v273 = vld [vmem:[%s207 + $0xbc] sm:$0xf]
      %v274 = vld [vmem:[%s207 + $0xc0] sm:$0xf]
      %v275 = vld [vmem:[%s207 + $0xc4] sm:$0xf]
      %v276 = vld [vmem:[%s207 + $0xc8] sm:$0xf]
      %v277 = vld [vmem:[%s207 + $0xcc] sm:$0xf]
      %v278 = vld [vmem:[%s207 + $0xd0] sm:$0xf]
      %v279 = vld [vmem:[%s207 + $0xd4] sm:$0xf]
      %v280 = vld [vmem:[%s207 + $0xd8] sm:$0xf]
      %v281 = vld [vmem:[%s207 + $0xdc] sm:$0xf]
      %v282 = vld [vmem:[%s207 + $0xe0] sm:$0xf]
      %v283 = vld [vmem:[%s207 + $0xe4] sm:$0xf]
      %v284 = vld [vmem:[%s207 + $0xe8] sm:$0xf]
      %v285 = vld [vmem:[%s207 + $0xec] sm:$0xf]
      %v286 = vld [vmem:[%s207 + $0xf0] sm:$0xf]
      %v287 = vld [vmem:[%s207 + $0xf4] sm:$0xf]
      %v288 = vld [vmem:[%s207 + $0xf8] sm:$0xf]
      %v289 = vld [vmem:[%s207 + $0xfc] sm:$0xf]
      %v290 = vld [vmem:[%s212] sm:$0xf]
      %v291 = vld [vmem:[%s212 + $0x4] sm:$0xf]
      %v292 = vld [vmem:[%s212 + $0x8] sm:$0xf]
      %v293 = vld [vmem:[%s212 + $0xc] sm:$0xf]
      %v294 = vld [vmem:[%s212 + $0x10] sm:$0xf]
      %v295 = vld [vmem:[%s212 + $0x14] sm:$0xf]
      %v296 = vld [vmem:[%s212 + $0x18] sm:$0xf]
      %v297 = vld [vmem:[%s212 + $0x1c] sm:$0xf]
      %v298 = vld [vmem:[%s212 + $0x20] sm:$0xf]
      %v299 = vld [vmem:[%s212 + $0x24] sm:$0xf]
      %v300 = vld [vmem:[%s212 + $0x28] sm:$0xf]
      %v301 = vld [vmem:[%s212 + $0x2c] sm:$0xf]
      %v302 = vld [vmem:[%s212 + $0x30] sm:$0xf]
      %v303 = vld [vmem:[%s212 + $0x34] sm:$0xf]
      %v304 = vld [vmem:[%s212 + $0x38] sm:$0xf]
      %v305 = vld [vmem:[%s212 + $0x3c] sm:$0xf]
      %v306 = vld [vmem:[%s215] sm:$0x1]
      %v308 = vlaneseq
      %v309 = vshrl.u32 %v308, 7
      %v310 = vsub.s32 0, %v309
      %v311 = vrot.slane %v306, %v310
      %v377 = vunpack.c.l.b16 %v226
      %v378 = vunpack.c.l.b16 %v227
      %v379 = vunpack.c.l.b16 %v228
      %v380 = vunpack.c.l.b16 %v229
      %v381 = vunpack.c.l.b16 %v230
      %v382 = vunpack.c.l.b16 %v231
      %v383 = vunpack.c.l.b16 %v232
      %v384 = vunpack.c.l.b16 %v233
      %v385 = vunpack.c.l.b16 %v234
      %v386 = vunpack.c.l.b16 %v235
      %v387 = vunpack.c.l.b16 %v236
      %v388 = vunpack.c.l.b16 %v237
      %v389 = vunpack.c.l.b16 %v238
      %v390 = vunpack.c.l.b16 %v239
      %v391 = vunpack.c.l.b16 %v240
      %v392 = vunpack.c.l.b16 %v241
      %v393 = vunpack.c.l.b16 %v242
      %v394 = vunpack.c.l.b16 %v243
      %v395 = vunpack.c.l.b16 %v244
      %v396 = vunpack.c.l.b16 %v245
      %v397 = vunpack.c.l.b16 %v246
      %v398 = vunpack.c.l.b16 %v247
      %v399 = vunpack.c.l.b16 %v248
      %v400 = vunpack.c.l.b16 %v249
      %v401 = vunpack.c.l.b16 %v250
      %v402 = vunpack.c.l.b16 %v251
      %v403 = vunpack.c.l.b16 %v252
      %v404 = vunpack.c.l.b16 %v253
      %v405 = vunpack.c.l.b16 %v254
      %v406 = vunpack.c.l.b16 %v255
      %v407 = vunpack.c.l.b16 %v256
      %v408 = vunpack.c.l.b16 %v257
      %v409 = vunpack.c.l.b16 %v258
      %v410 = vunpack.c.l.b16 %v259
      %v411 = vunpack.c.l.b16 %v260
      %v412 = vunpack.c.l.b16 %v261
      %v413 = vunpack.c.l.b16 %v262
      %v414 = vunpack.c.l.b16 %v263
      %v415 = vunpack.c.l.b16 %v264
      %v416 = vunpack.c.l.b16 %v265
      %v417 = vunpack.c.l.b16 %v266
      %v418 = vunpack.c.l.b16 %v267
      %v419 = vunpack.c.l.b16 %v268
      %v420 = vunpack.c.l.b16 %v269
      %v421 = vunpack.c.l.b16 %v270
      %v422 = vunpack.c.l.b16 %v271
      %v423 = vunpack.c.l.b16 %v272
      %v424 = vunpack.c.l.b16 %v273
      %v425 = vunpack.c.l.b16 %v274
      %v426 = vunpack.c.l.b16 %v275
      %v427 = vunpack.c.l.b16 %v276
      %v428 = vunpack.c.l.b16 %v277
      %v429 = vunpack.c.l.b16 %v278
      %v430 = vunpack.c.l.b16 %v279
      %v431 = vunpack.c.l.b16 %v280
      %v432 = vunpack.c.l.b16 %v281
      %v433 = vunpack.c.l.b16 %v282
      %v434 = vunpack.c.l.b16 %v283
      %v435 = vunpack.c.l.b16 %v284
      %v436 = vunpack.c.l.b16 %v285
      %v437 = vunpack.c.l.b16 %v286
      %v438 = vunpack.c.l.b16 %v287
      %v439 = vunpack.c.l.b16 %v288
      %v440 = vunpack.c.l.b16 %v289
      %v441 = vpack.c.b16 %v378, %v377
      %v442 = vpack.c.b16 %v380, %v379
      %v443 = vpack.c.b16 %v382, %v381
      %v444 = vpack.c.b16 %v384, %v383
      %v445 = vpack.c.b16 %v386, %v385
      %v446 = vpack.c.b16 %v388, %v387
      %v447 = vpack.c.b16 %v390, %v389
      %v448 = vpack.c.b16 %v392, %v391
      %v449 = vpack.c.b16 %v394, %v393
      %v450 = vpack.c.b16 %v396, %v395
      %v451 = vpack.c.b16 %v398, %v397
      %v452 = vpack.c.b16 %v400, %v399
      %v453 = vpack.c.b16 %v402, %v401
      %v454 = vpack.c.b16 %v404, %v403
      %v455 = vpack.c.b16 %v406, %v405
      %v456 = vpack.c.b16 %v408, %v407
      %v457 = vpack.c.b16 %v410, %v409
      %v458 = vpack.c.b16 %v412, %v411
      %v459 = vpack.c.b16 %v414, %v413
      %v460 = vpack.c.b16 %v416, %v415
      %v461 = vpack.c.b16 %v418, %v417
      %v462 = vpack.c.b16 %v420, %v419
      %v463 = vpack.c.b16 %v422, %v421
      %v464 = vpack.c.b16 %v424, %v423
      %v465 = vpack.c.b16 %v426, %v425
      %v466 = vpack.c.b16 %v428, %v427
      %v467 = vpack.c.b16 %v430, %v429
      %v468 = vpack.c.b16 %v432, %v431
      %v469 = vpack.c.b16 %v434, %v433
      %v470 = vpack.c.b16 %v436, %v435
      %v471 = vpack.c.b16 %v438, %v437
      %v472 = vpack.c.b16 %v440, %v439
      %v521 = vunpack.c.l.b16 %v290
      %v522 = vunpack.c.l.b16 %v291
      %v523 = vunpack.c.l.b16 %v292
      %v524 = vunpack.c.l.b16 %v293
      %v525 = vunpack.c.l.b16 %v294
      %v526 = vunpack.c.l.b16 %v295
      %v527 = vunpack.c.l.b16 %v296
      %v528 = vunpack.c.l.b16 %v297
      %v529 = vunpack.c.l.b16 %v298
      %v530 = vunpack.c.l.b16 %v299
      %v531 = vunpack.c.l.b16 %v300
      %v532 = vunpack.c.l.b16 %v301
      %v533 = vunpack.c.l.b16 %v302
      %v534 = vunpack.c.l.b16 %v303
      %v535 = vunpack.c.l.b16 %v304
      %v536 = vunpack.c.l.b16 %v305
      %v537 = vpack.c.b16 %v522, %v521
      %v538 = vpack.c.b16 %v524, %v523
      %v539 = vpack.c.b16 %v526, %v525
      %v540 = vpack.c.b16 %v528, %v527
      %v541 = vpack.c.b16 %v530, %v529
      %v542 = vpack.c.b16 %v532, %v531
      %v543 = vpack.c.b16 %v534, %v533
      %v544 = vpack.c.b16 %v536, %v535
      %553 = vmatprep.subr.bf16.mxu0 0
      %554 = vmatpush1.bf16.msra.mxu0 %v544
      %555 = vmatprep.subr.bf16.mxu0 0
      %556 = vmatpush1.bf16.msra.mxu0 %v543
      %557 = vmatprep.subr.bf16.mxu0 0
      %558 = vmatpush1.bf16.msra.mxu0 %v542
      %559 = vmatprep.subr.bf16.mxu0 0
      %560 = vmatpush1.bf16.msra.mxu0 %v541
      %561 = vmatprep.subr.bf16.mxu0 0
      %562 = vmatpush1.bf16.msra.mxu0 %v540
      %563 = vmatprep.subr.bf16.mxu0 0
      %564 = vmatpush1.bf16.msra.mxu0 %v539
      %565 = vmatprep.subr.bf16.mxu0 0
      %566 = vmatpush1.bf16.msra.mxu0 %v538
      %567 = vmatprep.subr.bf16.mxu0 0
      %568 = vmatpush1.bf16.msra.mxu0 %v537
      %569 = vmatprep.subr.bf16.mxu0 0
      %570 = vmatpush2.bf16.msra.mxu0 0
      %571 = vmatprep.subr.bf16.mxu0 0
      %572 = vmatpush2.bf16.msra.mxu0 0
      %573 = vmatprep.subr.bf16.mxu0 0
      %574 = vmatpush2.bf16.msra.mxu0 0
      %575 = vmatprep.subr.bf16.mxu0 0
      %576 = vmatpush2.bf16.msra.mxu0 0
      %577 = vmatprep.subr.bf16.mxu0 0
      %578 = vmatpush2.bf16.msra.mxu0 0
      %579 = vmatprep.subr.bf16.mxu0 0
      %580 = vmatpush2.bf16.msra.mxu0 0
      %581 = vmatprep.subr.bf16.mxu0 0
      %582 = vmatpush2.bf16.msra.mxu0 0
      %583 = vmatprep.subr.bf16.mxu0 0
      %584 = vmatpush2.bf16.msra.mxu0 0
      %585 = vmatprep.mubr.bf16.mxu0 0
      %586 = vmatmul.mubr.bf16.gmra.mxu0 %v441
      %v587 = vpop.f32.mrf.mxu0
      %v588 = vadd.f32 %v311, %v587
      %v589 = vpop.f32.mrf.mxu0
      %v590 = vpop.f32.mrf.mxu0
      %v591 = vadd.f32 %v311, %v590
      %v592 = vpop.f32.mrf.mxu0
      %593 = vmatprep.mubr.bf16.mxu0 0
      %594 = vmatmul.mubr.bf16.gmra.mxu0 %v442
      %v595 = vpop.f32.mrf.mxu0
      %v596 = vadd.f32 %v311, %v595
      %v597 = vpop.f32.mrf.mxu0
      %v598 = vpop.f32.mrf.mxu0
      %v599 = vadd.f32 %v311, %v598
      %v600 = vpop.f32.mrf.mxu0
      %601 = vmatprep.mubr.bf16.mxu0 0
      %602 = vmatmul.mubr.bf16.gmra.mxu0 %v443
      %v603 = vpop.f32.mrf.mxu0
      %v604 = vadd.f32 %v311, %v603
      %v605 = vpop.f32.mrf.mxu0
      %v606 = vpop.f32.mrf.mxu0
      %v607 = vadd.f32 %v311, %v606
      %v608 = vpop.f32.mrf.mxu0
      %609 = vmatprep.mubr.bf16.mxu0 0
      %610 = vmatmul.mubr.bf16.gmra.mxu0 %v444
      %v611 = vpop.f32.mrf.mxu0
      %v612 = vadd.f32 %v311, %v611
      %v613 = vpop.f32.mrf.mxu0
      %v614 = vpop.f32.mrf.mxu0
      %v615 = vadd.f32 %v311, %v614
      %v616 = vpop.f32.mrf.mxu0
      %617 = vmatprep.mubr.bf16.mxu0 0
      %618 = vmatmul.mubr.bf16.gmra.mxu0 %v445
      %v619 = vpop.f32.mrf.mxu0
      %v620 = vadd.f32 %v311, %v619
      %v621 = vpop.f32.mrf.mxu0
      %v622 = vpop.f32.mrf.mxu0
      %v623 = vadd.f32 %v311, %v622
      %v624 = vpop.f32.mrf.mxu0
      %625 = vmatprep.mubr.bf16.mxu0 0
      %626 = vmatmul.mubr.bf16.gmra.mxu0 %v446
      %v627 = vpop.f32.mrf.mxu0
      %v628 = vadd.f32 %v311, %v627
      %v629 = vpop.f32.mrf.mxu0
      %v630 = vpop.f32.mrf.mxu0
      %v631 = vadd.f32 %v311, %v630
      %v632 = vpop.f32.mrf.mxu0
      %633 = vmatprep.mubr.bf16.mxu0 0
      %634 = vmatmul.mubr.bf16.gmra.mxu0 %v447
      %v635 = vpop.f32.mrf.mxu0
      %v636 = vadd.f32 %v311, %v635
      %v637 = vpop.f32.mrf.mxu0
      %v638 = vpop.f32.mrf.mxu0
      %v639 = vadd.f32 %v311, %v638
      %v640 = vpop.f32.mrf.mxu0
      %641 = vmatprep.mubr.bf16.mxu0 0
      %642 = vmatmul.mubr.bf16.gmra.mxu0 %v448
      %v643 = vpop.f32.mrf.mxu0
      %v644 = vadd.f32 %v311, %v643
      %v645 = vpop.f32.mrf.mxu0
      %v646 = vpop.f32.mrf.mxu0
      %v647 = vadd.f32 %v311, %v646
      %v648 = vpop.f32.mrf.mxu0
      %649 = vmatprep.mubr.bf16.mxu0 0
      %650 = vmatmul.mubr.bf16.gmra.mxu0 %v449
      %v651 = vpop.f32.mrf.mxu0
      %v652 = vadd.f32 %v311, %v651
      %v653 = vpop.f32.mrf.mxu0
      %v654 = vpop.f32.mrf.mxu0
      %v655 = vadd.f32 %v311, %v654
      %v656 = vpop.f32.mrf.mxu0
      %657 = vmatprep.mubr.bf16.mxu0 0
      %658 = vmatmul.mubr.bf16.gmra.mxu0 %v450
      %v659 = vpop.f32.mrf.mxu0
      %v660 = vadd.f32 %v311, %v659
      %v661 = vpop.f32.mrf.mxu0
      %v662 = vpop.f32.mrf.mxu0
      %v663 = vadd.f32 %v311, %v662
      %v664 = vpop.f32.mrf.mxu0
      %665 = vmatprep.mubr.bf16.mxu0 0
      %666 = vmatmul.mubr.bf16.gmra.mxu0 %v451
      %v667 = vpop.f32.mrf.mxu0
      %v668 = vadd.f32 %v311, %v667
      %v669 = vpop.f32.mrf.mxu0
      %v670 = vpop.f32.mrf.mxu0
      %v671 = vadd.f32 %v311, %v670
      %v672 = vpop.f32.mrf.mxu0
      %673 = vmatprep.mubr.bf16.mxu0 0
      %674 = vmatmul.mubr.bf16.gmra.mxu0 %v452
      %v675 = vpop.f32.mrf.mxu0
      %v676 = vadd.f32 %v311, %v675
      %v677 = vpop.f32.mrf.mxu0
      %v678 = vpop.f32.mrf.mxu0
      %v679 = vadd.f32 %v311, %v678
      %v680 = vpop.f32.mrf.mxu0
      %681 = vmatprep.mubr.bf16.mxu0 0
      %682 = vmatmul.mubr.bf16.gmra.mxu0 %v453
      %v683 = vpop.f32.mrf.mxu0
      %v684 = vadd.f32 %v311, %v683
      %v685 = vpop.f32.mrf.mxu0
      %v686 = vpop.f32.mrf.mxu0
      %v687 = vadd.f32 %v311, %v686
      %v688 = vpop.f32.mrf.mxu0
      %689 = vmatprep.mubr.bf16.mxu0 0
      %690 = vmatmul.mubr.bf16.gmra.mxu0 %v454
      %v691 = vpop.f32.mrf.mxu0
      %v692 = vadd.f32 %v311, %v691
      %v693 = vpop.f32.mrf.mxu0
      %v694 = vpop.f32.mrf.mxu0
      %v695 = vadd.f32 %v311, %v694
      %v696 = vpop.f32.mrf.mxu0
      %697 = vmatprep.mubr.bf16.mxu0 0
      %698 = vmatmul.mubr.bf16.gmra.mxu0 %v455
      %v699 = vpop.f32.mrf.mxu0
      %v700 = vadd.f32 %v311, %v699
      %v701 = vpop.f32.mrf.mxu0
      %v702 = vpop.f32.mrf.mxu0
      %v703 = vadd.f32 %v311, %v702
      %v704 = vpop.f32.mrf.mxu0
      %705 = vmatprep.mubr.bf16.mxu0 0
      %706 = vmatmul.mubr.bf16.gmra.mxu0 %v456
      %v707 = vpop.f32.mrf.mxu0
      %v708 = vadd.f32 %v311, %v707
      %v709 = vpop.f32.mrf.mxu0
      %v710 = vpop.f32.mrf.mxu0
      %v711 = vadd.f32 %v311, %v710
      %v712 = vpop.f32.mrf.mxu0
      %713 = vmatprep.mubr.bf16.mxu0 0
      %714 = vmatmul.mubr.bf16.gmra.mxu0 %v457
      %v715 = vpop.f32.mrf.mxu0
      %v716 = vadd.f32 %v311, %v715
      %v717 = vpop.f32.mrf.mxu0
      %v718 = vpop.f32.mrf.mxu0
      %v719 = vadd.f32 %v311, %v718
      %v720 = vpop.f32.mrf.mxu0
      %721 = vmatprep.mubr.bf16.mxu0 0
      %722 = vmatmul.mubr.bf16.gmra.mxu0 %v458
      %v723 = vpop.f32.mrf.mxu0
      %v724 = vadd.f32 %v311, %v723
      %v725 = vpop.f32.mrf.mxu0
      %v726 = vpop.f32.mrf.mxu0
      %v727 = vadd.f32 %v311, %v726
      %v728 = vpop.f32.mrf.mxu0
      %729 = vmatprep.mubr.bf16.mxu0 0
      %730 = vmatmul.mubr.bf16.gmra.mxu0 %v459
      %v731 = vpop.f32.mrf.mxu0
      %v732 = vadd.f32 %v311, %v731
      %v733 = vpop.f32.mrf.mxu0
      %v734 = vpop.f32.mrf.mxu0
      %v735 = vadd.f32 %v311, %v734
      %v736 = vpop.f32.mrf.mxu0
      %737 = vmatprep.mubr.bf16.mxu0 0
      %738 = vmatmul.mubr.bf16.gmra.mxu0 %v460
      %v739 = vpop.f32.mrf.mxu0
      %v740 = vadd.f32 %v311, %v739
      %v741 = vpop.f32.mrf.mxu0
      %v742 = vpop.f32.mrf.mxu0
      %v743 = vadd.f32 %v311, %v742
      %v744 = vpop.f32.mrf.mxu0
      %745 = vmatprep.mubr.bf16.mxu0 0
      %746 = vmatmul.mubr.bf16.gmra.mxu0 %v461
      %v747 = vpop.f32.mrf.mxu0
      %v748 = vadd.f32 %v311, %v747
      %v749 = vpop.f32.mrf.mxu0
      %v750 = vpop.f32.mrf.mxu0
      %v751 = vadd.f32 %v311, %v750
      %v752 = vpop.f32.mrf.mxu0
      %753 = vmatprep.mubr.bf16.mxu0 0
      %754 = vmatmul.mubr.bf16.gmra.mxu0 %v462
      %v755 = vpop.f32.mrf.mxu0
      %v756 = vadd.f32 %v311, %v755
      %v757 = vpop.f32.mrf.mxu0
      %v758 = vpop.f32.mrf.mxu0
      %v759 = vadd.f32 %v311, %v758
      %v760 = vpop.f32.mrf.mxu0
      %761 = vmatprep.mubr.bf16.mxu0 0
      %762 = vmatmul.mubr.bf16.gmra.mxu0 %v463
      %v763 = vpop.f32.mrf.mxu0
      %v764 = vadd.f32 %v311, %v763
      %v765 = vpop.f32.mrf.mxu0
      %v766 = vpop.f32.mrf.mxu0
      %v767 = vadd.f32 %v311, %v766
      %v768 = vpop.f32.mrf.mxu0
      %769 = vmatprep.mubr.bf16.mxu0 0
      %770 = vmatmul.mubr.bf16.gmra.mxu0 %v464
      %v771 = vpop.f32.mrf.mxu0
      %v772 = vadd.f32 %v311, %v771
      %v773 = vpop.f32.mrf.mxu0
      %v774 = vpop.f32.mrf.mxu0
      %v775 = vadd.f32 %v311, %v774
      %v776 = vpop.f32.mrf.mxu0
      %777 = vmatprep.mubr.bf16.mxu0 0
      %778 = vmatmul.mubr.bf16.gmra.mxu0 %v465
      %v779 = vpop.f32.mrf.mxu0
      %v780 = vadd.f32 %v311, %v779
      %v781 = vpop.f32.mrf.mxu0
      %v782 = vpop.f32.mrf.mxu0
      %v783 = vadd.f32 %v311, %v782
      %v784 = vpop.f32.mrf.mxu0
      %785 = vmatprep.mubr.bf16.mxu0 0
      %786 = vmatmul.mubr.bf16.gmra.mxu0 %v466
      %v787 = vpop.f32.mrf.mxu0
      %v788 = vadd.f32 %v311, %v787
      %v789 = vpop.f32.mrf.mxu0
      %v790 = vpop.f32.mrf.mxu0
      %v791 = vadd.f32 %v311, %v790
      %v792 = vpop.f32.mrf.mxu0
      %793 = vmatprep.mubr.bf16.mxu0 0
      %794 = vmatmul.mubr.bf16.gmra.mxu0 %v467
      %v795 = vpop.f32.mrf.mxu0
      %v796 = vadd.f32 %v311, %v795
      %v797 = vpop.f32.mrf.mxu0
      %v798 = vpop.f32.mrf.mxu0
      %v799 = vadd.f32 %v311, %v798
      %v800 = vpop.f32.mrf.mxu0
      %801 = vmatprep.mubr.bf16.mxu0 0
      %802 = vmatmul.mubr.bf16.gmra.mxu0 %v468
      %v803 = vpop.f32.mrf.mxu0
      %v804 = vadd.f32 %v311, %v803
      %v805 = vpop.f32.mrf.mxu0
      %v806 = vpop.f32.mrf.mxu0
      %v807 = vadd.f32 %v311, %v806
      %v808 = vpop.f32.mrf.mxu0
      %809 = vmatprep.mubr.bf16.mxu0 0
      %810 = vmatmul.mubr.bf16.gmra.mxu0 %v469
      %v811 = vpop.f32.mrf.mxu0
      %v812 = vadd.f32 %v311, %v811
      %v813 = vpop.f32.mrf.mxu0
      %v814 = vpop.f32.mrf.mxu0
      %v815 = vadd.f32 %v311, %v814
      %v816 = vpop.f32.mrf.mxu0
      %817 = vmatprep.mubr.bf16.mxu0 0
      %818 = vmatmul.mubr.bf16.gmra.mxu0 %v470
      %v819 = vpop.f32.mrf.mxu0
      %v820 = vadd.f32 %v311, %v819
      %v821 = vpop.f32.mrf.mxu0
      %v822 = vpop.f32.mrf.mxu0
      %v823 = vadd.f32 %v311, %v822
      %v824 = vpop.f32.mrf.mxu0
      %825 = vmatprep.mubr.bf16.mxu0 0
      %826 = vmatmul.mubr.bf16.gmra.mxu0 %v471
      %v827 = vpop.f32.mrf.mxu0
      %v828 = vadd.f32 %v311, %v827
      %v829 = vpop.f32.mrf.mxu0
      %v830 = vpop.f32.mrf.mxu0
      %v831 = vadd.f32 %v311, %v830
      %v832 = vpop.f32.mrf.mxu0
      %833 = vmatprep.mubr.bf16.mxu0 0
      %834 = vmatmul.mubr.bf16.gmra.mxu0 %v472
      %v835 = vpop.f32.mrf.mxu0
      %v836 = vadd.f32 %v311, %v835
      %v837 = vpop.f32.mrf.mxu0
      %v838 = vpop.f32.mrf.mxu0
      %v839 = vadd.f32 %v311, %v838
      %v840 = vpop.f32.mrf.mxu0
      %841 = vdwg.mxu0
      %vm842 = vcmp.ge.f32.partialorder %v588, 0.0
      %vm843 = vcmp.ge.f32.partialorder %v591, 0.0
      %vm844 = vcmp.ge.f32.partialorder %v596, 0.0
      %vm845 = vcmp.ge.f32.partialorder %v599, 0.0
      %vm846 = vcmp.ge.f32.partialorder %v604, 0.0
      %vm847 = vcmp.ge.f32.partialorder %v607, 0.0
      %vm848 = vcmp.ge.f32.partialorder %v612, 0.0
      %vm849 = vcmp.ge.f32.partialorder %v615, 0.0
      %vm850 = vcmp.ge.f32.partialorder %v620, 0.0
      %vm851 = vcmp.ge.f32.partialorder %v623, 0.0
      %vm852 = vcmp.ge.f32.partialorder %v628, 0.0
      %vm853 = vcmp.ge.f32.partialorder %v631, 0.0
      %vm854 = vcmp.ge.f32.partialorder %v636, 0.0
      %vm855 = vcmp.ge.f32.partialorder %v639, 0.0
      %vm856 = vcmp.ge.f32.partialorder %v644, 0.0
      %vm857 = vcmp.ge.f32.partialorder %v647, 0.0
      %vm858 = vcmp.ge.f32.partialorder %v652, 0.0
      %vm859 = vcmp.ge.f32.partialorder %v655, 0.0
      %vm860 = vcmp.ge.f32.partialorder %v660, 0.0
      %vm861 = vcmp.ge.f32.partialorder %v663, 0.0
      %vm862 = vcmp.ge.f32.partialorder %v668, 0.0
      %vm863 = vcmp.ge.f32.partialorder %v671, 0.0
      %vm864 = vcmp.ge.f32.partialorder %v676, 0.0
      %vm865 = vcmp.ge.f32.partialorder %v679, 0.0
      %vm866 = vcmp.ge.f32.partialorder %v684, 0.0
      %vm867 = vcmp.ge.f32.partialorder %v687, 0.0
      %vm868 = vcmp.ge.f32.partialorder %v692, 0.0
      %vm869 = vcmp.ge.f32.partialorder %v695, 0.0
      %vm870 = vcmp.ge.f32.partialorder %v700, 0.0
      %vm871 = vcmp.ge.f32.partialorder %v703, 0.0
      %vm872 = vcmp.ge.f32.partialorder %v708, 0.0
      %vm873 = vcmp.ge.f32.partialorder %v711, 0.0
      %vm874 = vcmp.ge.f32.partialorder %v716, 0.0
      %vm875 = vcmp.ge.f32.partialorder %v719, 0.0
      %vm876 = vcmp.ge.f32.partialorder %v724, 0.0
      %vm877 = vcmp.ge.f32.partialorder %v727, 0.0
      %vm878 = vcmp.ge.f32.partialorder %v732, 0.0
      %vm879 = vcmp.ge.f32.partialorder %v735, 0.0
      %vm880 = vcmp.ge.f32.partialorder %v740, 0.0
      %vm881 = vcmp.ge.f32.partialorder %v743, 0.0
      %vm882 = vcmp.ge.f32.partialorder %v748, 0.0
      %vm883 = vcmp.ge.f32.partialorder %v751, 0.0
      %vm884 = vcmp.ge.f32.partialorder %v756, 0.0
      %vm885 = vcmp.ge.f32.partialorder %v759, 0.0
      %vm886 = vcmp.ge.f32.partialorder %v764, 0.0
      %vm887 = vcmp.ge.f32.partialorder %v767, 0.0
      %vm888 = vcmp.ge.f32.partialorder %v772, 0.0
      %vm889 = vcmp.ge.f32.partialorder %v775, 0.0
      %vm890 = vcmp.ge.f32.partialorder %v780, 0.0
      %vm891 = vcmp.ge.f32.partialorder %v783, 0.0
      %vm892 = vcmp.ge.f32.partialorder %v788, 0.0
      %vm893 = vcmp.ge.f32.partialorder %v791, 0.0
      %vm894 = vcmp.ge.f32.partialorder %v796, 0.0
      %vm895 = vcmp.ge.f32.partialorder %v799, 0.0
      %vm896 = vcmp.ge.f32.partialorder %v804, 0.0
      %vm897 = vcmp.ge.f32.partialorder %v807, 0.0
      %vm898 = vcmp.ge.f32.partialorder %v812, 0.0
      %vm899 = vcmp.ge.f32.partialorder %v815, 0.0
      %vm900 = vcmp.ge.f32.partialorder %v820, 0.0
      %vm901 = vcmp.ge.f32.partialorder %v823, 0.0
      %vm902 = vcmp.ge.f32.partialorder %v828, 0.0
      %vm903 = vcmp.ge.f32.partialorder %v831, 0.0
      %vm904 = vcmp.ge.f32.partialorder %v836, 0.0
      %vm905 = vcmp.ge.f32.partialorder %v839, 0.0
      %v906 = vmul.f32 %v588, 0.2
      %v907 = vmul.f32 %v591, 0.2
      %v908 = vmul.f32 %v596, 0.2
      %v909 = vmul.f32 %v599, 0.2
      %v910 = vmul.f32 %v604, 0.2
      %v911 = vmul.f32 %v607, 0.2
      %v912 = vmul.f32 %v612, 0.2
      %v913 = vmul.f32 %v615, 0.2
      %v914 = vmul.f32 %v620, 0.2
      %v915 = vmul.f32 %v623, 0.2
      %v916 = vmul.f32 %v628, 0.2
      %v917 = vmul.f32 %v631, 0.2
      %v918 = vmul.f32 %v636, 0.2
      %v919 = vmul.f32 %v639, 0.2
      %v920 = vmul.f32 %v644, 0.2
      %v921 = vmul.f32 %v647, 0.2
      %v922 = vmul.f32 %v652, 0.2
      %v923 = vmul.f32 %v655, 0.2
      %v924 = vmul.f32 %v660, 0.2
      %v925 = vmul.f32 %v663, 0.2
      %v926 = vmul.f32 %v668, 0.2
      %v927 = vmul.f32 %v671, 0.2
      %v928 = vmul.f32 %v676, 0.2
      %v929 = vmul.f32 %v679, 0.2
      %v930 = vmul.f32 %v684, 0.2
      %v931 = vmul.f32 %v687, 0.2
      %v932 = vmul.f32 %v692, 0.2
      %v933 = vmul.f32 %v695, 0.2
      %v934 = vmul.f32 %v700, 0.2
      %v935 = vmul.f32 %v703, 0.2
      %v936 = vmul.f32 %v708, 0.2
      %v937 = vmul.f32 %v711, 0.2
      %v938 = vmul.f32 %v716, 0.2
      %v939 = vmul.f32 %v719, 0.2
      %v940 = vmul.f32 %v724, 0.2
      %v941 = vmul.f32 %v727, 0.2
      %v942 = vmul.f32 %v732, 0.2
      %v943 = vmul.f32 %v735, 0.2
      %v944 = vmul.f32 %v740, 0.2
      %v945 = vmul.f32 %v743, 0.2
      %v946 = vmul.f32 %v748, 0.2
      %v947 = vmul.f32 %v751, 0.2
      %v948 = vmul.f32 %v756, 0.2
      %v949 = vmul.f32 %v759, 0.2
      %v950 = vmul.f32 %v764, 0.2
      %v951 = vmul.f32 %v767, 0.2
      %v952 = vmul.f32 %v772, 0.2
      %v953 = vmul.f32 %v775, 0.2
      %v954 = vmul.f32 %v780, 0.2
      %v955 = vmul.f32 %v783, 0.2
      %v956 = vmul.f32 %v788, 0.2
      %v957 = vmul.f32 %v791, 0.2
      %v958 = vmul.f32 %v796, 0.2
      %v959 = vmul.f32 %v799, 0.2
      %v960 = vmul.f32 %v804, 0.2
      %v961 = vmul.f32 %v807, 0.2
      %v962 = vmul.f32 %v812, 0.2
      %v963 = vmul.f32 %v815, 0.2
      %v964 = vmul.f32 %v820, 0.2
      %v965 = vmul.f32 %v823, 0.2
      %v966 = vmul.f32 %v828, 0.2
      %v967 = vmul.f32 %v831, 0.2
      %v968 = vmul.f32 %v836, 0.2
      %v969 = vmul.f32 %v839, 0.2
      %v970 = vsel %vm842, %v588, %v906
      %v971 = vsel %vm843, %v591, %v907
      %v972 = vsel %vm844, %v596, %v908
      %v973 = vsel %vm845, %v599, %v909
      %v974 = vsel %vm846, %v604, %v910
      %v975 = vsel %vm847, %v607, %v911
      %v976 = vsel %vm848, %v612, %v912
      %v977 = vsel %vm849, %v615, %v913
      %v978 = vsel %vm850, %v620, %v914
      %v979 = vsel %vm851, %v623, %v915
      %v980 = vsel %vm852, %v628, %v916
      %v981 = vsel %vm853, %v631, %v917
      %v982 = vsel %vm854, %v636, %v918
      %v983 = vsel %vm855, %v639, %v919
      %v984 = vsel %vm856, %v644, %v920
      %v985 = vsel %vm857, %v647, %v921
      %v986 = vsel %vm858, %v652, %v922
      %v987 = vsel %vm859, %v655, %v923
      %v988 = vsel %vm860, %v660, %v924
      %v989 = vsel %vm861, %v663, %v925
      %v990 = vsel %vm862, %v668, %v926
      %v991 = vsel %vm863, %v671, %v927
      %v992 = vsel %vm864, %v676, %v928
      %v993 = vsel %vm865, %v679, %v929
      %v994 = vsel %vm866, %v684, %v930
      %v995 = vsel %vm867, %v687, %v931
      %v996 = vsel %vm868, %v692, %v932
      %v997 = vsel %vm869, %v695, %v933
      %v998 = vsel %vm870, %v700, %v934
      %v999 = vsel %vm871, %v703, %v935
      %v1000 = vsel %vm872, %v708, %v936
      %v1001 = vsel %vm873, %v711, %v937
      %v1002 = vsel %vm874, %v716, %v938
      %v1003 = vsel %vm875, %v719, %v939
      %v1004 = vsel %vm876, %v724, %v940
      %v1005 = vsel %vm877, %v727, %v941
      %v1006 = vsel %vm878, %v732, %v942
      %v1007 = vsel %vm879, %v735, %v943
      %v1008 = vsel %vm880, %v740, %v944
      %v1009 = vsel %vm881, %v743, %v945
      %v1010 = vsel %vm882, %v748, %v946
      %v1011 = vsel %vm883, %v751, %v947
      %v1012 = vsel %vm884, %v756, %v948
      %v1013 = vsel %vm885, %v759, %v949
      %v1014 = vsel %vm886, %v764, %v950
      %v1015 = vsel %vm887, %v767, %v951
      %v1016 = vsel %vm888, %v772, %v952
      %v1017 = vsel %vm889, %v775, %v953
      %v1018 = vsel %vm890, %v780, %v954
      %v1019 = vsel %vm891, %v783, %v955
      %v1020 = vsel %vm892, %v788, %v956
      %v1021 = vsel %vm893, %v791, %v957
      %v1022 = vsel %vm894, %v796, %v958
      %v1023 = vsel %vm895, %v799, %v959
      %v1024 = vsel %vm896, %v804, %v960
      %v1025 = vsel %vm897, %v807, %v961
      %v1026 = vsel %vm898, %v812, %v962
      %v1027 = vsel %vm899, %v815, %v963
      %v1028 = vsel %vm900, %v820, %v964
      %v1029 = vsel %vm901, %v823, %v965
      %v1030 = vsel %vm902, %v828, %v966
      %v1031 = vsel %vm903, %v831, %v967
      %v1032 = vsel %vm904, %v836, %v968
      %v1033 = vsel %vm905, %v839, %v969
      %v1034 = vpack.c.bf16 %v971, %v970
      %v1035 = vpack.c.bf16 %v973, %v972
      %v1036 = vpack.c.bf16 %v975, %v974
      %v1037 = vpack.c.bf16 %v977, %v976
      %v1038 = vpack.c.bf16 %v979, %v978
      %v1039 = vpack.c.bf16 %v981, %v980
      %v1040 = vpack.c.bf16 %v983, %v982
      %v1041 = vpack.c.bf16 %v985, %v984
      %v1042 = vpack.c.bf16 %v987, %v986
      %v1043 = vpack.c.bf16 %v989, %v988
      %v1044 = vpack.c.bf16 %v991, %v990
      %v1045 = vpack.c.bf16 %v993, %v992
      %v1046 = vpack.c.bf16 %v995, %v994
      %v1047 = vpack.c.bf16 %v997, %v996
      %v1048 = vpack.c.bf16 %v999, %v998
      %v1049 = vpack.c.bf16 %v1001, %v1000
      %v1050 = vpack.c.bf16 %v1003, %v1002
      %v1051 = vpack.c.bf16 %v1005, %v1004
      %v1052 = vpack.c.bf16 %v1007, %v1006
      %v1053 = vpack.c.bf16 %v1009, %v1008
      %v1054 = vpack.c.bf16 %v1011, %v1010
      %v1055 = vpack.c.bf16 %v1013, %v1012
      %v1056 = vpack.c.bf16 %v1015, %v1014
      %v1057 = vpack.c.bf16 %v1017, %v1016
      %v1058 = vpack.c.bf16 %v1019, %v1018
      %v1059 = vpack.c.bf16 %v1021, %v1020
      %v1060 = vpack.c.bf16 %v1023, %v1022
      %v1061 = vpack.c.bf16 %v1025, %v1024
      %v1062 = vpack.c.bf16 %v1027, %v1026
      %v1063 = vpack.c.bf16 %v1029, %v1028
      %v1064 = vpack.c.bf16 %v1031, %v1030
      %v1065 = vpack.c.bf16 %v1033, %v1032
      %v1098 = vunpack.c.l.b16 %v1034
      %v1099 = vunpack.c.h.b16 %v1034
      %v1100 = vunpack.c.l.b16 %v1035
      %v1101 = vunpack.c.h.b16 %v1035
      %v1102 = vunpack.c.l.b16 %v1036
      %v1103 = vunpack.c.h.b16 %v1036
      %v1104 = vunpack.c.l.b16 %v1037
      %v1105 = vunpack.c.h.b16 %v1037
      %v1106 = vunpack.c.l.b16 %v1038
      %v1107 = vunpack.c.h.b16 %v1038
      %v1108 = vunpack.c.l.b16 %v1039
      %v1109 = vunpack.c.h.b16 %v1039
      %v1110 = vunpack.c.l.b16 %v1040
      %v1111 = vunpack.c.h.b16 %v1040
      %v1112 = vunpack.c.l.b16 %v1041
      %v1113 = vunpack.c.h.b16 %v1041
      %v1114 = vunpack.c.l.b16 %v1042
      %v1115 = vunpack.c.h.b16 %v1042
      %v1116 = vunpack.c.l.b16 %v1043
      %v1117 = vunpack.c.h.b16 %v1043
      %v1118 = vunpack.c.l.b16 %v1044
      %v1119 = vunpack.c.h.b16 %v1044
      %v1120 = vunpack.c.l.b16 %v1045
      %v1121 = vunpack.c.h.b16 %v1045
      %v1122 = vunpack.c.l.b16 %v1046
      %v1123 = vunpack.c.h.b16 %v1046
      %v1124 = vunpack.c.l.b16 %v1047
      %v1125 = vunpack.c.h.b16 %v1047
      %v1126 = vunpack.c.l.b16 %v1048
      %v1127 = vunpack.c.h.b16 %v1048
      %v1128 = vunpack.c.l.b16 %v1049
      %v1129 = vunpack.c.h.b16 %v1049
      %v1130 = vunpack.c.l.b16 %v1050
      %v1131 = vunpack.c.h.b16 %v1050
      %v1132 = vunpack.c.l.b16 %v1051
      %v1133 = vunpack.c.h.b16 %v1051
      %v1134 = vunpack.c.l.b16 %v1052
      %v1135 = vunpack.c.h.b16 %v1052
      %v1136 = vunpack.c.l.b16 %v1053
      %v1137 = vunpack.c.h.b16 %v1053
      %v1138 = vunpack.c.l.b16 %v1054
      %v1139 = vunpack.c.h.b16 %v1054
      %v1140 = vunpack.c.l.b16 %v1055
      %v1141 = vunpack.c.h.b16 %v1055
      %v1142 = vunpack.c.l.b16 %v1056
      %v1143 = vunpack.c.h.b16 %v1056
      %v1144 = vunpack.c.l.b16 %v1057
      %v1145 = vunpack.c.h.b16 %v1057
      %v1146 = vunpack.c.l.b16 %v1058
      %v1147 = vunpack.c.h.b16 %v1058
      %v1148 = vunpack.c.l.b16 %v1059
      %v1149 = vunpack.c.h.b16 %v1059
      %v1150 = vunpack.c.l.b16 %v1060
      %v1151 = vunpack.c.h.b16 %v1060
      %v1152 = vunpack.c.l.b16 %v1061
      %v1153 = vunpack.c.h.b16 %v1061
      %v1154 = vunpack.c.l.b16 %v1062
      %v1155 = vunpack.c.h.b16 %v1062
      %v1156 = vunpack.c.l.b16 %v1063
      %v1157 = vunpack.c.h.b16 %v1063
      %v1158 = vunpack.c.l.b16 %v1064
      %v1159 = vunpack.c.h.b16 %v1064
      %v1160 = vunpack.c.l.b16 %v1065
      %v1161 = vunpack.c.h.b16 %v1065
      %v1162 = vpack.c.b16 %v1098, %v1098
      %v1163 = vpack.c.b16 %v1099, %v1099
      %v1164 = vpack.c.b16 %v1100, %v1100
      %v1165 = vpack.c.b16 %v1101, %v1101
      %v1166 = vpack.c.b16 %v1102, %v1102
      %v1167 = vpack.c.b16 %v1103, %v1103
      %v1168 = vpack.c.b16 %v1104, %v1104
      %v1169 = vpack.c.b16 %v1105, %v1105
      %v1170 = vpack.c.b16 %v1106, %v1106
      %v1171 = vpack.c.b16 %v1107, %v1107
      %v1172 = vpack.c.b16 %v1108, %v1108
      %v1173 = vpack.c.b16 %v1109, %v1109
      %v1174 = vpack.c.b16 %v1110, %v1110
      %v1175 = vpack.c.b16 %v1111, %v1111
      %v1176 = vpack.c.b16 %v1112, %v1112
      %v1177 = vpack.c.b16 %v1113, %v1113
      %v1178 = vpack.c.b16 %v1114, %v1114
      %v1179 = vpack.c.b16 %v1115, %v1115
      %v1180 = vpack.c.b16 %v1116, %v1116
      %v1181 = vpack.c.b16 %v1117, %v1117
      %v1182 = vpack.c.b16 %v1118, %v1118
      %v1183 = vpack.c.b16 %v1119, %v1119
      %v1184 = vpack.c.b16 %v1120, %v1120
      %v1185 = vpack.c.b16 %v1121, %v1121
      %v1186 = vpack.c.b16 %v1122, %v1122
      %v1187 = vpack.c.b16 %v1123, %v1123
      %v1188 = vpack.c.b16 %v1124, %v1124
      %v1189 = vpack.c.b16 %v1125, %v1125
      %v1190 = vpack.c.b16 %v1126, %v1126
      %v1191 = vpack.c.b16 %v1127, %v1127
      %v1192 = vpack.c.b16 %v1128, %v1128
      %v1193 = vpack.c.b16 %v1129, %v1129
      %v1194 = vpack.c.b16 %v1130, %v1130
      %v1195 = vpack.c.b16 %v1131, %v1131
      %v1196 = vpack.c.b16 %v1132, %v1132
      %v1197 = vpack.c.b16 %v1133, %v1133
      %v1198 = vpack.c.b16 %v1134, %v1134
      %v1199 = vpack.c.b16 %v1135, %v1135
      %v1200 = vpack.c.b16 %v1136, %v1136
      %v1201 = vpack.c.b16 %v1137, %v1137
      %v1202 = vpack.c.b16 %v1138, %v1138
      %v1203 = vpack.c.b16 %v1139, %v1139
      %v1204 = vpack.c.b16 %v1140, %v1140
      %v1205 = vpack.c.b16 %v1141, %v1141
      %v1206 = vpack.c.b16 %v1142, %v1142
      %v1207 = vpack.c.b16 %v1143, %v1143
      %v1208 = vpack.c.b16 %v1144, %v1144
      %v1209 = vpack.c.b16 %v1145, %v1145
      %v1210 = vpack.c.b16 %v1146, %v1146
      %v1211 = vpack.c.b16 %v1147, %v1147
      %v1212 = vpack.c.b16 %v1148, %v1148
      %v1213 = vpack.c.b16 %v1149, %v1149
      %v1214 = vpack.c.b16 %v1150, %v1150
      %v1215 = vpack.c.b16 %v1151, %v1151
      %v1216 = vpack.c.b16 %v1152, %v1152
      %v1217 = vpack.c.b16 %v1153, %v1153
      %v1218 = vpack.c.b16 %v1154, %v1154
      %v1219 = vpack.c.b16 %v1155, %v1155
      %v1220 = vpack.c.b16 %v1156, %v1156
      %v1221 = vpack.c.b16 %v1157, %v1157
      %v1222 = vpack.c.b16 %v1158, %v1158
      %v1223 = vpack.c.b16 %v1159, %v1159
      %v1224 = vpack.c.b16 %v1160, %v1160
      %v1225 = vpack.c.b16 %v1161, %v1161
      %1290 = vst [vmem:[%s223] sm:$0xf] %v1162
      %1291 = vst [vmem:[%s223 + $0x4] sm:$0xf] %v1163
      %1292 = vst [vmem:[%s223 + $0x8] sm:$0xf] %v1164
      %1293 = vst [vmem:[%s223 + $0xc] sm:$0xf] %v1165
      %1294 = vst [vmem:[%s223 + $0x10] sm:$0xf] %v1166
      %1295 = vst [vmem:[%s223 + $0x14] sm:$0xf] %v1167
      %1296 = vst [vmem:[%s223 + $0x18] sm:$0xf] %v1168
      %1297 = vst [vmem:[%s223 + $0x1c] sm:$0xf] %v1169
      %1298 = vst [vmem:[%s223 + $0x20] sm:$0xf] %v1170
      %1299 = vst [vmem:[%s223 + $0x24] sm:$0xf] %v1171
      %1300 = vst [vmem:[%s223 + $0x28] sm:$0xf] %v1172
      %1301 = vst [vmem:[%s223 + $0x2c] sm:$0xf] %v1173
      %1302 = vst [vmem:[%s223 + $0x30] sm:$0xf] %v1174
      %1303 = vst [vmem:[%s223 + $0x34] sm:$0xf] %v1175
      %1304 = vst [vmem:[%s223 + $0x38] sm:$0xf] %v1176
      %1305 = vst [vmem:[%s223 + $0x3c] sm:$0xf] %v1177
      %1306 = vst [vmem:[%s223 + $0x40] sm:$0xf] %v1178
      %1307 = vst [vmem:[%s223 + $0x44] sm:$0xf] %v1179
      %1308 = vst [vmem:[%s223 + $0x48] sm:$0xf] %v1180
      %1309 = vst [vmem:[%s223 + $0x4c] sm:$0xf] %v1181
      %1310 = vst [vmem:[%s223 + $0x50] sm:$0xf] %v1182
      %1311 = vst [vmem:[%s223 + $0x54] sm:$0xf] %v1183
      %1312 = vst [vmem:[%s223 + $0x58] sm:$0xf] %v1184
      %1313 = vst [vmem:[%s223 + $0x5c] sm:$0xf] %v1185
      %1314 = vst [vmem:[%s223 + $0x60] sm:$0xf] %v1186
      %1315 = vst [vmem:[%s223 + $0x64] sm:$0xf] %v1187
      %1316 = vst [vmem:[%s223 + $0x68] sm:$0xf] %v1188
      %1317 = vst [vmem:[%s223 + $0x6c] sm:$0xf] %v1189
      %1318 = vst [vmem:[%s223 + $0x70] sm:$0xf] %v1190
      %1319 = vst [vmem:[%s223 + $0x74] sm:$0xf] %v1191
      %1320 = vst [vmem:[%s223 + $0x78] sm:$0xf] %v1192
      %1321 = vst [vmem:[%s223 + $0x7c] sm:$0xf] %v1193
      %1322 = vst [vmem:[%s223 + $0x80] sm:$0xf] %v1194
      %1323 = vst [vmem:[%s223 + $0x84] sm:$0xf] %v1195
      %1324 = vst [vmem:[%s223 + $0x88] sm:$0xf] %v1196
      %1325 = vst [vmem:[%s223 + $0x8c] sm:$0xf] %v1197
      %1326 = vst [vmem:[%s223 + $0x90] sm:$0xf] %v1198
      %1327 = vst [vmem:[%s223 + $0x94] sm:$0xf] %v1199
      %1328 = vst [vmem:[%s223 + $0x98] sm:$0xf] %v1200
      %1329 = vst [vmem:[%s223 + $0x9c] sm:$0xf] %v1201
      %1330 = vst [vmem:[%s223 + $0xa0] sm:$0xf] %v1202
      %1331 = vst [vmem:[%s223 + $0xa4] sm:$0xf] %v1203
      %1332 = vst [vmem:[%s223 + $0xa8] sm:$0xf] %v1204
      %1333 = vst [vmem:[%s223 + $0xac] sm:$0xf] %v1205
      %1334 = vst [vmem:[%s223 + $0xb0] sm:$0xf] %v1206
      %1335 = vst [vmem:[%s223 + $0xb4] sm:$0xf] %v1207
      %1336 = vst [vmem:[%s223 + $0xb8] sm:$0xf] %v1208
      %1337 = vst [vmem:[%s223 + $0xbc] sm:$0xf] %v1209
      %1338 = vst [vmem:[%s223 + $0xc0] sm:$0xf] %v1210
      %1339 = vst [vmem:[%s223 + $0xc4] sm:$0xf] %v1211
      %1340 = vst [vmem:[%s223 + $0xc8] sm:$0xf] %v1212
      %1341 = vst [vmem:[%s223 + $0xcc] sm:$0xf] %v1213
      %1342 = vst [vmem:[%s223 + $0xd0] sm:$0xf] %v1214
      %1343 = vst [vmem:[%s223 + $0xd4] sm:$0xf] %v1215
      %1344 = vst [vmem:[%s223 + $0xd8] sm:$0xf] %v1216
      %1345 = vst [vmem:[%s223 + $0xdc] sm:$0xf] %v1217
      %1346 = vst [vmem:[%s223 + $0xe0] sm:$0xf] %v1218
      %1347 = vst [vmem:[%s223 + $0xe4] sm:$0xf] %v1219
      %1348 = vst [vmem:[%s223 + $0xe8] sm:$0xf] %v1220
      %1349 = vst [vmem:[%s223 + $0xec] sm:$0xf] %v1221
      %1350 = vst [vmem:[%s223 + $0xf0] sm:$0xf] %v1222
      %1351 = vst [vmem:[%s223 + $0xf4] sm:$0xf] %v1223
      %1352 = vst [vmem:[%s223 + $0xf8] sm:$0xf] %v1224
      %1353 = vst [vmem:[%s223 + $0xfc] sm:$0xf] %v1225
      %s1354 = smul.u32 64, %s18
      %p1355 = scmp.lt.s32.totalorder %s1354, 1023
      %s1356 = scalar_select %p1355, %s1354, 1023
      %p1357 = scmp.lt.s32.totalorder %s19, 0
      %s1358 = scalar_select %p1357, %s19, 0
      %s1359 = sadd.s32 %s1358, %s1356
      %s1360 = smul.addr %s1359, 4
      %s1361 = scalar_lea.vmem %s3, %s1360
      // Predicated region
      $region33: #{_lambda_.5} parent=31 // pred_check
        %p1362 = pneg %p124
      $region34: #{_lambda_.5} parent=31 // pred_check_branch
        %1364 = sbr.rel (%p1362) target = $region36
      $region35: #{_lambda_.5} parent=31 // pred_region
        %s1365 = smul.u32 64, %s18
      $region36: #{_lambda_.5} parent=31 // pred_fallthru
        _
    $region32: #{_lambda_.5} parent=5 // pred_fallthru
      _
    %p1366 = scmp.le.s32.totalorder 2, %s9
    // Predicated region
    $region37: #{_lambda_.5} parent=5 // pred_check
      %p1367 = pneg %p1366
    $region38: #{_lambda_.5} parent=5 // pred_check_branch
      %1369 = sbr.rel (%p1367) target = $region40
    $region39: #{_lambda_.5} parent=5 // pred_region
      %s1370 = ssub.s32 %s9, 2
      // Predicated region
      $region41: #{_lambda_.5} parent=39 // pred_check
        %p1371 = pneg %p130
      $region42: #{_lambda_.5} parent=39 // pred_check_branch
        %1373 = sbr.rel (%p1371) target = $region44
      $region43: #{_lambda_.5} parent=39 // pred_region
        %s1374 = smul.u32 64, %s20
        %p1375 = scmp.lt.s32.totalorder %s1374, 1023
        %s1376 = scalar_select %p1375, %s1374, 1023
        %p1377 = scmp.lt.s32.totalorder %s21, 0
        %s1378 = scalar_select %p1377, %s21, 0
        %s1379 = sadd.s32 %s1378, %s1376
        %s1380 = smul.addr %s1379, 4
        %s1381 = scalar_lea.vmem %s3, %s1380
      $region44: #{_lambda_.5} parent=39 // pred_fallthru
        _
    $region40: #{_lambda_.5} parent=5 // pred_fallthru
      _
  $region6: #{_lambda_.5} parent=0 // loop_footer
    %s13 = sadd.s32 1, %s9
  $region7: #{_lambda_.5} parent=0 // loop_footer_branch
    %8 = sbr.rel target = $region3
  $region8: #{_lambda_.5} parent=0 // loop_exit
    _

// kernel: _lambda_.6
$region0: #{_lambda_.6}
  #allocation0 [shape = 'u32[]', space=smem, size = 0x4, offset = 0x4, fixed_abs, tag = 'smem constant byte address 0x4 - core index']
  #allocation1 [shape = 'u32[144,128]{1,0:T(1,128)}', space=vmem, size = 0x12000, scoped, tag = 'internal scratch']
  %s0 = inlined_call_operand.vmem [shape: bf16[464,256], index: 0, kind: input, shape index: {}]
  %s1 = inlined_call_operand.vmem [shape: bf16[256,128], index: 1, kind: input, shape index: {}]
  %s2 = inlined_call_operand.vmem [shape: f32[1,128], index: 2, kind: input, shape index: {}]
  %s3 = inlined_call_operand.vmem [shape: bf16[464,128], index: 3, kind: output, shape index: {}]
  %s4 = sld [smem:[#allocation0]]
  $region22: #{_lambda_.6} parent=0
    _
  %s6 = ssub.s32 1, %s4
  %s7 = scalar_select 0, %s6, %s4
  // Predicated region
  $region2: #{_lambda_.6} parent=0 // pred_check
    _
  $region3: #{_lambda_.6} parent=0 // pred_check_branch
    %9 = sbr.rel (0) target = $region5
  $region4: #{_lambda_.6} parent=0 // pred_region
    _
  $region5: #{_lambda_.6} parent=0 // pred_fallthru
    _
  // Predicated region
  $region6: #{_lambda_.6} parent=0 // pred_check
    _
  $region7: #{_lambda_.6} parent=0 // pred_check_branch
    %11 = sbr.rel (0) target = $region9
  $region8: #{_lambda_.6} parent=0 // pred_region
    _
  $region9: #{_lambda_.6} parent=0 // pred_fallthru
    _
  // Predicated region
  $region10: #{_lambda_.6} parent=0 // pred_check
    _
  $region11: #{_lambda_.6} parent=0 // pred_check_branch
    %13 = sbr.rel (0) target = $region13
  $region12: #{_lambda_.6} parent=0 // pred_region
    _
  $region13: #{_lambda_.6} parent=0 // pred_fallthru
    _
  %v15 = vld [vmem:[%s0] sm:$0xff]
  %v16 = vld [vmem:[%s0 + $0x8] sm:$0xff]
  %v17 = vld [vmem:[%s0 + $0x10] sm:$0xff]
  %v18 = vld [vmem:[%s0 + $0x18] sm:$0xff]
  %v19 = vld [vmem:[%s0 + $0x20] sm:$0xff]
  %v20 = vld [vmem:[%s0 + $0x28] sm:$0xff]
  %v21 = vld [vmem:[%s0 + $0x30] sm:$0xff]
  %v22 = vld [vmem:[%s0 + $0x38] sm:$0xff]
  %v23 = vld [vmem:[%s0 + $0x40] sm:$0xff]
  %v24 = vld [vmem:[%s0 + $0x48] sm:$0xff]
  %v25 = vld [vmem:[%s0 + $0x50] sm:$0xff]
  %v26 = vld [vmem:[%s0 + $0x58] sm:$0xff]
  %v27 = vld [vmem:[%s0 + $0x60] sm:$0xff]
  %v28 = vld [vmem:[%s0 + $0x68] sm:$0xff]
  %v29 = vld [vmem:[%s0 + $0x70] sm:$0xff]
  %v30 = vld [vmem:[%s0 + $0x78] sm:$0xff]
  %v31 = vld [vmem:[%s0 + $0x80] sm:$0xff]
  %v32 = vld [vmem:[%s0 + $0x88] sm:$0xff]
  %v33 = vld [vmem:[%s0 + $0x90] sm:$0xff]
  %v34 = vld [vmem:[%s0 + $0x98] sm:$0xff]
  %v35 = vld [vmem:[%s0 + $0xa0] sm:$0xff]
  %v36 = vld [vmem:[%s0 + $0xa8] sm:$0xff]
  %v37 = vld [vmem:[%s0 + $0xb0] sm:$0xff]
  %v38 = vld [vmem:[%s0 + $0xb8] sm:$0xff]
  %v39 = vld [vmem:[%s0 + $0xc0] sm:$0xff]
  %v40 = vld [vmem:[%s0 + $0xc8] sm:$0xff]
  %v41 = vld [vmem:[%s0 + $0xd0] sm:$0xff]
  %v42 = vld [vmem:[%s0 + $0xd8] sm:$0xff]
  %v43 = vld [vmem:[%s0 + $0xe0] sm:$0xff]
  %v44 = vld [vmem:[%s0 + $0xe8] sm:$0xff]
  %v45 = vld [vmem:[%s0 + $0xf0] sm:$0xff]
  %v46 = vld [vmem:[%s0 + $0xf8] sm:$0xff]
  %v47 = vld [vmem:[%s0 + $0x100] sm:$0xff]
  %v48 = vld [vmem:[%s0 + $0x108] sm:$0xff]
  %v49 = vld [vmem:[%s0 + $0x110] sm:$0xff]
  %v50 = vld [vmem:[%s0 + $0x118] sm:$0xff]
  %v51 = vld [vmem:[%s0 + $0x120] sm:$0xff]
  %v52 = vld [vmem:[%s0 + $0x128] sm:$0xff]
  %v53 = vld [vmem:[%s0 + $0x130] sm:$0xff]
  %v54 = vld [vmem:[%s0 + $0x138] sm:$0xff]
  %v55 = vld [vmem:[%s0 + $0x140] sm:$0xff]
  %v56 = vld [vmem:[%s0 + $0x148] sm:$0xff]
  %v57 = vld [vmem:[%s0 + $0x150] sm:$0xff]
  %v58 = vld [vmem:[%s0 + $0x158] sm:$0xff]
  %v59 = vld [vmem:[%s0 + $0x160] sm:$0xff]
  %v60 = vld [vmem:[%s0 + $0x168] sm:$0xff]
  %v61 = vld [vmem:[%s0 + $0x170] sm:$0xff]
  %v62 = vld [vmem:[%s0 + $0x178] sm:$0xff]
  %v63 = vld [vmem:[%s0 + $0x180] sm:$0xff]
  %v64 = vld [vmem:[%s0 + $0x188] sm:$0xff]
  %v65 = vld [vmem:[%s0 + $0x190] sm:$0xff]
  %v66 = vld [vmem:[%s0 + $0x198] sm:$0xff]
  %v67 = vld [vmem:[%s0 + $0x1a0] sm:$0xff]
  %v68 = vld [vmem:[%s0 + $0x1a8] sm:$0xff]
  %v69 = vld [vmem:[%s0 + $0x1b0] sm:$0xff]
  %v70 = vld [vmem:[%s0 + $0x1b8] sm:$0xff]
  %v71 = vld [vmem:[%s0 + $0x1c0] sm:$0xff]
  %v72 = vld [vmem:[%s0 + $0x1c8] sm:$0xff]
  %v73 = vld [vmem:[%s1] sm:$0xf]
  %v74 = vld [vmem:[%s1 + $0x4] sm:$0xf]
  %v75 = vld [vmem:[%s1 + $0x8] sm:$0xf]
  %v76 = vld [vmem:[%s1 + $0xc] sm:$0xf]
  %v77 = vld [vmem:[%s1 + $0x10] sm:$0xf]
  %v78 = vld [vmem:[%s1 + $0x14] sm:$0xf]
  %v79 = vld [vmem:[%s1 + $0x18] sm:$0xf]
  %v80 = vld [vmem:[%s1 + $0x1c] sm:$0xf]
  %v81 = vld [vmem:[%s1 + $0x20] sm:$0xf]
  %v82 = vld [vmem:[%s1 + $0x24] sm:$0xf]
  %v83 = vld [vmem:[%s1 + $0x28] sm:$0xf]
  %v84 = vld [vmem:[%s1 + $0x2c] sm:$0xf]
  %v85 = vld [vmem:[%s1 + $0x30] sm:$0xf]
  %v86 = vld [vmem:[%s1 + $0x34] sm:$0xf]
  %v87 = vld [vmem:[%s1 + $0x38] sm:$0xf]
  %v88 = vld [vmem:[%s1 + $0x3c] sm:$0xf]
  %v89 = vld [vmem:[%s1 + $0x40] sm:$0xf]
  %v90 = vld [vmem:[%s1 + $0x44] sm:$0xf]
  %v91 = vld [vmem:[%s1 + $0x48] sm:$0xf]
  %v92 = vld [vmem:[%s1 + $0x4c] sm:$0xf]
  %v93 = vld [vmem:[%s1 + $0x50] sm:$0xf]
  %v94 = vld [vmem:[%s1 + $0x54] sm:$0xf]
  %v95 = vld [vmem:[%s1 + $0x58] sm:$0xf]
  %v96 = vld [vmem:[%s1 + $0x5c] sm:$0xf]
  %v97 = vld [vmem:[%s1 + $0x60] sm:$0xf]
  %v98 = vld [vmem:[%s1 + $0x64] sm:$0xf]
  %v99 = vld [vmem:[%s1 + $0x68] sm:$0xf]
  %v100 = vld [vmem:[%s1 + $0x6c] sm:$0xf]
  %v101 = vld [vmem:[%s1 + $0x70] sm:$0xf]
  %v102 = vld [vmem:[%s1 + $0x74] sm:$0xf]
  %v103 = vld [vmem:[%s1 + $0x78] sm:$0xf]
  %v104 = vld [vmem:[%s1 + $0x7c] sm:$0xf]
  %v105 = vld [vmem:[%s2] sm:$0x1]
  %v107 = vlaneseq
  %v108 = vshrl.u32 %v107, 7
  %v109 = vsub.s32 0, %v108
  %v110 = vrot.slane %v105, %v109
  %v170 = vunpack.c.l.b16 %v15
  %v171 = vunpack.c.h.b16 %v15
  %v172 = vunpack.c.l.b16 %v16
  %v173 = vunpack.c.h.b16 %v16
  %v174 = vunpack.c.l.b16 %v17
  %v175 = vunpack.c.h.b16 %v17
  %v176 = vunpack.c.l.b16 %v18
  %v177 = vunpack.c.h.b16 %v18
  %v178 = vunpack.c.l.b16 %v19
  %v179 = vunpack.c.h.b16 %v19
  %v180 = vunpack.c.l.b16 %v20
  %v181 = vunpack.c.h.b16 %v20
  %v182 = vunpack.c.l.b16 %v21
  %v183 = vunpack.c.h.b16 %v21
  %v184 = vunpack.c.l.b16 %v22
  %v185 = vunpack.c.h.b16 %v22
  %v186 = vunpack.c.l.b16 %v23
  %v187 = vunpack.c.h.b16 %v23
  %v188 = vunpack.c.l.b16 %v24
  %v189 = vunpack.c.h.b16 %v24
  %v190 = vunpack.c.l.b16 %v25
  %v191 = vunpack.c.h.b16 %v25
  %v192 = vunpack.c.l.b16 %v26
  %v193 = vunpack.c.h.b16 %v26
  %v194 = vunpack.c.l.b16 %v27
  %v195 = vunpack.c.h.b16 %v27
  %v196 = vunpack.c.l.b16 %v28
  %v197 = vunpack.c.h.b16 %v28
  %v198 = vunpack.c.l.b16 %v29
  %v199 = vunpack.c.h.b16 %v29
  %v200 = vunpack.c.l.b16 %v30
  %v201 = vunpack.c.h.b16 %v30
  %v202 = vunpack.c.l.b16 %v31
  %v203 = vunpack.c.h.b16 %v31
  %v204 = vunpack.c.l.b16 %v32
  %v205 = vunpack.c.h.b16 %v32
  %v206 = vunpack.c.l.b16 %v33
  %v207 = vunpack.c.h.b16 %v33
  %v208 = vunpack.c.l.b16 %v34
  %v209 = vunpack.c.h.b16 %v34
  %v210 = vunpack.c.l.b16 %v35
  %v211 = vunpack.c.h.b16 %v35
  %v212 = vunpack.c.l.b16 %v36
  %v213 = vunpack.c.h.b16 %v36
  %v214 = vunpack.c.l.b16 %v37
  %v215 = vunpack.c.h.b16 %v37
  %v216 = vunpack.c.l.b16 %v38
  %v217 = vunpack.c.h.b16 %v38
  %v218 = vunpack.c.l.b16 %v39
  %v219 = vunpack.c.h.b16 %v39
  %v220 = vunpack.c.l.b16 %v40
  %v221 = vunpack.c.h.b16 %v40
  %v222 = vunpack.c.l.b16 %v41
  %v223 = vunpack.c.h.b16 %v41
  %v224 = vunpack.c.l.b16 %v42
  %v225 = vunpack.c.h.b16 %v42
  %v226 = vunpack.c.l.b16 %v43
  %v227 = vunpack.c.h.b16 %v43
  %v228 = vunpack.c.l.b16 %v44
  %v229 = vunpack.c.h.b16 %v44
  %v230 = vunpack.c.l.b16 %v45
  %v231 = vunpack.c.h.b16 %v45
  %v232 = vunpack.c.l.b16 %v46
  %v233 = vunpack.c.h.b16 %v46
  %v234 = vunpack.c.l.b16 %v47
  %v235 = vunpack.c.h.b16 %v47
  %v236 = vunpack.c.l.b16 %v48
  %v237 = vunpack.c.h.b16 %v48
  %v238 = vunpack.c.l.b16 %v49
  %v239 = vunpack.c.h.b16 %v49
  %v240 = vunpack.c.l.b16 %v50
  %v241 = vunpack.c.h.b16 %v50
  %v242 = vunpack.c.l.b16 %v51
  %v243 = vunpack.c.h.b16 %v51
  %v244 = vunpack.c.l.b16 %v52
  %v245 = vunpack.c.h.b16 %v52
  %v246 = vunpack.c.l.b16 %v53
  %v247 = vunpack.c.h.b16 %v53
  %v248 = vunpack.c.l.b16 %v54
  %v249 = vunpack.c.h.b16 %v54
  %v250 = vunpack.c.l.b16 %v55
  %v251 = vunpack.c.h.b16 %v55
  %v252 = vunpack.c.l.b16 %v56
  %v253 = vunpack.c.h.b16 %v56
  %v254 = vunpack.c.l.b16 %v57
  %v255 = vunpack.c.h.b16 %v57
  %v256 = vunpack.c.l.b16 %v58
  %v257 = vunpack.c.h.b16 %v58
  %v258 = vunpack.c.l.b16 %v59
  %v259 = vunpack.c.h.b16 %v59
  %v260 = vunpack.c.l.b16 %v60
  %v261 = vunpack.c.h.b16 %v60
  %v262 = vunpack.c.l.b16 %v61
  %v263 = vunpack.c.h.b16 %v61
  %v264 = vunpack.c.l.b16 %v62
  %v265 = vunpack.c.h.b16 %v62
  %v266 = vunpack.c.l.b16 %v63
  %v267 = vunpack.c.h.b16 %v63
  %v268 = vunpack.c.l.b16 %v64
  %v269 = vunpack.c.h.b16 %v64
  %v270 = vunpack.c.l.b16 %v65
  %v271 = vunpack.c.h.b16 %v65
  %v272 = vunpack.c.l.b16 %v66
  %v273 = vunpack.c.h.b16 %v66
  %v274 = vunpack.c.l.b16 %v67
  %v275 = vunpack.c.h.b16 %v67
  %v276 = vunpack.c.l.b16 %v68
  %v277 = vunpack.c.h.b16 %v68
  %v278 = vunpack.c.l.b16 %v69
  %v279 = vunpack.c.h.b16 %v69
  %v280 = vunpack.c.l.b16 %v70
  %v281 = vunpack.c.h.b16 %v70
  %v282 = vunpack.c.l.b16 %v71
  %v283 = vunpack.c.h.b16 %v71
  %v284 = vunpack.c.l.b16 %v72
  %v285 = vunpack.c.h.b16 %v72
  %v286 = vpack.c.b16 %v172, %v170
  %v287 = vpack.c.b16 %v173, %v171
  %v288 = vpack.c.b16 %v176, %v174
  %v289 = vpack.c.b16 %v177, %v175
  %v290 = vpack.c.b16 %v180, %v178
  %v291 = vpack.c.b16 %v181, %v179
  %v292 = vpack.c.b16 %v184, %v182
  %v293 = vpack.c.b16 %v185, %v183
  %v294 = vpack.c.b16 %v188, %v186
  %v295 = vpack.c.b16 %v189, %v187
  %v296 = vpack.c.b16 %v192, %v190
  %v297 = vpack.c.b16 %v193, %v191
  %v298 = vpack.c.b16 %v196, %v194
  %v299 = vpack.c.b16 %v197, %v195
  %v300 = vpack.c.b16 %v200, %v198
  %v301 = vpack.c.b16 %v201, %v199
  %v302 = vpack.c.b16 %v204, %v202
  %v303 = vpack.c.b16 %v205, %v203
  %v304 = vpack.c.b16 %v208, %v206
  %v305 = vpack.c.b16 %v209, %v207
  %v306 = vpack.c.b16 %v212, %v210
  %v307 = vpack.c.b16 %v213, %v211
  %v308 = vpack.c.b16 %v216, %v214
  %v309 = vpack.c.b16 %v217, %v215
  %v310 = vpack.c.b16 %v220, %v218
  %v311 = vpack.c.b16 %v221, %v219
  %v312 = vpack.c.b16 %v224, %v222
  %v313 = vpack.c.b16 %v225, %v223
  %v314 = vpack.c.b16 %v228, %v226
  %v315 = vpack.c.b16 %v229, %v227
  %v316 = vpack.c.b16 %v232, %v230
  %v317 = vpack.c.b16 %v233, %v231
  %v318 = vpack.c.b16 %v236, %v234
  %v319 = vpack.c.b16 %v237, %v235
  %v320 = vpack.c.b16 %v240, %v238
  %v321 = vpack.c.b16 %v241, %v239
  %v322 = vpack.c.b16 %v244, %v242
  %v323 = vpack.c.b16 %v245, %v243
  %v324 = vpack.c.b16 %v248, %v246
  %v325 = vpack.c.b16 %v249, %v247
  %v326 = vpack.c.b16 %v252, %v250
  %v327 = vpack.c.b16 %v253, %v251
  %v328 = vpack.c.b16 %v256, %v254
  %v329 = vpack.c.b16 %v257, %v255
  %v330 = vpack.c.b16 %v260, %v258
  %v331 = vpack.c.b16 %v261, %v259
  %v332 = vpack.c.b16 %v264, %v262
  %v333 = vpack.c.b16 %v265, %v263
  %v334 = vpack.c.b16 %v268, %v266
  %v335 = vpack.c.b16 %v269, %v267
  %v336 = vpack.c.b16 %v272, %v270
  %v337 = vpack.c.b16 %v273, %v271
  %v338 = vpack.c.b16 %v276, %v274
  %v339 = vpack.c.b16 %v277, %v275
  %v340 = vpack.c.b16 %v280, %v278
  %v341 = vpack.c.b16 %v281, %v279
  %v342 = vpack.c.b16 %v284, %v282
  %v343 = vpack.c.b16 %v285, %v283
  %v434 = vunpack.c.l.b16 %v73
  %v435 = vunpack.c.l.b16 %v74
  %v436 = vunpack.c.l.b16 %v75
  %v437 = vunpack.c.l.b16 %v76
  %v438 = vunpack.c.l.b16 %v77
  %v439 = vunpack.c.l.b16 %v78
  %v440 = vunpack.c.l.b16 %v79
  %v441 = vunpack.c.l.b16 %v80
  %v442 = vunpack.c.l.b16 %v81
  %v443 = vunpack.c.l.b16 %v82
  %v444 = vunpack.c.l.b16 %v83
  %v445 = vunpack.c.l.b16 %v84
  %v446 = vunpack.c.l.b16 %v85
  %v447 = vunpack.c.l.b16 %v86
  %v448 = vunpack.c.l.b16 %v87
  %v449 = vunpack.c.l.b16 %v88
  %v450 = vunpack.c.l.b16 %v89
  %v451 = vunpack.c.l.b16 %v90
  %v452 = vunpack.c.l.b16 %v91
  %v453 = vunpack.c.l.b16 %v92
  %v454 = vunpack.c.l.b16 %v93
  %v455 = vunpack.c.l.b16 %v94
  %v456 = vunpack.c.l.b16 %v95
  %v457 = vunpack.c.l.b16 %v96
  %v458 = vunpack.c.l.b16 %v97
  %v459 = vunpack.c.l.b16 %v98
  %v460 = vunpack.c.l.b16 %v99
  %v461 = vunpack.c.l.b16 %v100
  %v462 = vunpack.c.l.b16 %v101
  %v463 = vunpack.c.l.b16 %v102
  %v464 = vunpack.c.l.b16 %v103
  %v465 = vunpack.c.l.b16 %v104
  %v466 = vpack.c.b16 %v435, %v434
  %v467 = vpack.c.b16 %v437, %v436
  %v468 = vpack.c.b16 %v439, %v438
  %v469 = vpack.c.b16 %v441, %v440
  %v470 = vpack.c.b16 %v443, %v442
  %v471 = vpack.c.b16 %v445, %v444
  %v472 = vpack.c.b16 %v447, %v446
  %v473 = vpack.c.b16 %v449, %v448
  %v474 = vpack.c.b16 %v451, %v450
  %v475 = vpack.c.b16 %v453, %v452
  %v476 = vpack.c.b16 %v455, %v454
  %v477 = vpack.c.b16 %v457, %v456
  %v478 = vpack.c.b16 %v459, %v458
  %v479 = vpack.c.b16 %v461, %v460
  %v480 = vpack.c.b16 %v463, %v462
  %v481 = vpack.c.b16 %v465, %v464
  %498 = vmatprep.subr.bf16.mxu0 0
  %499 = vmatpush1.bf16.msra.mxu0 %v473
  %500 = vmatprep.subr.bf16.mxu0 0
  %501 = vmatpush1.bf16.msra.mxu0 %v472
  %502 = vmatprep.subr.bf16.mxu0 0
  %503 = vmatpush1.bf16.msra.mxu0 %v471
  %504 = vmatprep.subr.bf16.mxu0 0
  %505 = vmatpush1.bf16.msra.mxu0 %v470
  %506 = vmatprep.subr.bf16.mxu0 0
  %507 = vmatpush1.bf16.msra.mxu0 %v469
  %508 = vmatprep.subr.bf16.mxu0 0
  %509 = vmatpush1.bf16.msra.mxu0 %v468
  %510 = vmatprep.subr.bf16.mxu0 0
  %511 = vmatpush1.bf16.msra.mxu0 %v467
  %512 = vmatprep.subr.bf16.mxu0 0
  %513 = vmatpush1.bf16.msra.mxu0 %v466
  %514 = vmatprep.subr.bf16.mxu0 0
  %515 = vmatpush2.bf16.msra.mxu0 %v481
  %516 = vmatprep.subr.bf16.mxu0 0
  %517 = vmatpush2.bf16.msra.mxu0 %v480
  %518 = vmatprep.subr.bf16.mxu0 0
  %519 = vmatpush2.bf16.msra.mxu0 %v479
  %520 = vmatprep.subr.bf16.mxu0 0
  %521 = vmatpush2.bf16.msra.mxu0 %v478
  %522 = vmatprep.subr.bf16.mxu0 0
  %523 = vmatpush2.bf16.msra.mxu0 %v477
  %524 = vmatprep.subr.bf16.mxu0 0
  %525 = vmatpush2.bf16.msra.mxu0 %v476
  %526 = vmatprep.subr.bf16.mxu0 0
  %527 = vmatpush2.bf16.msra.mxu0 %v475
  %528 = vmatprep.subr.bf16.mxu0 0
  %529 = vmatpush2.bf16.msra.mxu0 %v474
  %530 = vmatprep.mubr.bf16.mxu0 %v287
  %531 = vmatmul.mubr.bf16.gmra.mxu0 %v286
  %v532 = vpop.f32.mrf.mxu0
  %v533 = vadd.f32 %v110, %v532
  %v534 = vpop.f32.mrf.mxu0
  %v535 = vpop.f32.mrf.mxu0
  %v536 = vadd.f32 %v110, %v535
  %v537 = vpop.f32.mrf.mxu0
  %538 = vmatprep.mubr.bf16.mxu0 %v289
  %539 = vmatmul.mubr.bf16.gmra.mxu0 %v288
  %v540 = vpop.f32.mrf.mxu0
  %v541 = vadd.f32 %v110, %v540
  %v542 = vpop.f32.mrf.mxu0
  %v543 = vpop.f32.mrf.mxu0
  %v544 = vadd.f32 %v110, %v543
  %v545 = vpop.f32.mrf.mxu0
  %546 = vmatprep.mubr.bf16.mxu0 %v291
  %547 = vmatmul.mubr.bf16.gmra.mxu0 %v290
  %v548 = vpop.f32.mrf.mxu0
  %v549 = vadd.f32 %v110, %v548
  %v550 = vpop.f32.mrf.mxu0
  %v551 = vpop.f32.mrf.mxu0
  %v552 = vadd.f32 %v110, %v551
  %v553 = vpop.f32.mrf.mxu0
  %554 = vmatprep.mubr.bf16.mxu0 %v293
  %555 = vmatmul.mubr.bf16.gmra.mxu0 %v292
  %v556 = vpop.f32.mrf.mxu0
  %v557 = vadd.f32 %v110, %v556
  %v558 = vpop.f32.mrf.mxu0
  %v559 = vpop.f32.mrf.mxu0
  %v560 = vadd.f32 %v110, %v559
  %v561 = vpop.f32.mrf.mxu0
  %562 = vmatprep.mubr.bf16.mxu0 %v295
  %563 = vmatmul.mubr.bf16.gmra.mxu0 %v294
  %v564 = vpop.f32.mrf.mxu0
  %v565 = vadd.f32 %v110, %v564
  %v566 = vpop.f32.mrf.mxu0
  %v567 = vpop.f32.mrf.mxu0
  %v568 = vadd.f32 %v110, %v567
  %v569 = vpop.f32.mrf.mxu0
  %570 = vmatprep.mubr.bf16.mxu0 %v297
  %571 = vmatmul.mubr.bf16.gmra.mxu0 %v296
  %v572 = vpop.f32.mrf.mxu0
  %v573 = vadd.f32 %v110, %v572
  %v574 = vpop.f32.mrf.mxu0
  %v575 = vpop.f32.mrf.mxu0
  %v576 = vadd.f32 %v110, %v575
  %v577 = vpop.f32.mrf.mxu0
  %578 = vmatprep.mubr.bf16.mxu0 %v299
  %579 = vmatmul.mubr.bf16.gmra.mxu0 %v298
  %v580 = vpop.f32.mrf.mxu0
  %v581 = vadd.f32 %v110, %v580
  %v582 = vpop.f32.mrf.mxu0
  %v583 = vpop.f32.mrf.mxu0
  %v584 = vadd.f32 %v110, %v583
  %v585 = vpop.f32.mrf.mxu0
  %586 = vmatprep.mubr.bf16.mxu0 %v301
  %587 = vmatmul.mubr.bf16.gmra.mxu0 %v300
  %v588 = vpop.f32.mrf.mxu0
  %v589 = vadd.f32 %v110, %v588
  %v590 = vpop.f32.mrf.mxu0
  %v591 = vpop.f32.mrf.mxu0
  %v592 = vadd.f32 %v110, %v591
  %v593 = vpop.f32.mrf.mxu0
  %594 = vmatprep.mubr.bf16.mxu0 %v303
  %595 = vmatmul.mubr.bf16.gmra.mxu0 %v302
  %v596 = vpop.f32.mrf.mxu0
  %v597 = vadd.f32 %v110, %v596
  %v598 = vpop.f32.mrf.mxu0
  %v599 = vpop.f32.mrf.mxu0
  %v600 = vadd.f32 %v110, %v599
  %v601 = vpop.f32.mrf.mxu0
  %602 = vmatprep.mubr.bf16.mxu0 %v305
  %603 = vmatmul.mubr.bf16.gmra.mxu0 %v304
  %v604 = vpop.f32.mrf.mxu0
  %v605 = vadd.f32 %v110, %v604
  %v606 = vpop.f32.mrf.mxu0
  %v607 = vpop.f32.mrf.mxu0
  %v608 = vadd.f32 %v110, %v607
  %v609 = vpop.f32.mrf.mxu0
  %610 = vmatprep.mubr.bf16.mxu0 %v307
  %611 = vmatmul.mubr.bf16.gmra.mxu0 %v306
  %v612 = vpop.f32.mrf.mxu0
  %v613 = vadd.f32 %v110, %v612
  %v614 = vpop.f32.mrf.mxu0
  %v615 = vpop.f32.mrf.mxu0
  %v616 = vadd.f32 %v110, %v615
  %v617 = vpop.f32.mrf.mxu0
  %618 = vmatprep.mubr.bf16.mxu0 %v309
  %619 = vmatmul.mubr.bf16.gmra.mxu0 %v308
  %v620 = vpop.f32.mrf.mxu0
  %v621 = vadd.f32 %v110, %v620
  %v622 = vpop.f32.mrf.mxu0
  %v623 = vpop.f32.mrf.mxu0
  %v624 = vadd.f32 %v110, %v623
  %v625 = vpop.f32.mrf.mxu0
  %626 = vmatprep.mubr.bf16.mxu0 %v311
  %627 = vmatmul.mubr.bf16.gmra.mxu0 %v310
  %v628 = vpop.f32.mrf.mxu0
  %v629 = vadd.f32 %v110, %v628
  %v630 = vpop.f32.mrf.mxu0
  %v631 = vpop.f32.mrf.mxu0
  %v632 = vadd.f32 %v110, %v631
  %v633 = vpop.f32.mrf.mxu0
  %634 = vmatprep.mubr.bf16.mxu0 %v313
  %635 = vmatmul.mubr.bf16.gmra.mxu0 %v312
  %v636 = vpop.f32.mrf.mxu0
  %v637 = vadd.f32 %v110, %v636
  %v638 = vpop.f32.mrf.mxu0
  %v639 = vpop.f32.mrf.mxu0
  %v640 = vadd.f32 %v110, %v639
  %v641 = vpop.f32.mrf.mxu0
  %642 = vmatprep.mubr.bf16.mxu0 %v315
  %643 = vmatmul.mubr.bf16.gmra.mxu0 %v314
  %v644 = vpop.f32.mrf.mxu0
  %v645 = vadd.f32 %v110, %v644
  %v646 = vpop.f32.mrf.mxu0
  %v647 = vpop.f32.mrf.mxu0
  %v648 = vadd.f32 %v110, %v647
  %v649 = vpop.f32.mrf.mxu0
  %650 = vmatprep.mubr.bf16.mxu0 %v317
  %651 = vmatmul.mubr.bf16.gmra.mxu0 %v316
  %v652 = vpop.f32.mrf.mxu0
  %v653 = vadd.f32 %v110, %v652
  %v654 = vpop.f32.mrf.mxu0
  %v655 = vpop.f32.mrf.mxu0
  %v656 = vadd.f32 %v110, %v655
  %v657 = vpop.f32.mrf.mxu0
  %658 = vmatprep.mubr.bf16.mxu0 %v319
  %659 = vmatmul.mubr.bf16.gmra.mxu0 %v318
  %v660 = vpop.f32.mrf.mxu0
  %v661 = vadd.f32 %v110, %v660
  %v662 = vpop.f32.mrf.mxu0
  %v663 = vpop.f32.mrf.mxu0
  %v664 = vadd.f32 %v110, %v663
  %v665 = vpop.f32.mrf.mxu0
  %666 = vmatprep.mubr.bf16.mxu0 %v321
  %667 = vmatmul.mubr.bf16.gmra.mxu0 %v320
  %v668 = vpop.f32.mrf.mxu0
  %v669 = vadd.f32 %v110, %v668
  %v670 = vpop.f32.mrf.mxu0
  %v671 = vpop.f32.mrf.mxu0
  %v672 = vadd.f32 %v110, %v671
  %v673 = vpop.f32.mrf.mxu0
  %674 = vmatprep.mubr.bf16.mxu0 %v323
  %675 = vmatmul.mubr.bf16.gmra.mxu0 %v322
  %v676 = vpop.f32.mrf.mxu0
  %v677 = vadd.f32 %v110, %v676
  %v678 = vpop.f32.mrf.mxu0
  %v679 = vpop.f32.mrf.mxu0
  %v680 = vadd.f32 %v110, %v679
  %v681 = vpop.f32.mrf.mxu0
  %682 = vmatprep.mubr.bf16.mxu0 %v325
  %683 = vmatmul.mubr.bf16.gmra.mxu0 %v324
  %v684 = vpop.f32.mrf.mxu0
  %v685 = vadd.f32 %v110, %v684
  %v686 = vpop.f32.mrf.mxu0
  %v687 = vpop.f32.mrf.mxu0
  %v688 = vadd.f32 %v110, %v687
  %v689 = vpop.f32.mrf.mxu0
  %690 = vmatprep.mubr.bf16.mxu0 %v327
  %691 = vmatmul.mubr.bf16.gmra.mxu0 %v326
  %v692 = vpop.f32.mrf.mxu0
  %v693 = vadd.f32 %v110, %v692
  %v694 = vpop.f32.mrf.mxu0
  %v695 = vpop.f32.mrf.mxu0
  %v696 = vadd.f32 %v110, %v695
  %v697 = vpop.f32.mrf.mxu0
  %698 = vmatprep.mubr.bf16.mxu0 %v329
  %699 = vmatmul.mubr.bf16.gmra.mxu0 %v328
  %v700 = vpop.f32.mrf.mxu0
  %v701 = vadd.f32 %v110, %v700
  %v702 = vpop.f32.mrf.mxu0
  %v703 = vpop.f32.mrf.mxu0
  %v704 = vadd.f32 %v110, %v703
  %v705 = vpop.f32.mrf.mxu0
  %706 = vmatprep.mubr.bf16.mxu0 %v331
  %707 = vmatmul.mubr.bf16.gmra.mxu0 %v330
  %v708 = vpop.f32.mrf.mxu0
  %v709 = vadd.f32 %v110, %v708
  %v710 = vpop.f32.mrf.mxu0
  %v711 = vpop.f32.mrf.mxu0
  %v712 = vadd.f32 %v110, %v711
  %v713 = vpop.f32.mrf.mxu0
  %714 = vmatprep.mubr.bf16.mxu0 %v333
  %715 = vmatmul.mubr.bf16.gmra.mxu0 %v332
  %v716 = vpop.f32.mrf.mxu0
  %v717 = vadd.f32 %v110, %v716
  %v718 = vpop.f32.mrf.mxu0
  %v719 = vpop.f32.mrf.mxu0
  %v720 = vadd.f32 %v110, %v719
  %v721 = vpop.f32.mrf.mxu0
  %722 = vmatprep.mubr.bf16.mxu0 %v335
  %723 = vmatmul.mubr.bf16.gmra.mxu0 %v334
  %v724 = vpop.f32.mrf.mxu0
  %v725 = vadd.f32 %v110, %v724
  %v726 = vpop.f32.mrf.mxu0
  %v727 = vpop.f32.mrf.mxu0
  %v728 = vadd.f32 %v110, %v727
  %v729 = vpop.f32.mrf.mxu0
  %730 = vmatprep.mubr.bf16.mxu0 %v337
  %731 = vmatmul.mubr.bf16.gmra.mxu0 %v336
  %v732 = vpop.f32.mrf.mxu0
  %v733 = vadd.f32 %v110, %v732
  %v734 = vpop.f32.mrf.mxu0
  %v735 = vpop.f32.mrf.mxu0
  %v736 = vadd.f32 %v110, %v735
  %v737 = vpop.f32.mrf.mxu0
  %738 = vmatprep.mubr.bf16.mxu0 %v339
  %739 = vmatmul.mubr.bf16.gmra.mxu0 %v338
  %v740 = vpop.f32.mrf.mxu0
  %v741 = vadd.f32 %v110, %v740
  %v742 = vpop.f32.mrf.mxu0
  %v743 = vpop.f32.mrf.mxu0
  %v744 = vadd.f32 %v110, %v743
  %v745 = vpop.f32.mrf.mxu0
  %746 = vmatprep.mubr.bf16.mxu0 %v341
  %747 = vmatmul.mubr.bf16.gmra.mxu0 %v340
  %v748 = vpop.f32.mrf.mxu0
  %v749 = vadd.f32 %v110, %v748
  %v750 = vpop.f32.mrf.mxu0
  %v751 = vpop.f32.mrf.mxu0
  %v752 = vadd.f32 %v110, %v751
  %v753 = vpop.f32.mrf.mxu0
  %754 = vmatprep.mubr.bf16.mxu0 %v343
  %755 = vmatmul.mubr.bf16.gmra.mxu0 %v342
  %v756 = vpop.f32.mrf.mxu0
  %v757 = vadd.f32 %v110, %v756
  %v758 = vpop.f32.mrf.mxu0
  %v759 = vpop.f32.mrf.mxu0
  %v760 = vadd.f32 %v110, %v759
  %v761 = vpop.f32.mrf.mxu0
  %762 = vdwg.mxu0
  %vm763 = vcmp.ge.f32.partialorder %v533, 0.0
  %vm764 = vcmp.ge.f32.partialorder %v536, 0.0
  %vm765 = vcmp.ge.f32.partialorder %v541, 0.0
  %vm766 = vcmp.ge.f32.partialorder %v544, 0.0
  %vm767 = vcmp.ge.f32.partialorder %v549, 0.0
  %vm768 = vcmp.ge.f32.partialorder %v552, 0.0
  %vm769 = vcmp.ge.f32.partialorder %v557, 0.0
  %vm770 = vcmp.ge.f32.partialorder %v560, 0.0
  %vm771 = vcmp.ge.f32.partialorder %v565, 0.0
  %vm772 = vcmp.ge.f32.partialorder %v568, 0.0
  %vm773 = vcmp.ge.f32.partialorder %v573, 0.0
  %vm774 = vcmp.ge.f32.partialorder %v576, 0.0
  %vm775 = vcmp.ge.f32.partialorder %v581, 0.0
  %vm776 = vcmp.ge.f32.partialorder %v584, 0.0
  %vm777 = vcmp.ge.f32.partialorder %v589, 0.0
  %vm778 = vcmp.ge.f32.partialorder %v592, 0.0
  %vm779 = vcmp.ge.f32.partialorder %v597, 0.0
  %vm780 = vcmp.ge.f32.partialorder %v600, 0.0
  %vm781 = vcmp.ge.f32.partialorder %v605, 0.0
  %vm782 = vcmp.ge.f32.partialorder %v608, 0.0
  %vm783 = vcmp.ge.f32.partialorder %v613, 0.0
  %vm784 = vcmp.ge.f32.partialorder %v616, 0.0
  %vm785 = vcmp.ge.f32.partialorder %v621, 0.0
  %vm786 = vcmp.ge.f32.partialorder %v624, 0.0
  %vm787 = vcmp.ge.f32.partialorder %v629, 0.0
  %vm788 = vcmp.ge.f32.partialorder %v632, 0.0
  %vm789 = vcmp.ge.f32.partialorder %v637, 0.0
  %vm790 = vcmp.ge.f32.partialorder %v640, 0.0
  %vm791 = vcmp.ge.f32.partialorder %v645, 0.0
  %vm792 = vcmp.ge.f32.partialorder %v648, 0.0
  %vm793 = vcmp.ge.f32.partialorder %v653, 0.0
  %vm794 = vcmp.ge.f32.partialorder %v656, 0.0
  %vm795 = vcmp.ge.f32.partialorder %v661, 0.0
  %vm796 = vcmp.ge.f32.partialorder %v664, 0.0
  %vm797 = vcmp.ge.f32.partialorder %v669, 0.0
  %vm798 = vcmp.ge.f32.partialorder %v672, 0.0
  %vm799 = vcmp.ge.f32.partialorder %v677, 0.0
  %vm800 = vcmp.ge.f32.partialorder %v680, 0.0
  %vm801 = vcmp.ge.f32.partialorder %v685, 0.0
  %vm802 = vcmp.ge.f32.partialorder %v688, 0.0
  %vm803 = vcmp.ge.f32.partialorder %v693, 0.0
  %vm804 = vcmp.ge.f32.partialorder %v696, 0.0
  %vm805 = vcmp.ge.f32.partialorder %v701, 0.0
  %vm806 = vcmp.ge.f32.partialorder %v704, 0.0
  %vm807 = vcmp.ge.f32.partialorder %v709, 0.0
  %vm808 = vcmp.ge.f32.partialorder %v712, 0.0
  %vm809 = vcmp.ge.f32.partialorder %v717, 0.0
  %vm810 = vcmp.ge.f32.partialorder %v720, 0.0
  %vm811 = vcmp.ge.f32.partialorder %v725, 0.0
  %vm812 = vcmp.ge.f32.partialorder %v728, 0.0
  %vm813 = vcmp.ge.f32.partialorder %v733, 0.0
  %vm814 = vcmp.ge.f32.partialorder %v736, 0.0
  %vm815 = vcmp.ge.f32.partialorder %v741, 0.0
  %vm816 = vcmp.ge.f32.partialorder %v744, 0.0
  %vm817 = vcmp.ge.f32.partialorder %v749, 0.0
  %vm818 = vcmp.ge.f32.partialorder %v752, 0.0
  %vm819 = vcmp.ge.f32.partialorder %v757, 0.0
  %vm820 = vcmp.ge.f32.partialorder %v760, 0.0
  %v821 = vmul.f32 %v533, 0.2
  %v822 = vmul.f32 %v536, 0.2
  %v823 = vmul.f32 %v541, 0.2
  %v824 = vmul.f32 %v544, 0.2
  %v825 = vmul.f32 %v549, 0.2
  %v826 = vmul.f32 %v552, 0.2
  %v827 = vmul.f32 %v557, 0.2
  %v828 = vmul.f32 %v560, 0.2
  %v829 = vmul.f32 %v565, 0.2
  %v830 = vmul.f32 %v568, 0.2
  %v831 = vmul.f32 %v573, 0.2
  %v832 = vmul.f32 %v576, 0.2
  %v833 = vmul.f32 %v581, 0.2
  %v834 = vmul.f32 %v584, 0.2
  %v835 = vmul.f32 %v589, 0.2
  %v836 = vmul.f32 %v592, 0.2
  %v837 = vmul.f32 %v597, 0.2
  %v838 = vmul.f32 %v600, 0.2
  %v839 = vmul.f32 %v605, 0.2
  %v840 = vmul.f32 %v608, 0.2
  %v841 = vmul.f32 %v613, 0.2
  %v842 = vmul.f32 %v616, 0.2
  %v843 = vmul.f32 %v621, 0.2
  %v844 = vmul.f32 %v624, 0.2
  %v845 = vmul.f32 %v629, 0.2
  %v846 = vmul.f32 %v632, 0.2
  %v847 = vmul.f32 %v637, 0.2
  %v848 = vmul.f32 %v640, 0.2
  %v849 = vmul.f32 %v645, 0.2
  %v850 = vmul.f32 %v648, 0.2
  %v851 = vmul.f32 %v653, 0.2
  %v852 = vmul.f32 %v656, 0.2
  %v853 = vmul.f32 %v661, 0.2
  %v854 = vmul.f32 %v664, 0.2
  %v855 = vmul.f32 %v669, 0.2
  %v856 = vmul.f32 %v672, 0.2
  %v857 = vmul.f32 %v677, 0.2
  %v858 = vmul.f32 %v680, 0.2
  %v859 = vmul.f32 %v685, 0.2
  %v860 = vmul.f32 %v688, 0.2
  %v861 = vmul.f32 %v693, 0.2
  %v862 = vmul.f32 %v696, 0.2
  %v863 = vmul.f32 %v701, 0.2
  %v864 = vmul.f32 %v704, 0.2
  %v865 = vmul.f32 %v709, 0.2
  %v866 = vmul.f32 %v712, 0.2
  %v867 = vmul.f32 %v717, 0.2
  %v868 = vmul.f32 %v720, 0.2
  %v869 = vmul.f32 %v725, 0.2
  %v870 = vmul.f32 %v728, 0.2
  %v871 = vmul.f32 %v733, 0.2
  %v872 = vmul.f32 %v736, 0.2
  %v873 = vmul.f32 %v741, 0.2
  %v874 = vmul.f32 %v744, 0.2
  %v875 = vmul.f32 %v749, 0.2
  %v876 = vmul.f32 %v752, 0.2
  %v877 = vmul.f32 %v757, 0.2
  %v878 = vmul.f32 %v760, 0.2
  %v879 = vsel %vm763, %v533, %v821
  %v880 = vsel %vm764, %v536, %v822
  %v881 = vsel %vm765, %v541, %v823
  %v882 = vsel %vm766, %v544, %v824
  %v883 = vsel %vm767, %v549, %v825
  %v884 = vsel %vm768, %v552, %v826
  %v885 = vsel %vm769, %v557, %v827
  %v886 = vsel %vm770, %v560, %v828
  %v887 = vsel %vm771, %v565, %v829
  %v888 = vsel %vm772, %v568, %v830
  %v889 = vsel %vm773, %v573, %v831
  %v890 = vsel %vm774, %v576, %v832
  %v891 = vsel %vm775, %v581, %v833
  %v892 = vsel %vm776, %v584, %v834
  %v893 = vsel %vm777, %v589, %v835
  %v894 = vsel %vm778, %v592, %v836
  %v895 = vsel %vm779, %v597, %v837
  %v896 = vsel %vm780, %v600, %v838
  %v897 = vsel %vm781, %v605, %v839
  %v898 = vsel %vm782, %v608, %v840
  %v899 = vsel %vm783, %v613, %v841
  %v900 = vsel %vm784, %v616, %v842
  %v901 = vsel %vm785, %v621, %v843
  %v902 = vsel %vm786, %v624, %v844
  %v903 = vsel %vm787, %v629, %v845
  %v904 = vsel %vm788, %v632, %v846
  %v905 = vsel %vm789, %v637, %v847
  %v906 = vsel %vm790, %v640, %v848
  %v907 = vsel %vm791, %v645, %v849
  %v908 = vsel %vm792, %v648, %v850
  %v909 = vsel %vm793, %v653, %v851
  %v910 = vsel %vm794, %v656, %v852
  %v911 = vsel %vm795, %v661, %v853
  %v912 = vsel %vm796, %v664, %v854
  %v913 = vsel %vm797, %v669, %v855
  %v914 = vsel %vm798, %v672, %v856
  %v915 = vsel %vm799, %v677, %v857
  %v916 = vsel %vm800, %v680, %v858
  %v917 = vsel %vm801, %v685, %v859
  %v918 = vsel %vm802, %v688, %v860
  %v919 = vsel %vm803, %v693, %v861
  %v920 = vsel %vm804, %v696, %v862
  %v921 = vsel %vm805, %v701, %v863
  %v922 = vsel %vm806, %v704, %v864
  %v923 = vsel %vm807, %v709, %v865
  %v924 = vsel %vm808, %v712, %v866
  %v925 = vsel %vm809, %v717, %v867
  %v926 = vsel %vm810, %v720, %v868
  %v927 = vsel %vm811, %v725, %v869
  %v928 = vsel %vm812, %v728, %v870
  %v929 = vsel %vm813, %v733, %v871
  %v930 = vsel %vm814, %v736, %v872
  %v931 = vsel %vm815, %v741, %v873
  %v932 = vsel %vm816, %v744, %v874
  %v933 = vsel %vm817, %v749, %v875
  %v934 = vsel %vm818, %v752, %v876
  %v935 = vsel %vm819, %v757, %v877
  %v936 = vsel %vm820, %v760, %v878
  %v937 = vpack.c.bf16 %v880, %v879
  %v938 = vpack.c.bf16 %v882, %v881
  %v939 = vpack.c.bf16 %v884, %v883
  %v940 = vpack.c.bf16 %v886, %v885
  %v941 = vpack.c.bf16 %v888, %v887
  %v942 = vpack.c.bf16 %v890, %v889
  %v943 = vpack.c.bf16 %v892, %v891
  %v944 = vpack.c.bf16 %v894, %v893
  %v945 = vpack.c.bf16 %v896, %v895
  %v946 = vpack.c.bf16 %v898, %v897
  %v947 = vpack.c.bf16 %v900, %v899
  %v948 = vpack.c.bf16 %v902, %v901
  %v949 = vpack.c.bf16 %v904, %v903
  %v950 = vpack.c.bf16 %v906, %v905
  %v951 = vpack.c.bf16 %v908, %v907
  %v952 = vpack.c.bf16 %v910, %v909
  %v953 = vpack.c.bf16 %v912, %v911
  %v954 = vpack.c.bf16 %v914, %v913
  %v955 = vpack.c.bf16 %v916, %v915
  %v956 = vpack.c.bf16 %v918, %v917
  %v957 = vpack.c.bf16 %v920, %v919
  %v958 = vpack.c.bf16 %v922, %v921
  %v959 = vpack.c.bf16 %v924, %v923
  %v960 = vpack.c.bf16 %v926, %v925
  %v961 = vpack.c.bf16 %v928, %v927
  %v962 = vpack.c.bf16 %v930, %v929
  %v963 = vpack.c.bf16 %v932, %v931
  %v964 = vpack.c.bf16 %v934, %v933
  %v965 = vpack.c.bf16 %v936, %v935
  %v995 = vunpack.c.l.b16 %v937
  %v996 = vunpack.c.h.b16 %v937
  %v997 = vunpack.c.l.b16 %v938
  %v998 = vunpack.c.h.b16 %v938
  %v999 = vunpack.c.l.b16 %v939
  %v1000 = vunpack.c.h.b16 %v939
  %v1001 = vunpack.c.l.b16 %v940
  %v1002 = vunpack.c.h.b16 %v940
  %v1003 = vunpack.c.l.b16 %v941
  %v1004 = vunpack.c.h.b16 %v941
  %v1005 = vunpack.c.l.b16 %v942
  %v1006 = vunpack.c.h.b16 %v942
  %v1007 = vunpack.c.l.b16 %v943
  %v1008 = vunpack.c.h.b16 %v943
  %v1009 = vunpack.c.l.b16 %v944
  %v1010 = vunpack.c.h.b16 %v944
  %v1011 = vunpack.c.l.b16 %v945
  %v1012 = vunpack.c.h.b16 %v945
  %v1013 = vunpack.c.l.b16 %v946
  %v1014 = vunpack.c.h.b16 %v946
  %v1015 = vunpack.c.l.b16 %v947
  %v1016 = vunpack.c.h.b16 %v947
  %v1017 = vunpack.c.l.b16 %v948
  %v1018 = vunpack.c.h.b16 %v948
  %v1019 = vunpack.c.l.b16 %v949
  %v1020 = vunpack.c.h.b16 %v949
  %v1021 = vunpack.c.l.b16 %v950
  %v1022 = vunpack.c.h.b16 %v950
  %v1023 = vunpack.c.l.b16 %v951
  %v1024 = vunpack.c.h.b16 %v951
  %v1025 = vunpack.c.l.b16 %v952
  %v1026 = vunpack.c.h.b16 %v952
  %v1027 = vunpack.c.l.b16 %v953
  %v1028 = vunpack.c.h.b16 %v953
  %v1029 = vunpack.c.l.b16 %v954
  %v1030 = vunpack.c.h.b16 %v954
  %v1031 = vunpack.c.l.b16 %v955
  %v1032 = vunpack.c.h.b16 %v955
  %v1033 = vunpack.c.l.b16 %v956
  %v1034 = vunpack.c.h.b16 %v956
  %v1035 = vunpack.c.l.b16 %v957
  %v1036 = vunpack.c.h.b16 %v957
  %v1037 = vunpack.c.l.b16 %v958
  %v1038 = vunpack.c.h.b16 %v958
  %v1039 = vunpack.c.l.b16 %v959
  %v1040 = vunpack.c.h.b16 %v959
  %v1041 = vunpack.c.l.b16 %v960
  %v1042 = vunpack.c.h.b16 %v960
  %v1043 = vunpack.c.l.b16 %v961
  %v1044 = vunpack.c.h.b16 %v961
  %v1045 = vunpack.c.l.b16 %v962
  %v1046 = vunpack.c.h.b16 %v962
  %v1047 = vunpack.c.l.b16 %v963
  %v1048 = vunpack.c.h.b16 %v963
  %v1049 = vunpack.c.l.b16 %v964
  %v1050 = vunpack.c.h.b16 %v964
  %v1051 = vunpack.c.l.b16 %v965
  %v1052 = vunpack.c.h.b16 %v965
  %v1053 = vpack.c.b16 %v995, %v995
  %v1054 = vpack.c.b16 %v996, %v996
  %v1055 = vpack.c.b16 %v997, %v997
  %v1056 = vpack.c.b16 %v998, %v998
  %v1057 = vpack.c.b16 %v999, %v999
  %v1058 = vpack.c.b16 %v1000, %v1000
  %v1059 = vpack.c.b16 %v1001, %v1001
  %v1060 = vpack.c.b16 %v1002, %v1002
  %v1061 = vpack.c.b16 %v1003, %v1003
  %v1062 = vpack.c.b16 %v1004, %v1004
  %v1063 = vpack.c.b16 %v1005, %v1005
  %v1064 = vpack.c.b16 %v1006, %v1006
  %v1065 = vpack.c.b16 %v1007, %v1007
  %v1066 = vpack.c.b16 %v1008, %v1008
  %v1067 = vpack.c.b16 %v1009, %v1009
  %v1068 = vpack.c.b16 %v1010, %v1010
  %v1069 = vpack.c.b16 %v1011, %v1011
  %v1070 = vpack.c.b16 %v1012, %v1012
  %v1071 = vpack.c.b16 %v1013, %v1013
  %v1072 = vpack.c.b16 %v1014, %v1014
  %v1073 = vpack.c.b16 %v1015, %v1015
  %v1074 = vpack.c.b16 %v1016, %v1016
  %v1075 = vpack.c.b16 %v1017, %v1017
  %v1076 = vpack.c.b16 %v1018, %v1018
  %v1077 = vpack.c.b16 %v1019, %v1019
  %v1078 = vpack.c.b16 %v1020, %v1020
  %v1079 = vpack.c.b16 %v1021, %v1021
  %v1080 = vpack.c.b16 %v1022, %v1022
  %v1081 = vpack.c.b16 %v1023, %v1023
  %v1082 = vpack.c.b16 %v1024, %v1024
  %v1083 = vpack.c.b16 %v1025, %v1025
  %v1084 = vpack.c.b16 %v1026, %v1026
  %v1085 = vpack.c.b16 %v1027, %v1027
  %v1086 = vpack.c.b16 %v1028, %v1028
  %v1087 = vpack.c.b16 %v1029, %v1029
  %v1088 = vpack.c.b16 %v1030, %v1030
  %v1089 = vpack.c.b16 %v1031, %v1031
  %v1090 = vpack.c.b16 %v1032, %v1032
  %v1091 = vpack.c.b16 %v1033, %v1033
  %v1092 = vpack.c.b16 %v1034, %v1034
  %v1093 = vpack.c.b16 %v1035, %v1035
  %v1094 = vpack.c.b16 %v1036, %v1036
  %v1095 = vpack.c.b16 %v1037, %v1037
  %v1096 = vpack.c.b16 %v1038, %v1038
  %v1097 = vpack.c.b16 %v1039, %v1039
  %v1098 = vpack.c.b16 %v1040, %v1040
  %v1099 = vpack.c.b16 %v1041, %v1041
  %v1100 = vpack.c.b16 %v1042, %v1042
  %v1101 = vpack.c.b16 %v1043, %v1043
  %v1102 = vpack.c.b16 %v1044, %v1044
  %v1103 = vpack.c.b16 %v1045, %v1045
  %v1104 = vpack.c.b16 %v1046, %v1046
  %v1105 = vpack.c.b16 %v1047, %v1047
  %v1106 = vpack.c.b16 %v1048, %v1048
  %v1107 = vpack.c.b16 %v1049, %v1049
  %v1108 = vpack.c.b16 %v1050, %v1050
  %v1109 = vpack.c.b16 %v1051, %v1051
  %v1110 = vpack.c.b16 %v1052, %v1052
  %1169 = vst [vmem:[%s3] sm:$0xf] %v1053
  %1170 = vst [vmem:[%s3 + $0x4] sm:$0xf] %v1054
  %1171 = vst [vmem:[%s3 + $0x8] sm:$0xf] %v1055
  %1172 = vst [vmem:[%s3 + $0xc] sm:$0xf] %v1056
  %1173 = vst [vmem:[%s3 + $0x10] sm:$0xf] %v1057
  %1174 = vst [vmem:[%s3 + $0x14] sm:$0xf] %v1058
  %1175 = vst [vmem:[%s3 + $0x18] sm:$0xf] %v1059
  %1176 = vst [vmem:[%s3 + $0x1c] sm:$0xf] %v1060
  %1177 = vst [vmem:[%s3 + $0x20] sm:$0xf] %v1061
  %1178 = vst [vmem:[%s3 + $0x24] sm:$0xf] %v1062
  %1179 = vst [vmem:[%s3 + $0x28] sm:$0xf] %v1063
  %1180 = vst [vmem:[%s3 + $0x2c] sm:$0xf] %v1064
  %1181 = vst [vmem:[%s3 + $0x30] sm:$0xf] %v1065
  %1182 = vst [vmem:[%s3 + $0x34] sm:$0xf] %v1066
  %1183 = vst [vmem:[%s3 + $0x38] sm:$0xf] %v1067
  %1184 = vst [vmem:[%s3 + $0x3c] sm:$0xf] %v1068
  %1185 = vst [vmem:[%s3 + $0x40] sm:$0xf] %v1069
  %1186 = vst [vmem:[%s3 + $0x44] sm:$0xf] %v1070
  %1187 = vst [vmem:[%s3 + $0x48] sm:$0xf] %v1071
  %1188 = vst [vmem:[%s3 + $0x4c] sm:$0xf] %v1072
  %1189 = vst [vmem:[%s3 + $0x50] sm:$0xf] %v1073
  %1190 = vst [vmem:[%s3 + $0x54] sm:$0xf] %v1074
  %1191 = vst [vmem:[%s3 + $0x58] sm:$0xf] %v1075
  %1192 = vst [vmem:[%s3 + $0x5c] sm:$0xf] %v1076
  %1193 = vst [vmem:[%s3 + $0x60] sm:$0xf] %v1077
  %1194 = vst [vmem:[%s3 + $0x64] sm:$0xf] %v1078
  %1195 = vst [vmem:[%s3 + $0x68] sm:$0xf] %v1079
  %1196 = vst [vmem:[%s3 + $0x6c] sm:$0xf] %v1080
  %1197 = vst [vmem:[%s3 + $0x70] sm:$0xf] %v1081
  %1198 = vst [vmem:[%s3 + $0x74] sm:$0xf] %v1082
  %1199 = vst [vmem:[%s3 + $0x78] sm:$0xf] %v1083
  %1200 = vst [vmem:[%s3 + $0x7c] sm:$0xf] %v1084
  %1201 = vst [vmem:[%s3 + $0x80] sm:$0xf] %v1085
  %1202 = vst [vmem:[%s3 + $0x84] sm:$0xf] %v1086
  %1203 = vst [vmem:[%s3 + $0x88] sm:$0xf] %v1087
  %1204 = vst [vmem:[%s3 + $0x8c] sm:$0xf] %v1088
  %1205 = vst [vmem:[%s3 + $0x90] sm:$0xf] %v1089
  %1206 = vst [vmem:[%s3 + $0x94] sm:$0xf] %v1090
  %1207 = vst [vmem:[%s3 + $0x98] sm:$0xf] %v1091
  %1208 = vst [vmem:[%s3 + $0x9c] sm:$0xf] %v1092
  %1209 = vst [vmem:[%s3 + $0xa0] sm:$0xf] %v1093
  %1210 = vst [vmem:[%s3 + $0xa4] sm:$0xf] %v1094
  %1211 = vst [vmem:[%s3 + $0xa8] sm:$0xf] %v1095
  %1212 = vst [vmem:[%s3 + $0xac] sm:$0xf] %v1096
  %1213 = vst [vmem:[%s3 + $0xb0] sm:$0xf] %v1097
  %1214 = vst [vmem:[%s3 + $0xb4] sm:$0xf] %v1098
  %1215 = vst [vmem:[%s3 + $0xb8] sm:$0xf] %v1099
  %1216 = vst [vmem:[%s3 + $0xbc] sm:$0xf] %v1100
  %1217 = vst [vmem:[%s3 + $0xc0] sm:$0xf] %v1101
  %1218 = vst [vmem:[%s3 + $0xc4] sm:$0xf] %v1102
  %1219 = vst [vmem:[%s3 + $0xc8] sm:$0xf] %v1103
  %1220 = vst [vmem:[%s3 + $0xcc] sm:$0xf] %v1104
  %1221 = vst [vmem:[%s3 + $0xd0] sm:$0xf] %v1105
  %1222 = vst [vmem:[%s3 + $0xd4] sm:$0xf] %v1106
  %1223 = vst [vmem:[%s3 + $0xd8] sm:$0xf] %v1107
  %1224 = vst [vmem:[%s3 + $0xdc] sm:$0xf] %v1108
  %1225 = vst [vmem:[%s3 + $0xe0] sm:$0xf] %v1109
  %1226 = vst [vmem:[%s3 + $0xe4] sm:$0xf] %v1110
  // Predicated region
  $region14: #{_lambda_.6} parent=0 // pred_check
    _
  $region15: #{_lambda_.6} parent=0 // pred_check_branch
    %1228 = sbr.rel (0) target = $region17
  $region16: #{_lambda_.6} parent=0 // pred_region
    _
  $region17: #{_lambda_.6} parent=0 // pred_fallthru
    _
  // Predicated region
  $region18: #{_lambda_.6} parent=0 // pred_check
    _
  $region19: #{_lambda_.6} parent=0 // pred_check_branch
    %1230 = sbr.rel (0) target = $region21
  $region20: #{_lambda_.6} parent=0 // pred_region
    _
  $region21: #{_lambda_.6} parent=0 // pred_fallthru
    _

// kernel: _lambda_.7
$region0: #{_lambda_.7}
  #allocation0 [shape = 'u32[]', space=smem, size = 0x4, offset = 0x4, fixed_abs, tag = 'smem constant byte address 0x4 - core index']
  #allocation1 [shape = 'u32[144,128]{1,0:T(1,128)}', space=vmem, size = 0x12000, scoped, tag = 'internal scratch']
  %s0 = inlined_call_operand.vmem [shape: bf16[32,256], index: 0, kind: input, shape index: {}]
  %s1 = inlined_call_operand.vmem [shape: bf16[256,128], index: 1, kind: input, shape index: {}]
  %s2 = inlined_call_operand.vmem [shape: f32[1,128], index: 2, kind: input, shape index: {}]
  %s3 = inlined_call_operand.vmem [shape: bf16[32,128], index: 3, kind: output, shape index: {}]
  %s4 = sld [smem:[#allocation0]]
  $region22: #{_lambda_.7} parent=0
    _
  %s6 = ssub.s32 1, %s4
  %s7 = scalar_select 0, %s6, %s4
  // Predicated region
  $region2: #{_lambda_.7} parent=0 // pred_check
    _
  $region3: #{_lambda_.7} parent=0 // pred_check_branch
    %9 = sbr.rel (0) target = $region5
  $region4: #{_lambda_.7} parent=0 // pred_region
    _
  $region5: #{_lambda_.7} parent=0 // pred_fallthru
    _
  // Predicated region
  $region6: #{_lambda_.7} parent=0 // pred_check
    _
  $region7: #{_lambda_.7} parent=0 // pred_check_branch
    %11 = sbr.rel (0) target = $region9
  $region8: #{_lambda_.7} parent=0 // pred_region
    _
  $region9: #{_lambda_.7} parent=0 // pred_fallthru
    _
  // Predicated region
  $region10: #{_lambda_.7} parent=0 // pred_check
    _
  $region11: #{_lambda_.7} parent=0 // pred_check_branch
    %13 = sbr.rel (0) target = $region13
  $region12: #{_lambda_.7} parent=0 // pred_region
    _
  $region13: #{_lambda_.7} parent=0 // pred_fallthru
    _
  %v15 = vld [vmem:[%s0] sm:$0xff]
  %v16 = vld [vmem:[%s0 + $0x8] sm:$0xff]
  %v17 = vld [vmem:[%s0 + $0x10] sm:$0xff]
  %v18 = vld [vmem:[%s0 + $0x18] sm:$0xff]
  %v19 = vld [vmem:[%s1] sm:$0xf]
  %v20 = vld [vmem:[%s1 + $0x4] sm:$0xf]
  %v21 = vld [vmem:[%s1 + $0x8] sm:$0xf]
  %v22 = vld [vmem:[%s1 + $0xc] sm:$0xf]
  %v23 = vld [vmem:[%s1 + $0x10] sm:$0xf]
  %v24 = vld [vmem:[%s1 + $0x14] sm:$0xf]
  %v25 = vld [vmem:[%s1 + $0x18] sm:$0xf]
  %v26 = vld [vmem:[%s1 + $0x1c] sm:$0xf]
  %v27 = vld [vmem:[%s1 + $0x20] sm:$0xf]
  %v28 = vld [vmem:[%s1 + $0x24] sm:$0xf]
  %v29 = vld [vmem:[%s1 + $0x28] sm:$0xf]
  %v30 = vld [vmem:[%s1 + $0x2c] sm:$0xf]
  %v31 = vld [vmem:[%s1 + $0x30] sm:$0xf]
  %v32 = vld [vmem:[%s1 + $0x34] sm:$0xf]
  %v33 = vld [vmem:[%s1 + $0x38] sm:$0xf]
  %v34 = vld [vmem:[%s1 + $0x3c] sm:$0xf]
  %v35 = vld [vmem:[%s1 + $0x40] sm:$0xf]
  %v36 = vld [vmem:[%s1 + $0x44] sm:$0xf]
  %v37 = vld [vmem:[%s1 + $0x48] sm:$0xf]
  %v38 = vld [vmem:[%s1 + $0x4c] sm:$0xf]
  %v39 = vld [vmem:[%s1 + $0x50] sm:$0xf]
  %v40 = vld [vmem:[%s1 + $0x54] sm:$0xf]
  %v41 = vld [vmem:[%s1 + $0x58] sm:$0xf]
  %v42 = vld [vmem:[%s1 + $0x5c] sm:$0xf]
  %v43 = vld [vmem:[%s1 + $0x60] sm:$0xf]
  %v44 = vld [vmem:[%s1 + $0x64] sm:$0xf]
  %v45 = vld [vmem:[%s1 + $0x68] sm:$0xf]
  %v46 = vld [vmem:[%s1 + $0x6c] sm:$0xf]
  %v47 = vld [vmem:[%s1 + $0x70] sm:$0xf]
  %v48 = vld [vmem:[%s1 + $0x74] sm:$0xf]
  %v49 = vld [vmem:[%s1 + $0x78] sm:$0xf]
  %v50 = vld [vmem:[%s1 + $0x7c] sm:$0xf]
  %v51 = vld [vmem:[%s2] sm:$0x1]
  %v53 = vlaneseq
  %v54 = vshrl.u32 %v53, 7
  %v55 = vsub.s32 0, %v54
  %v56 = vrot.slane %v51, %v55
  %v62 = vunpack.c.l.b16 %v15
  %v63 = vunpack.c.h.b16 %v15
  %v64 = vunpack.c.l.b16 %v16
  %v65 = vunpack.c.h.b16 %v16
  %v66 = vunpack.c.l.b16 %v17
  %v67 = vunpack.c.h.b16 %v17
  %v68 = vunpack.c.l.b16 %v18
  %v69 = vunpack.c.h.b16 %v18
  %v70 = vpack.c.b16 %v64, %v62
  %v71 = vpack.c.b16 %v65, %v63
  %v72 = vpack.c.b16 %v68, %v66
  %v73 = vpack.c.b16 %v69, %v67
  %v110 = vunpack.c.l.b16 %v19
  %v111 = vunpack.c.l.b16 %v20
  %v112 = vunpack.c.l.b16 %v21
  %v113 = vunpack.c.l.b16 %v22
  %v114 = vunpack.c.l.b16 %v23
  %v115 = vunpack.c.l.b16 %v24
  %v116 = vunpack.c.l.b16 %v25
  %v117 = vunpack.c.l.b16 %v26
  %v118 = vunpack.c.l.b16 %v27
  %v119 = vunpack.c.l.b16 %v28
  %v120 = vunpack.c.l.b16 %v29
  %v121 = vunpack.c.l.b16 %v30
  %v122 = vunpack.c.l.b16 %v31
  %v123 = vunpack.c.l.b16 %v32
  %v124 = vunpack.c.l.b16 %v33
  %v125 = vunpack.c.l.b16 %v34
  %v126 = vunpack.c.l.b16 %v35
  %v127 = vunpack.c.l.b16 %v36
  %v128 = vunpack.c.l.b16 %v37
  %v129 = vunpack.c.l.b16 %v38
  %v130 = vunpack.c.l.b16 %v39
  %v131 = vunpack.c.l.b16 %v40
  %v132 = vunpack.c.l.b16 %v41
  %v133 = vunpack.c.l.b16 %v42
  %v134 = vunpack.c.l.b16 %v43
  %v135 = vunpack.c.l.b16 %v44
  %v136 = vunpack.c.l.b16 %v45
  %v137 = vunpack.c.l.b16 %v46
  %v138 = vunpack.c.l.b16 %v47
  %v139 = vunpack.c.l.b16 %v48
  %v140 = vunpack.c.l.b16 %v49
  %v141 = vunpack.c.l.b16 %v50
  %v142 = vpack.c.b16 %v111, %v110
  %v143 = vpack.c.b16 %v113, %v112
  %v144 = vpack.c.b16 %v115, %v114
  %v145 = vpack.c.b16 %v117, %v116
  %v146 = vpack.c.b16 %v119, %v118
  %v147 = vpack.c.b16 %v121, %v120
  %v148 = vpack.c.b16 %v123, %v122
  %v149 = vpack.c.b16 %v125, %v124
  %v150 = vpack.c.b16 %v127, %v126
  %v151 = vpack.c.b16 %v129, %v128
  %v152 = vpack.c.b16 %v131, %v130
  %v153 = vpack.c.b16 %v133, %v132
  %v154 = vpack.c.b16 %v135, %v134
  %v155 = vpack.c.b16 %v137, %v136
  %v156 = vpack.c.b16 %v139, %v138
  %v157 = vpack.c.b16 %v141, %v140
  %174 = vmatprep.subr.bf16.mxu0 0
  %175 = vmatpush1.bf16.msra.mxu0 %v149
  %176 = vmatprep.subr.bf16.mxu0 0
  %177 = vmatpush1.bf16.msra.mxu0 %v148
  %178 = vmatprep.subr.bf16.mxu0 0
  %179 = vmatpush1.bf16.msra.mxu0 %v147
  %180 = vmatprep.subr.bf16.mxu0 0
  %181 = vmatpush1.bf16.msra.mxu0 %v146
  %182 = vmatprep.subr.bf16.mxu0 0
  %183 = vmatpush1.bf16.msra.mxu0 %v145
  %184 = vmatprep.subr.bf16.mxu0 0
  %185 = vmatpush1.bf16.msra.mxu0 %v144
  %186 = vmatprep.subr.bf16.mxu0 0
  %187 = vmatpush1.bf16.msra.mxu0 %v143
  %188 = vmatprep.subr.bf16.mxu0 0
  %189 = vmatpush1.bf16.msra.mxu0 %v142
  %190 = vmatprep.subr.bf16.mxu0 0
  %191 = vmatpush2.bf16.msra.mxu0 %v157
  %192 = vmatprep.subr.bf16.mxu0 0
  %193 = vmatpush2.bf16.msra.mxu0 %v156
  %194 = vmatprep.subr.bf16.mxu0 0
  %195 = vmatpush2.bf16.msra.mxu0 %v155
  %196 = vmatprep.subr.bf16.mxu0 0
  %197 = vmatpush2.bf16.msra.mxu0 %v154
  %198 = vmatprep.subr.bf16.mxu0 0
  %199 = vmatpush2.bf16.msra.mxu0 %v153
  %200 = vmatprep.subr.bf16.mxu0 0
  %201 = vmatpush2.bf16.msra.mxu0 %v152
  %202 = vmatprep.subr.bf16.mxu0 0
  %203 = vmatpush2.bf16.msra.mxu0 %v151
  %204 = vmatprep.subr.bf16.mxu0 0
  %205 = vmatpush2.bf16.msra.mxu0 %v150
  %206 = vmatprep.mubr.bf16.mxu0 %v71
  %207 = vmatmul.mubr.bf16.gmra.mxu0 %v70
  %v208 = vpop.f32.mrf.mxu0
  %v209 = vadd.f32 %v56, %v208
  %v210 = vpop.f32.mrf.mxu0
  %v211 = vpop.f32.mrf.mxu0
  %v212 = vadd.f32 %v56, %v211
  %v213 = vpop.f32.mrf.mxu0
  %214 = vmatprep.mubr.bf16.mxu0 %v73
  %215 = vmatmul.mubr.bf16.gmra.mxu0 %v72
  %v216 = vpop.f32.mrf.mxu0
  %v217 = vadd.f32 %v56, %v216
  %v218 = vpop.f32.mrf.mxu0
  %v219 = vpop.f32.mrf.mxu0
  %v220 = vadd.f32 %v56, %v219
  %v221 = vpop.f32.mrf.mxu0
  %222 = vdwg.mxu0
  %vm223 = vcmp.ge.f32.partialorder %v209, 0.0
  %vm224 = vcmp.ge.f32.partialorder %v212, 0.0
  %vm225 = vcmp.ge.f32.partialorder %v217, 0.0
  %vm226 = vcmp.ge.f32.partialorder %v220, 0.0
  %v227 = vmul.f32 %v209, 0.2
  %v228 = vmul.f32 %v212, 0.2
  %v229 = vmul.f32 %v217, 0.2
  %v230 = vmul.f32 %v220, 0.2
  %v231 = vsel %vm223, %v209, %v227
  %v232 = vsel %vm224, %v212, %v228
  %v233 = vsel %vm225, %v217, %v229
  %v234 = vsel %vm226, %v220, %v230
  %v235 = vpack.c.bf16 %v232, %v231
  %v236 = vpack.c.bf16 %v234, %v233
  %v239 = vunpack.c.l.b16 %v235
  %v240 = vunpack.c.h.b16 %v235
  %v241 = vunpack.c.l.b16 %v236
  %v242 = vunpack.c.h.b16 %v236
  %v243 = vpack.c.b16 %v239, %v239
  %v244 = vpack.c.b16 %v240, %v240
  %v245 = vpack.c.b16 %v241, %v241
  %v246 = vpack.c.b16 %v242, %v242
  %251 = vst [vmem:[%s3] sm:$0xf] %v243
  %252 = vst [vmem:[%s3 + $0x4] sm:$0xf] %v244
  %253 = vst [vmem:[%s3 + $0x8] sm:$0xf] %v245
  %254 = vst [vmem:[%s3 + $0xc] sm:$0xf] %v246
  // Predicated region
  $region14: #{_lambda_.7} parent=0 // pred_check
    _
  $region15: #{_lambda_.7} parent=0 // pred_check_branch
    %256 = sbr.rel (0) target = $region17
  $region16: #{_lambda_.7} parent=0 // pred_region
    _
  $region17: #{_lambda_.7} parent=0 // pred_fallthru
    _
  // Predicated region
  $region18: #{_lambda_.7} parent=0 // pred_check
    _
  $region19: #{_lambda_.7} parent=0 // pred_check_branch
    %258 = sbr.rel (0) target = $region21
  $region20: #{_lambda_.7} parent=0 // pred_region
    _
  $region21: #{_lambda_.7} parent=0 // pred_fallthru
    _

// kernel: _lambda_.8
$region0: #{_lambda_.8}
  #allocation0 [shape = 'u32[]', space=smem, size = 0x4, offset = 0x4, fixed_abs, tag = 'smem constant byte address 0x4 - core index']
  #allocation1 [shape = 'u32[144,128]{1,0:T(1,128)}', space=vmem, size = 0x12000, scoped, tag = 'internal scratch']
  %s0 = inlined_call_operand.vmem [shape: bf16[16,512], index: 0, kind: input, shape index: {}]
  %s1 = inlined_call_operand.vmem [shape: bf16[512,128], index: 1, kind: input, shape index: {}]
  %s2 = inlined_call_operand.vmem [shape: f32[1,128], index: 2, kind: input, shape index: {}]
  %s3 = inlined_call_operand.vmem [shape: bf16[16,128], index: 3, kind: output, shape index: {}]
  %s4 = sld [smem:[#allocation0]]
  $region22: #{_lambda_.8} parent=0
    _
  %s6 = ssub.s32 1, %s4
  %s7 = scalar_select 0, %s6, %s4
  // Predicated region
  $region2: #{_lambda_.8} parent=0 // pred_check
    _
  $region3: #{_lambda_.8} parent=0 // pred_check_branch
    %9 = sbr.rel (0) target = $region5
  $region4: #{_lambda_.8} parent=0 // pred_region
    _
  $region5: #{_lambda_.8} parent=0 // pred_fallthru
    _
  // Predicated region
  $region6: #{_lambda_.8} parent=0 // pred_check
    _
  $region7: #{_lambda_.8} parent=0 // pred_check_branch
    %11 = sbr.rel (0) target = $region9
  $region8: #{_lambda_.8} parent=0 // pred_region
    _
  $region9: #{_lambda_.8} parent=0 // pred_fallthru
    _
  // Predicated region
  $region10: #{_lambda_.8} parent=0 // pred_check
    _
  $region11: #{_lambda_.8} parent=0 // pred_check_branch
    %13 = sbr.rel (0) target = $region13
  $region12: #{_lambda_.8} parent=0 // pred_region
    _
  $region13: #{_lambda_.8} parent=0 // pred_fallthru
    _
  %v15 = vld [vmem:[%s0] sm:$0xff]
  %v16 = vld [vmem:[%s0 + $0x8] sm:$0xff]
  %v17 = vld [vmem:[%s0 + $0x10] sm:$0xff]
  %v18 = vld [vmem:[%s0 + $0x18] sm:$0xff]
  %v19 = vld [vmem:[%s1] sm:$0xf]
  %v20 = vld [vmem:[%s1 + $0x4] sm:$0xf]
  %v21 = vld [vmem:[%s1 + $0x8] sm:$0xf]
  %v22 = vld [vmem:[%s1 + $0xc] sm:$0xf]
  %v23 = vld [vmem:[%s1 + $0x10] sm:$0xf]
  %v24 = vld [vmem:[%s1 + $0x14] sm:$0xf]
  %v25 = vld [vmem:[%s1 + $0x18] sm:$0xf]
  %v26 = vld [vmem:[%s1 + $0x1c] sm:$0xf]
  %v27 = vld [vmem:[%s1 + $0x20] sm:$0xf]
  %v28 = vld [vmem:[%s1 + $0x24] sm:$0xf]
  %v29 = vld [vmem:[%s1 + $0x28] sm:$0xf]
  %v30 = vld [vmem:[%s1 + $0x2c] sm:$0xf]
  %v31 = vld [vmem:[%s1 + $0x30] sm:$0xf]
  %v32 = vld [vmem:[%s1 + $0x34] sm:$0xf]
  %v33 = vld [vmem:[%s1 + $0x38] sm:$0xf]
  %v34 = vld [vmem:[%s1 + $0x3c] sm:$0xf]
  %v35 = vld [vmem:[%s1 + $0x40] sm:$0xf]
  %v36 = vld [vmem:[%s1 + $0x44] sm:$0xf]
  %v37 = vld [vmem:[%s1 + $0x48] sm:$0xf]
  %v38 = vld [vmem:[%s1 + $0x4c] sm:$0xf]
  %v39 = vld [vmem:[%s1 + $0x50] sm:$0xf]
  %v40 = vld [vmem:[%s1 + $0x54] sm:$0xf]
  %v41 = vld [vmem:[%s1 + $0x58] sm:$0xf]
  %v42 = vld [vmem:[%s1 + $0x5c] sm:$0xf]
  %v43 = vld [vmem:[%s1 + $0x60] sm:$0xf]
  %v44 = vld [vmem:[%s1 + $0x64] sm:$0xf]
  %v45 = vld [vmem:[%s1 + $0x68] sm:$0xf]
  %v46 = vld [vmem:[%s1 + $0x6c] sm:$0xf]
  %v47 = vld [vmem:[%s1 + $0x70] sm:$0xf]
  %v48 = vld [vmem:[%s1 + $0x74] sm:$0xf]
  %v49 = vld [vmem:[%s1 + $0x78] sm:$0xf]
  %v50 = vld [vmem:[%s1 + $0x7c] sm:$0xf]
  %v51 = vld [vmem:[%s1 + $0x80] sm:$0xf]
  %v52 = vld [vmem:[%s1 + $0x84] sm:$0xf]
  %v53 = vld [vmem:[%s1 + $0x88] sm:$0xf]
  %v54 = vld [vmem:[%s1 + $0x8c] sm:$0xf]
  %v55 = vld [vmem:[%s1 + $0x90] sm:$0xf]
  %v56 = vld [vmem:[%s1 + $0x94] sm:$0xf]
  %v57 = vld [vmem:[%s1 + $0x98] sm:$0xf]
  %v58 = vld [vmem:[%s1 + $0x9c] sm:$0xf]
  %v59 = vld [vmem:[%s1 + $0xa0] sm:$0xf]
  %v60 = vld [vmem:[%s1 + $0xa4] sm:$0xf]
  %v61 = vld [vmem:[%s1 + $0xa8] sm:$0xf]
  %v62 = vld [vmem:[%s1 + $0xac] sm:$0xf]
  %v63 = vld [vmem:[%s1 + $0xb0] sm:$0xf]
  %v64 = vld [vmem:[%s1 + $0xb4] sm:$0xf]
  %v65 = vld [vmem:[%s1 + $0xb8] sm:$0xf]
  %v66 = vld [vmem:[%s1 + $0xbc] sm:$0xf]
  %v67 = vld [vmem:[%s1 + $0xc0] sm:$0xf]
  %v68 = vld [vmem:[%s1 + $0xc4] sm:$0xf]
  %v69 = vld [vmem:[%s1 + $0xc8] sm:$0xf]
  %v70 = vld [vmem:[%s1 + $0xcc] sm:$0xf]
  %v71 = vld [vmem:[%s1 + $0xd0] sm:$0xf]
  %v72 = vld [vmem:[%s1 + $0xd4] sm:$0xf]
  %v73 = vld [vmem:[%s1 + $0xd8] sm:$0xf]
  %v74 = vld [vmem:[%s1 + $0xdc] sm:$0xf]
  %v75 = vld [vmem:[%s1 + $0xe0] sm:$0xf]
  %v76 = vld [vmem:[%s1 + $0xe4] sm:$0xf]
  %v77 = vld [vmem:[%s1 + $0xe8] sm:$0xf]
  %v78 = vld [vmem:[%s1 + $0xec] sm:$0xf]
  %v79 = vld [vmem:[%s1 + $0xf0] sm:$0xf]
  %v80 = vld [vmem:[%s1 + $0xf4] sm:$0xf]
  %v81 = vld [vmem:[%s1 + $0xf8] sm:$0xf]
  %v82 = vld [vmem:[%s1 + $0xfc] sm:$0xf]
  %v83 = vld [vmem:[%s2] sm:$0x1]
  %v85 = vlaneseq
  %v86 = vshrl.u32 %v85, 7
  %v87 = vsub.s32 0, %v86
  %v88 = vrot.slane %v83, %v87
  %v94 = vunpack.c.l.b16 %v15
  %v95 = vunpack.c.h.b16 %v15
  %v96 = vunpack.c.l.b16 %v16
  %v97 = vunpack.c.h.b16 %v16
  %v98 = vunpack.c.l.b16 %v17
  %v99 = vunpack.c.h.b16 %v17
  %v100 = vunpack.c.l.b16 %v18
  %v101 = vunpack.c.h.b16 %v18
  %v102 = vpack.c.b16 %v98, %v94
  %v103 = vpack.c.b16 %v99, %v95
  %v104 = vpack.c.b16 %v100, %v96
  %v105 = vpack.c.b16 %v101, %v97
  %v174 = vunpack.c.l.b16 %v19
  %v175 = vunpack.c.l.b16 %v20
  %v176 = vunpack.c.l.b16 %v21
  %v177 = vunpack.c.l.b16 %v22
  %v178 = vunpack.c.l.b16 %v23
  %v179 = vunpack.c.l.b16 %v24
  %v180 = vunpack.c.l.b16 %v25
  %v181 = vunpack.c.l.b16 %v26
  %v182 = vunpack.c.l.b16 %v27
  %v183 = vunpack.c.l.b16 %v28
  %v184 = vunpack.c.l.b16 %v29
  %v185 = vunpack.c.l.b16 %v30
  %v186 = vunpack.c.l.b16 %v31
  %v187 = vunpack.c.l.b16 %v32
  %v188 = vunpack.c.l.b16 %v33
  %v189 = vunpack.c.l.b16 %v34
  %v190 = vunpack.c.l.b16 %v35
  %v191 = vunpack.c.l.b16 %v36
  %v192 = vunpack.c.l.b16 %v37
  %v193 = vunpack.c.l.b16 %v38
  %v194 = vunpack.c.l.b16 %v39
  %v195 = vunpack.c.l.b16 %v40
  %v196 = vunpack.c.l.b16 %v41
  %v197 = vunpack.c.l.b16 %v42
  %v198 = vunpack.c.l.b16 %v43
  %v199 = vunpack.c.l.b16 %v44
  %v200 = vunpack.c.l.b16 %v45
  %v201 = vunpack.c.l.b16 %v46
  %v202 = vunpack.c.l.b16 %v47
  %v203 = vunpack.c.l.b16 %v48
  %v204 = vunpack.c.l.b16 %v49
  %v205 = vunpack.c.l.b16 %v50
  %v206 = vunpack.c.l.b16 %v51
  %v207 = vunpack.c.l.b16 %v52
  %v208 = vunpack.c.l.b16 %v53
  %v209 = vunpack.c.l.b16 %v54
  %v210 = vunpack.c.l.b16 %v55
  %v211 = vunpack.c.l.b16 %v56
  %v212 = vunpack.c.l.b16 %v57
  %v213 = vunpack.c.l.b16 %v58
  %v214 = vunpack.c.l.b16 %v59
  %v215 = vunpack.c.l.b16 %v60
  %v216 = vunpack.c.l.b16 %v61
  %v217 = vunpack.c.l.b16 %v62
  %v218 = vunpack.c.l.b16 %v63
  %v219 = vunpack.c.l.b16 %v64
  %v220 = vunpack.c.l.b16 %v65
  %v221 = vunpack.c.l.b16 %v66
  %v222 = vunpack.c.l.b16 %v67
  %v223 = vunpack.c.l.b16 %v68
  %v224 = vunpack.c.l.b16 %v69
  %v225 = vunpack.c.l.b16 %v70
  %v226 = vunpack.c.l.b16 %v71
  %v227 = vunpack.c.l.b16 %v72
  %v228 = vunpack.c.l.b16 %v73
  %v229 = vunpack.c.l.b16 %v74
  %v230 = vunpack.c.l.b16 %v75
  %v231 = vunpack.c.l.b16 %v76
  %v232 = vunpack.c.l.b16 %v77
  %v233 = vunpack.c.l.b16 %v78
  %v234 = vunpack.c.l.b16 %v79
  %v235 = vunpack.c.l.b16 %v80
  %v236 = vunpack.c.l.b16 %v81
  %v237 = vunpack.c.l.b16 %v82
  %v238 = vpack.c.b16 %v175, %v174
  %v239 = vpack.c.b16 %v177, %v176
  %v240 = vpack.c.b16 %v179, %v178
  %v241 = vpack.c.b16 %v181, %v180
  %v242 = vpack.c.b16 %v183, %v182
  %v243 = vpack.c.b16 %v185, %v184
  %v244 = vpack.c.b16 %v187, %v186
  %v245 = vpack.c.b16 %v189, %v188
  %v246 = vpack.c.b16 %v191, %v190
  %v247 = vpack.c.b16 %v193, %v192
  %v248 = vpack.c.b16 %v195, %v194
  %v249 = vpack.c.b16 %v197, %v196
  %v250 = vpack.c.b16 %v199, %v198
  %v251 = vpack.c.b16 %v201, %v200
  %v252 = vpack.c.b16 %v203, %v202
  %v253 = vpack.c.b16 %v205, %v204
  %v254 = vpack.c.b16 %v207, %v206
  %v255 = vpack.c.b16 %v209, %v208
  %v256 = vpack.c.b16 %v211, %v210
  %v257 = vpack.c.b16 %v213, %v212
  %v258 = vpack.c.b16 %v215, %v214
  %v259 = vpack.c.b16 %v217, %v216
  %v260 = vpack.c.b16 %v219, %v218
  %v261 = vpack.c.b16 %v221, %v220
  %v262 = vpack.c.b16 %v223, %v222
  %v263 = vpack.c.b16 %v225, %v224
  %v264 = vpack.c.b16 %v227, %v226
  %v265 = vpack.c.b16 %v229, %v228
  %v266 = vpack.c.b16 %v231, %v230
  %v267 = vpack.c.b16 %v233, %v232
  %v268 = vpack.c.b16 %v235, %v234
  %v269 = vpack.c.b16 %v237, %v236
  %302 = vmatprep.subr.bf16.mxu0 0
  %303 = vmatpush1.bf16.msra.mxu0 %v245
  %304 = vmatprep.subr.bf16.mxu0 0
  %305 = vmatpush1.bf16.msra.mxu0 %v244
  %306 = vmatprep.subr.bf16.mxu0 0
  %307 = vmatpush1.bf16.msra.mxu0 %v243
  %308 = vmatprep.subr.bf16.mxu0 0
  %309 = vmatpush1.bf16.msra.mxu0 %v242
  %310 = vmatprep.subr.bf16.mxu0 0
  %311 = vmatpush1.bf16.msra.mxu0 %v241
  %312 = vmatprep.subr.bf16.mxu0 0
  %313 = vmatpush1.bf16.msra.mxu0 %v240
  %314 = vmatprep.subr.bf16.mxu0 0
  %315 = vmatpush1.bf16.msra.mxu0 %v239
  %316 = vmatprep.subr.bf16.mxu0 0
  %317 = vmatpush1.bf16.msra.mxu0 %v238
  %318 = vmatprep.subr.bf16.mxu0 0
  %319 = vmatpush2.bf16.msra.mxu0 %v253
  %320 = vmatprep.subr.bf16.mxu0 0
  %321 = vmatpush2.bf16.msra.mxu0 %v252
  %322 = vmatprep.subr.bf16.mxu0 0
  %323 = vmatpush2.bf16.msra.mxu0 %v251
  %324 = vmatprep.subr.bf16.mxu0 0
  %325 = vmatpush2.bf16.msra.mxu0 %v250
  %326 = vmatprep.subr.bf16.mxu0 0
  %327 = vmatpush2.bf16.msra.mxu0 %v249
  %328 = vmatprep.subr.bf16.mxu0 0
  %329 = vmatpush2.bf16.msra.mxu0 %v248
  %330 = vmatprep.subr.bf16.mxu0 0
  %331 = vmatpush2.bf16.msra.mxu0 %v247
  %332 = vmatprep.subr.bf16.mxu0 0
  %333 = vmatpush2.bf16.msra.mxu0 %v246
  %334 = vmatprep.mubr.bf16.mxu0 %v103
  %335 = vmatmul.mubr.bf16.gmra.mxu0 %v102
  %v336 = vpop.f32.mrf.mxu0
  %v337 = vadd.f32 %v88, %v336
  %v338 = vpop.f32.mrf.mxu0
  %v339 = vpop.f32.mrf.mxu0
  %v340 = vadd.f32 %v88, %v339
  %v341 = vpop.f32.mrf.mxu0
  %342 = vdwg.mxu0
  %343 = vmatprep.subr.bf16.mxu0 0
  %344 = vmatpush1.bf16.msra.mxu0 %v261
  %345 = vmatprep.subr.bf16.mxu0 0
  %346 = vmatpush1.bf16.msra.mxu0 %v260
  %347 = vmatprep.subr.bf16.mxu0 0
  %348 = vmatpush1.bf16.msra.mxu0 %v259
  %349 = vmatprep.subr.bf16.mxu0 0
  %350 = vmatpush1.bf16.msra.mxu0 %v258
  %351 = vmatprep.subr.bf16.mxu0 0
  %352 = vmatpush1.bf16.msra.mxu0 %v257
  %353 = vmatprep.subr.bf16.mxu0 0
  %354 = vmatpush1.bf16.msra.mxu0 %v256
  %355 = vmatprep.subr.bf16.mxu0 0
  %356 = vmatpush1.bf16.msra.mxu0 %v255
  %357 = vmatprep.subr.bf16.mxu0 0
  %358 = vmatpush1.bf16.msra.mxu0 %v254
  %359 = vmatprep.subr.bf16.mxu0 0
  %360 = vmatpush2.bf16.msra.mxu0 %v269
  %361 = vmatprep.subr.bf16.mxu0 0
  %362 = vmatpush2.bf16.msra.mxu0 %v268
  %363 = vmatprep.subr.bf16.mxu0 0
  %364 = vmatpush2.bf16.msra.mxu0 %v267
  %365 = vmatprep.subr.bf16.mxu0 0
  %366 = vmatpush2.bf16.msra.mxu0 %v266
  %367 = vmatprep.subr.bf16.mxu0 0
  %368 = vmatpush2.bf16.msra.mxu0 %v265
  %369 = vmatprep.subr.bf16.mxu0 0
  %370 = vmatpush2.bf16.msra.mxu0 %v264
  %371 = vmatprep.subr.bf16.mxu0 0
  %372 = vmatpush2.bf16.msra.mxu0 %v263
  %373 = vmatprep.subr.bf16.mxu0 0
  %374 = vmatpush2.bf16.msra.mxu0 %v262
  %375 = vmatprep.mubr.bf16.mxu0 %v105
  %376 = vmatmul.mubr.bf16.gmra.mxu0 %v104
  %v377 = vpop.f32.mrf.mxu0
  %v378 = vadd.f32 %v337, %v377
  %v379 = vpop.f32.mrf.mxu0
  %v380 = vpop.f32.mrf.mxu0
  %v381 = vadd.f32 %v340, %v380
  %v382 = vpop.f32.mrf.mxu0
  %383 = vdwg.mxu0
  %vm384 = vcmp.ge.f32.partialorder %v378, 0.0
  %vm385 = vcmp.ge.f32.partialorder %v381, 0.0
  %v386 = vmul.f32 %v378, 0.2
  %v387 = vmul.f32 %v381, 0.2
  %v388 = vsel %vm384, %v378, %v386
  %v389 = vsel %vm385, %v381, %v387
  %v390 = vpack.c.bf16 %v389, %v388
  %v392 = vunpack.c.l.b16 %v390
  %v393 = vunpack.c.h.b16 %v390
  %v394 = vpack.c.b16 %v392, %v392
  %v395 = vpack.c.b16 %v393, %v393
  %398 = vst [vmem:[%s3] sm:$0xf] %v394
  %399 = vst [vmem:[%s3 + $0x4] sm:$0xf] %v395
  // Predicated region
  $region14: #{_lambda_.8} parent=0 // pred_check
    _
  $region15: #{_lambda_.8} parent=0 // pred_check_branch
    %401 = sbr.rel (0) target = $region17
  $region16: #{_lambda_.8} parent=0 // pred_region
    _
  $region17: #{_lambda_.8} parent=0 // pred_fallthru
    _
  // Predicated region
  $region18: #{_lambda_.8} parent=0 // pred_check
    _
  $region19: #{_lambda_.8} parent=0 // pred_check_branch
    %403 = sbr.rel (0) target = $region21
  $region20: #{_lambda_.8} parent=0 // pred_region
    _
  $region21: #{_lambda_.8} parent=0 // pred_fallthru
    _

// kernel: _lambda_.9
$region0: #{_lambda_.9}
  #allocation0 [shape = 'u32[]', space=smem, size = 0x4, offset = 0x4, fixed_abs, tag = 'smem constant byte address 0x4 - core index']
  #allocation1 [shape = 'u32[144,128]{1,0:T(1,128)}', space=vmem, size = 0x12000, scoped, tag = 'internal scratch']
  %s0 = inlined_call_operand.vmem [shape: bf16[16,1024], index: 0, kind: input, shape index: {}]
  %s1 = inlined_call_operand.vmem [shape: bf16[1024,128], index: 1, kind: input, shape index: {}]
  %s2 = inlined_call_operand.vmem [shape: f32[1,128], index: 2, kind: input, shape index: {}]
  %s3 = inlined_call_operand.vmem [shape: f32[16,128], index: 3, kind: output, shape index: {}]
  %s4 = sld [smem:[#allocation0]]
  $region22: #{_lambda_.9} parent=0
    _
  %s6 = ssub.s32 1, %s4
  %s7 = scalar_select 0, %s6, %s4
  // Predicated region
  $region2: #{_lambda_.9} parent=0 // pred_check
    _
  $region3: #{_lambda_.9} parent=0 // pred_check_branch
    %9 = sbr.rel (0) target = $region5
  $region4: #{_lambda_.9} parent=0 // pred_region
    _
  $region5: #{_lambda_.9} parent=0 // pred_fallthru
    _
  // Predicated region
  $region6: #{_lambda_.9} parent=0 // pred_check
    _
  $region7: #{_lambda_.9} parent=0 // pred_check_branch
    %11 = sbr.rel (0) target = $region9
  $region8: #{_lambda_.9} parent=0 // pred_region
    _
  $region9: #{_lambda_.9} parent=0 // pred_fallthru
    _
  // Predicated region
  $region10: #{_lambda_.9} parent=0 // pred_check
    _
  $region11: #{_lambda_.9} parent=0 // pred_check_branch
    %13 = sbr.rel (0) target = $region13
  $region12: #{_lambda_.9} parent=0 // pred_region
    _
  $region13: #{_lambda_.9} parent=0 // pred_fallthru
    _
  %v15 = vld [vmem:[%s0] sm:$0xff]
  %v16 = vld [vmem:[%s0 + $0x8] sm:$0xff]
  %v17 = vld [vmem:[%s0 + $0x10] sm:$0xff]
  %v18 = vld [vmem:[%s0 + $0x18] sm:$0xff]
  %v19 = vld [vmem:[%s0 + $0x20] sm:$0xff]
  %v20 = vld [vmem:[%s0 + $0x28] sm:$0xff]
  %v21 = vld [vmem:[%s0 + $0x30] sm:$0xff]
  %v22 = vld [vmem:[%s0 + $0x38] sm:$0xff]
  %v23 = vld [vmem:[%s1] sm:$0xf]
  %v24 = vld [vmem:[%s1 + $0x4] sm:$0xf]
  %v25 = vld [vmem:[%s1 + $0x8] sm:$0xf]
  %v26 = vld [vmem:[%s1 + $0xc] sm:$0xf]
  %v27 = vld [vmem:[%s1 + $0x10] sm:$0xf]
  %v28 = vld [vmem:[%s1 + $0x14] sm:$0xf]
  %v29 = vld [vmem:[%s1 + $0x18] sm:$0xf]
  %v30 = vld [vmem:[%s1 + $0x1c] sm:$0xf]
  %v31 = vld [vmem:[%s1 + $0x20] sm:$0xf]
  %v32 = vld [vmem:[%s1 + $0x24] sm:$0xf]
  %v33 = vld [vmem:[%s1 + $0x28] sm:$0xf]
  %v34 = vld [vmem:[%s1 + $0x2c] sm:$0xf]
  %v35 = vld [vmem:[%s1 + $0x30] sm:$0xf]
  %v36 = vld [vmem:[%s1 + $0x34] sm:$0xf]
  %v37 = vld [vmem:[%s1 + $0x38] sm:$0xf]
  %v38 = vld [vmem:[%s1 + $0x3c] sm:$0xf]
  %v39 = vld [vmem:[%s1 + $0x40] sm:$0xf]
  %v40 = vld [vmem:[%s1 + $0x44] sm:$0xf]
  %v41 = vld [vmem:[%s1 + $0x48] sm:$0xf]
  %v42 = vld [vmem:[%s1 + $0x4c] sm:$0xf]
  %v43 = vld [vmem:[%s1 + $0x50] sm:$0xf]
  %v44 = vld [vmem:[%s1 + $0x54] sm:$0xf]
  %v45 = vld [vmem:[%s1 + $0x58] sm:$0xf]
  %v46 = vld [vmem:[%s1 + $0x5c] sm:$0xf]
  %v47 = vld [vmem:[%s1 + $0x60] sm:$0xf]
  %v48 = vld [vmem:[%s1 + $0x64] sm:$0xf]
  %v49 = vld [vmem:[%s1 + $0x68] sm:$0xf]
  %v50 = vld [vmem:[%s1 + $0x6c] sm:$0xf]
  %v51 = vld [vmem:[%s1 + $0x70] sm:$0xf]
  %v52 = vld [vmem:[%s1 + $0x74] sm:$0xf]
  %v53 = vld [vmem:[%s1 + $0x78] sm:$0xf]
  %v54 = vld [vmem:[%s1 + $0x7c] sm:$0xf]
  %v55 = vld [vmem:[%s1 + $0x80] sm:$0xf]
  %v56 = vld [vmem:[%s1 + $0x84] sm:$0xf]
  %v57 = vld [vmem:[%s1 + $0x88] sm:$0xf]
  %v58 = vld [vmem:[%s1 + $0x8c] sm:$0xf]
  %v59 = vld [vmem:[%s1 + $0x90] sm:$0xf]
  %v60 = vld [vmem:[%s1 + $0x94] sm:$0xf]
  %v61 = vld [vmem:[%s1 + $0x98] sm:$0xf]
  %v62 = vld [vmem:[%s1 + $0x9c] sm:$0xf]
  %v63 = vld [vmem:[%s1 + $0xa0] sm:$0xf]
  %v64 = vld [vmem:[%s1 + $0xa4] sm:$0xf]
  %v65 = vld [vmem:[%s1 + $0xa8] sm:$0xf]
  %v66 = vld [vmem:[%s1 + $0xac] sm:$0xf]
  %v67 = vld [vmem:[%s1 + $0xb0] sm:$0xf]
  %v68 = vld [vmem:[%s1 + $0xb4] sm:$0xf]
  %v69 = vld [vmem:[%s1 + $0xb8] sm:$0xf]
  %v70 = vld [vmem:[%s1 + $0xbc] sm:$0xf]
  %v71 = vld [vmem:[%s1 + $0xc0] sm:$0xf]
  %v72 = vld [vmem:[%s1 + $0xc4] sm:$0xf]
  %v73 = vld [vmem:[%s1 + $0xc8] sm:$0xf]
  %v74 = vld [vmem:[%s1 + $0xcc] sm:$0xf]
  %v75 = vld [vmem:[%s1 + $0xd0] sm:$0xf]
  %v76 = vld [vmem:[%s1 + $0xd4] sm:$0xf]
  %v77 = vld [vmem:[%s1 + $0xd8] sm:$0xf]
  %v78 = vld [vmem:[%s1 + $0xdc] sm:$0xf]
  %v79 = vld [vmem:[%s1 + $0xe0] sm:$0xf]
  %v80 = vld [vmem:[%s1 + $0xe4] sm:$0xf]
  %v81 = vld [vmem:[%s1 + $0xe8] sm:$0xf]
  %v82 = vld [vmem:[%s1 + $0xec] sm:$0xf]
  %v83 = vld [vmem:[%s1 + $0xf0] sm:$0xf]
  %v84 = vld [vmem:[%s1 + $0xf4] sm:$0xf]
  %v85 = vld [vmem:[%s1 + $0xf8] sm:$0xf]
  %v86 = vld [vmem:[%s1 + $0xfc] sm:$0xf]
  %v87 = vld [vmem:[%s1 + $0x100] sm:$0xf]
  %v88 = vld [vmem:[%s1 + $0x104] sm:$0xf]
  %v89 = vld [vmem:[%s1 + $0x108] sm:$0xf]
  %v90 = vld [vmem:[%s1 + $0x10c] sm:$0xf]
  %v91 = vld [vmem:[%s1 + $0x110] sm:$0xf]
  %v92 = vld [vmem:[%s1 + $0x114] sm:$0xf]
  %v93 = vld [vmem:[%s1 + $0x118] sm:$0xf]
  %v94 = vld [vmem:[%s1 + $0x11c] sm:$0xf]
  %v95 = vld [vmem:[%s1 + $0x120] sm:$0xf]
  %v96 = vld [vmem:[%s1 + $0x124] sm:$0xf]
  %v97 = vld [vmem:[%s1 + $0x128] sm:$0xf]
  %v98 = vld [vmem:[%s1 + $0x12c] sm:$0xf]
  %v99 = vld [vmem:[%s1 + $0x130] sm:$0xf]
  %v100 = vld [vmem:[%s1 + $0x134] sm:$0xf]
  %v101 = vld [vmem:[%s1 + $0x138] sm:$0xf]
  %v102 = vld [vmem:[%s1 + $0x13c] sm:$0xf]
  %v103 = vld [vmem:[%s1 + $0x140] sm:$0xf]
  %v104 = vld [vmem:[%s1 + $0x144] sm:$0xf]
  %v105 = vld [vmem:[%s1 + $0x148] sm:$0xf]
  %v106 = vld [vmem:[%s1 + $0x14c] sm:$0xf]
  %v107 = vld [vmem:[%s1 + $0x150] sm:$0xf]
  %v108 = vld [vmem:[%s1 + $0x154] sm:$0xf]
  %v109 = vld [vmem:[%s1 + $0x158] sm:$0xf]
  %v110 = vld [vmem:[%s1 + $0x15c] sm:$0xf]
  %v111 = vld [vmem:[%s1 + $0x160] sm:$0xf]
  %v112 = vld [vmem:[%s1 + $0x164] sm:$0xf]
  %v113 = vld [vmem:[%s1 + $0x168] sm:$0xf]
  %v114 = vld [vmem:[%s1 + $0x16c] sm:$0xf]
  %v115 = vld [vmem:[%s1 + $0x170] sm:$0xf]
  %v116 = vld [vmem:[%s1 + $0x174] sm:$0xf]
  %v117 = vld [vmem:[%s1 + $0x178] sm:$0xf]
  %v118 = vld [vmem:[%s1 + $0x17c] sm:$0xf]
  %v119 = vld [vmem:[%s1 + $0x180] sm:$0xf]
  %v120 = vld [vmem:[%s1 + $0x184] sm:$0xf]
  %v121 = vld [vmem:[%s1 + $0x188] sm:$0xf]
  %v122 = vld [vmem:[%s1 + $0x18c] sm:$0xf]
  %v123 = vld [vmem:[%s1 + $0x190] sm:$0xf]
  %v124 = vld [vmem:[%s1 + $0x194] sm:$0xf]
  %v125 = vld [vmem:[%s1 + $0x198] sm:$0xf]
  %v126 = vld [vmem:[%s1 + $0x19c] sm:$0xf]
  %v127 = vld [vmem:[%s1 + $0x1a0] sm:$0xf]
  %v128 = vld [vmem:[%s1 + $0x1a4] sm:$0xf]
  %v129 = vld [vmem:[%s1 + $0x1a8] sm:$0xf]
  %v130 = vld [vmem:[%s1 + $0x1ac] sm:$0xf]
  %v131 = vld [vmem:[%s1 + $0x1b0] sm:$0xf]
  %v132 = vld [vmem:[%s1 + $0x1b4] sm:$0xf]
  %v133 = vld [vmem:[%s1 + $0x1b8] sm:$0xf]
  %v134 = vld [vmem:[%s1 + $0x1bc] sm:$0xf]
  %v135 = vld [vmem:[%s1 + $0x1c0] sm:$0xf]
  %v136 = vld [vmem:[%s1 + $0x1c4] sm:$0xf]
  %v137 = vld [vmem:[%s1 + $0x1c8] sm:$0xf]
  %v138 = vld [vmem:[%s1 + $0x1cc] sm:$0xf]
  %v139 = vld [vmem:[%s1 + $0x1d0] sm:$0xf]
  %v140 = vld [vmem:[%s1 + $0x1d4] sm:$0xf]
  %v141 = vld [vmem:[%s1 + $0x1d8] sm:$0xf]
  %v142 = vld [vmem:[%s1 + $0x1dc] sm:$0xf]
  %v143 = vld [vmem:[%s1 + $0x1e0] sm:$0xf]
  %v144 = vld [vmem:[%s1 + $0x1e4] sm:$0xf]
  %v145 = vld [vmem:[%s1 + $0x1e8] sm:$0xf]
  %v146 = vld [vmem:[%s1 + $0x1ec] sm:$0xf]
  %v147 = vld [vmem:[%s1 + $0x1f0] sm:$0xf]
  %v148 = vld [vmem:[%s1 + $0x1f4] sm:$0xf]
  %v149 = vld [vmem:[%s1 + $0x1f8] sm:$0xf]
  %v150 = vld [vmem:[%s1 + $0x1fc] sm:$0xf]
  %v151 = vld [vmem:[%s2] sm:$0x1]
  %v153 = vlaneseq
  %v154 = vshrl.u32 %v153, 7
  %v155 = vsub.s32 0, %v154
  %v156 = vrot.slane %v151, %v155
  %v166 = vunpack.c.l.b16 %v15
  %v167 = vunpack.c.h.b16 %v15
  %v168 = vunpack.c.l.b16 %v16
  %v169 = vunpack.c.h.b16 %v16
  %v170 = vunpack.c.l.b16 %v17
  %v171 = vunpack.c.h.b16 %v17
  %v172 = vunpack.c.l.b16 %v18
  %v173 = vunpack.c.h.b16 %v18
  %v174 = vunpack.c.l.b16 %v19
  %v175 = vunpack.c.h.b16 %v19
  %v176 = vunpack.c.l.b16 %v20
  %v177 = vunpack.c.h.b16 %v20
  %v178 = vunpack.c.l.b16 %v21
  %v179 = vunpack.c.h.b16 %v21
  %v180 = vunpack.c.l.b16 %v22
  %v181 = vunpack.c.h.b16 %v22
  %v182 = vpack.c.b16 %v174, %v166
  %v183 = vpack.c.b16 %v175, %v167
  %v184 = vpack.c.b16 %v176, %v168
  %v185 = vpack.c.b16 %v177, %v169
  %v186 = vpack.c.b16 %v178, %v170
  %v187 = vpack.c.b16 %v179, %v171
  %v188 = vpack.c.b16 %v180, %v172
  %v189 = vpack.c.b16 %v181, %v173
  %v326 = vunpack.c.l.b16 %v23
  %v327 = vunpack.c.l.b16 %v24
  %v328 = vunpack.c.l.b16 %v25
  %v329 = vunpack.c.l.b16 %v26
  %v330 = vunpack.c.l.b16 %v27
  %v331 = vunpack.c.l.b16 %v28
  %v332 = vunpack.c.l.b16 %v29
  %v333 = vunpack.c.l.b16 %v30
  %v334 = vunpack.c.l.b16 %v31
  %v335 = vunpack.c.l.b16 %v32
  %v336 = vunpack.c.l.b16 %v33
  %v337 = vunpack.c.l.b16 %v34
  %v338 = vunpack.c.l.b16 %v35
  %v339 = vunpack.c.l.b16 %v36
  %v340 = vunpack.c.l.b16 %v37
  %v341 = vunpack.c.l.b16 %v38
  %v342 = vunpack.c.l.b16 %v39
  %v343 = vunpack.c.l.b16 %v40
  %v344 = vunpack.c.l.b16 %v41
  %v345 = vunpack.c.l.b16 %v42
  %v346 = vunpack.c.l.b16 %v43
  %v347 = vunpack.c.l.b16 %v44
  %v348 = vunpack.c.l.b16 %v45
  %v349 = vunpack.c.l.b16 %v46
  %v350 = vunpack.c.l.b16 %v47
  %v351 = vunpack.c.l.b16 %v48
  %v352 = vunpack.c.l.b16 %v49
  %v353 = vunpack.c.l.b16 %v50
  %v354 = vunpack.c.l.b16 %v51
  %v355 = vunpack.c.l.b16 %v52
  %v356 = vunpack.c.l.b16 %v53
  %v357 = vunpack.c.l.b16 %v54
  %v358 = vunpack.c.l.b16 %v55
  %v359 = vunpack.c.l.b16 %v56
  %v360 = vunpack.c.l.b16 %v57
  %v361 = vunpack.c.l.b16 %v58
  %v362 = vunpack.c.l.b16 %v59
  %v363 = vunpack.c.l.b16 %v60
  %v364 = vunpack.c.l.b16 %v61
  %v365 = vunpack.c.l.b16 %v62
  %v366 = vunpack.c.l.b16 %v63
  %v367 = vunpack.c.l.b16 %v64
  %v368 = vunpack.c.l.b16 %v65
  %v369 = vunpack.c.l.b16 %v66
  %v370 = vunpack.c.l.b16 %v67
  %v371 = vunpack.c.l.b16 %v68
  %v372 = vunpack.c.l.b16 %v69
  %v373 = vunpack.c.l.b16 %v70
  %v374 = vunpack.c.l.b16 %v71
  %v375 = vunpack.c.l.b16 %v72
  %v376 = vunpack.c.l.b16 %v73
  %v377 = vunpack.c.l.b16 %v74
  %v378 = vunpack.c.l.b16 %v75
  %v379 = vunpack.c.l.b16 %v76
  %v380 = vunpack.c.l.b16 %v77
  %v381 = vunpack.c.l.b16 %v78
  %v382 = vunpack.c.l.b16 %v79
  %v383 = vunpack.c.l.b16 %v80
  %v384 = vunpack.c.l.b16 %v81
  %v385 = vunpack.c.l.b16 %v82
  %v386 = vunpack.c.l.b16 %v83
  %v387 = vunpack.c.l.b16 %v84
  %v388 = vunpack.c.l.b16 %v85
  %v389 = vunpack.c.l.b16 %v86
  %v390 = vunpack.c.l.b16 %v87
  %v391 = vunpack.c.l.b16 %v88
  %v392 = vunpack.c.l.b16 %v89
  %v393 = vunpack.c.l.b16 %v90
  %v394 = vunpack.c.l.b16 %v91
  %v395 = vunpack.c.l.b16 %v92
  %v396 = vunpack.c.l.b16 %v93
  %v397 = vunpack.c.l.b16 %v94
  %v398 = vunpack.c.l.b16 %v95
  %v399 = vunpack.c.l.b16 %v96
  %v400 = vunpack.c.l.b16 %v97
  %v401 = vunpack.c.l.b16 %v98
  %v402 = vunpack.c.l.b16 %v99
  %v403 = vunpack.c.l.b16 %v100
  %v404 = vunpack.c.l.b16 %v101
  %v405 = vunpack.c.l.b16 %v102
  %v406 = vunpack.c.l.b16 %v103
  %v407 = vunpack.c.l.b16 %v104
  %v408 = vunpack.c.l.b16 %v105
  %v409 = vunpack.c.l.b16 %v106
  %v410 = vunpack.c.l.b16 %v107
  %v411 = vunpack.c.l.b16 %v108
  %v412 = vunpack.c.l.b16 %v109
  %v413 = vunpack.c.l.b16 %v110
  %v414 = vunpack.c.l.b16 %v111
  %v415 = vunpack.c.l.b16 %v112
  %v416 = vunpack.c.l.b16 %v113
  %v417 = vunpack.c.l.b16 %v114
  %v418 = vunpack.c.l.b16 %v115
  %v419 = vunpack.c.l.b16 %v116
  %v420 = vunpack.c.l.b16 %v117
  %v421 = vunpack.c.l.b16 %v118
  %v422 = vunpack.c.l.b16 %v119
  %v423 = vunpack.c.l.b16 %v120
  %v424 = vunpack.c.l.b16 %v121
  %v425 = vunpack.c.l.b16 %v122
  %v426 = vunpack.c.l.b16 %v123
  %v427 = vunpack.c.l.b16 %v124
  %v428 = vunpack.c.l.b16 %v125
  %v429 = vunpack.c.l.b16 %v126
  %v430 = vunpack.c.l.b16 %v127
  %v431 = vunpack.c.l.b16 %v128
  %v432 = vunpack.c.l.b16 %v129
  %v433 = vunpack.c.l.b16 %v130
  %v434 = vunpack.c.l.b16 %v131
  %v435 = vunpack.c.l.b16 %v132
  %v436 = vunpack.c.l.b16 %v133
  %v437 = vunpack.c.l.b16 %v134
  %v438 = vunpack.c.l.b16 %v135
  %v439 = vunpack.c.l.b16 %v136
  %v440 = vunpack.c.l.b16 %v137
  %v441 = vunpack.c.l.b16 %v138
  %v442 = vunpack.c.l.b16 %v139
  %v443 = vunpack.c.l.b16 %v140
  %v444 = vunpack.c.l.b16 %v141
  %v445 = vunpack.c.l.b16 %v142
  %v446 = vunpack.c.l.b16 %v143
  %v447 = vunpack.c.l.b16 %v144
  %v448 = vunpack.c.l.b16 %v145
  %v449 = vunpack.c.l.b16 %v146
  %v450 = vunpack.c.l.b16 %v147
  %v451 = vunpack.c.l.b16 %v148
  %v452 = vunpack.c.l.b16 %v149
  %v453 = vunpack.c.l.b16 %v150
  %v454 = vpack.c.b16 %v327, %v326
  %v455 = vpack.c.b16 %v329, %v328
  %v456 = vpack.c.b16 %v331, %v330
  %v457 = vpack.c.b16 %v333, %v332
  %v458 = vpack.c.b16 %v335, %v334
  %v459 = vpack.c.b16 %v337, %v336
  %v460 = vpack.c.b16 %v339, %v338
  %v461 = vpack.c.b16 %v341, %v340
  %v462 = vpack.c.b16 %v343, %v342
  %v463 = vpack.c.b16 %v345, %v344
  %v464 = vpack.c.b16 %v347, %v346
  %v465 = vpack.c.b16 %v349, %v348
  %v466 = vpack.c.b16 %v351, %v350
  %v467 = vpack.c.b16 %v353, %v352
  %v468 = vpack.c.b16 %v355, %v354
  %v469 = vpack.c.b16 %v357, %v356
  %v470 = vpack.c.b16 %v359, %v358
  %v471 = vpack.c.b16 %v361, %v360
  %v472 = vpack.c.b16 %v363, %v362
  %v473 = vpack.c.b16 %v365, %v364
  %v474 = vpack.c.b16 %v367, %v366
  %v475 = vpack.c.b16 %v369, %v368
  %v476 = vpack.c.b16 %v371, %v370
  %v477 = vpack.c.b16 %v373, %v372
  %v478 = vpack.c.b16 %v375, %v374
  %v479 = vpack.c.b16 %v377, %v376
  %v480 = vpack.c.b16 %v379, %v378
  %v481 = vpack.c.b16 %v381, %v380
  %v482 = vpack.c.b16 %v383, %v382
  %v483 = vpack.c.b16 %v385, %v384
  %v484 = vpack.c.b16 %v387, %v386
  %v485 = vpack.c.b16 %v389, %v388
  %v486 = vpack.c.b16 %v391, %v390
  %v487 = vpack.c.b16 %v393, %v392
  %v488 = vpack.c.b16 %v395, %v394
  %v489 = vpack.c.b16 %v397, %v396
  %v490 = vpack.c.b16 %v399, %v398
  %v491 = vpack.c.b16 %v401, %v400
  %v492 = vpack.c.b16 %v403, %v402
  %v493 = vpack.c.b16 %v405, %v404
  %v494 = vpack.c.b16 %v407, %v406
  %v495 = vpack.c.b16 %v409, %v408
  %v496 = vpack.c.b16 %v411, %v410
  %v497 = vpack.c.b16 %v413, %v412
  %v498 = vpack.c.b16 %v415, %v414
  %v499 = vpack.c.b16 %v417, %v416
  %v500 = vpack.c.b16 %v419, %v418
  %v501 = vpack.c.b16 %v421, %v420
  %v502 = vpack.c.b16 %v423, %v422
  %v503 = vpack.c.b16 %v425, %v424
  %v504 = vpack.c.b16 %v427, %v426
  %v505 = vpack.c.b16 %v429, %v428
  %v506 = vpack.c.b16 %v431, %v430
  %v507 = vpack.c.b16 %v433, %v432
  %v508 = vpack.c.b16 %v435, %v434
  %v509 = vpack.c.b16 %v437, %v436
  %v510 = vpack.c.b16 %v439, %v438
  %v511 = vpack.c.b16 %v441, %v440
  %v512 = vpack.c.b16 %v443, %v442
  %v513 = vpack.c.b16 %v445, %v444
  %v514 = vpack.c.b16 %v447, %v446
  %v515 = vpack.c.b16 %v449, %v448
  %v516 = vpack.c.b16 %v451, %v450
  %v517 = vpack.c.b16 %v453, %v452
  %582 = vmatprep.subr.bf16.mxu0 0
  %583 = vmatpush1.bf16.msra.mxu0 %v461
  %584 = vmatprep.subr.bf16.mxu0 0
  %585 = vmatpush1.bf16.msra.mxu0 %v460
  %586 = vmatprep.subr.bf16.mxu0 0
  %587 = vmatpush1.bf16.msra.mxu0 %v459
  %588 = vmatprep.subr.bf16.mxu0 0
  %589 = vmatpush1.bf16.msra.mxu0 %v458
  %590 = vmatprep.subr.bf16.mxu0 0
  %591 = vmatpush1.bf16.msra.mxu0 %v457
  %592 = vmatprep.subr.bf16.mxu0 0
  %593 = vmatpush1.bf16.msra.mxu0 %v456
  %594 = vmatprep.subr.bf16.mxu0 0
  %595 = vmatpush1.bf16.msra.mxu0 %v455
  %596 = vmatprep.subr.bf16.mxu0 0
  %597 = vmatpush1.bf16.msra.mxu0 %v454
  %598 = vmatprep.subr.bf16.mxu0 0
  %599 = vmatpush2.bf16.msra.mxu0 %v469
  %600 = vmatprep.subr.bf16.mxu0 0
  %601 = vmatpush2.bf16.msra.mxu0 %v468
  %602 = vmatprep.subr.bf16.mxu0 0
  %603 = vmatpush2.bf16.msra.mxu0 %v467
  %604 = vmatprep.subr.bf16.mxu0 0
  %605 = vmatpush2.bf16.msra.mxu0 %v466
  %606 = vmatprep.subr.bf16.mxu0 0
  %607 = vmatpush2.bf16.msra.mxu0 %v465
  %608 = vmatprep.subr.bf16.mxu0 0
  %609 = vmatpush2.bf16.msra.mxu0 %v464
  %610 = vmatprep.subr.bf16.mxu0 0
  %611 = vmatpush2.bf16.msra.mxu0 %v463
  %612 = vmatprep.subr.bf16.mxu0 0
  %613 = vmatpush2.bf16.msra.mxu0 %v462
  %614 = vmatprep.mubr.bf16.mxu0 %v183
  %615 = vmatmul.mubr.bf16.gmra.mxu0 %v182
  %v616 = vpop.f32.mrf.mxu0
  %v617 = vadd.f32 %v156, %v616
  %v618 = vpop.f32.mrf.mxu0
  %v619 = vpop.f32.mrf.mxu0
  %v620 = vadd.f32 %v156, %v619
  %v621 = vpop.f32.mrf.mxu0
  %622 = vdwg.mxu0
  %623 = vmatprep.subr.bf16.mxu0 0
  %624 = vmatpush1.bf16.msra.mxu0 %v477
  %625 = vmatprep.subr.bf16.mxu0 0
  %626 = vmatpush1.bf16.msra.mxu0 %v476
  %627 = vmatprep.subr.bf16.mxu0 0
  %628 = vmatpush1.bf16.msra.mxu0 %v475
  %629 = vmatprep.subr.bf16.mxu0 0
  %630 = vmatpush1.bf16.msra.mxu0 %v474
  %631 = vmatprep.subr.bf16.mxu0 0
  %632 = vmatpush1.bf16.msra.mxu0 %v473
  %633 = vmatprep.subr.bf16.mxu0 0
  %634 = vmatpush1.bf16.msra.mxu0 %v472
  %635 = vmatprep.subr.bf16.mxu0 0
  %636 = vmatpush1.bf16.msra.mxu0 %v471
  %637 = vmatprep.subr.bf16.mxu0 0
  %638 = vmatpush1.bf16.msra.mxu0 %v470
  %639 = vmatprep.subr.bf16.mxu0 0
  %640 = vmatpush2.bf16.msra.mxu0 %v485
  %641 = vmatprep.subr.bf16.mxu0 0
  %642 = vmatpush2.bf16.msra.mxu0 %v484
  %643 = vmatprep.subr.bf16.mxu0 0
  %644 = vmatpush2.bf16.msra.mxu0 %v483
  %645 = vmatprep.subr.bf16.mxu0 0
  %646 = vmatpush2.bf16.msra.mxu0 %v482
  %647 = vmatprep.subr.bf16.mxu0 0
  %648 = vmatpush2.bf16.msra.mxu0 %v481
  %649 = vmatprep.subr.bf16.mxu0 0
  %650 = vmatpush2.bf16.msra.mxu0 %v480
  %651 = vmatprep.subr.bf16.mxu0 0
  %652 = vmatpush2.bf16.msra.mxu0 %v479
  %653 = vmatprep.subr.bf16.mxu0 0
  %654 = vmatpush2.bf16.msra.mxu0 %v478
  %655 = vmatprep.mubr.bf16.mxu0 %v185
  %656 = vmatmul.mubr.bf16.gmra.mxu0 %v184
  %v657 = vpop.f32.mrf.mxu0
  %v658 = vadd.f32 %v617, %v657
  %v659 = vpop.f32.mrf.mxu0
  %v660 = vpop.f32.mrf.mxu0
  %v661 = vadd.f32 %v620, %v660
  %v662 = vpop.f32.mrf.mxu0
  %663 = vdwg.mxu0
  %664 = vmatprep.subr.bf16.mxu0 0
  %665 = vmatpush1.bf16.msra.mxu0 %v493
  %666 = vmatprep.subr.bf16.mxu0 0
  %667 = vmatpush1.bf16.msra.mxu0 %v492
  %668 = vmatprep.subr.bf16.mxu0 0
  %669 = vmatpush1.bf16.msra.mxu0 %v491
  %670 = vmatprep.subr.bf16.mxu0 0
  %671 = vmatpush1.bf16.msra.mxu0 %v490
  %672 = vmatprep.subr.bf16.mxu0 0
  %673 = vmatpush1.bf16.msra.mxu0 %v489
  %674 = vmatprep.subr.bf16.mxu0 0
  %675 = vmatpush1.bf16.msra.mxu0 %v488
  %676 = vmatprep.subr.bf16.mxu0 0
  %677 = vmatpush1.bf16.msra.mxu0 %v487
  %678 = vmatprep.subr.bf16.mxu0 0
  %679 = vmatpush1.bf16.msra.mxu0 %v486
  %680 = vmatprep.subr.bf16.mxu0 0
  %681 = vmatpush2.bf16.msra.mxu0 %v501
  %682 = vmatprep.subr.bf16.mxu0 0
  %683 = vmatpush2.bf16.msra.mxu0 %v500
  %684 = vmatprep.subr.bf16.mxu0 0
  %685 = vmatpush2.bf16.msra.mxu0 %v499
  %686 = vmatprep.subr.bf16.mxu0 0
  %687 = vmatpush2.bf16.msra.mxu0 %v498
  %688 = vmatprep.subr.bf16.mxu0 0
  %689 = vmatpush2.bf16.msra.mxu0 %v497
  %690 = vmatprep.subr.bf16.mxu0 0
  %691 = vmatpush2.bf16.msra.mxu0 %v496
  %692 = vmatprep.subr.bf16.mxu0 0
  %693 = vmatpush2.bf16.msra.mxu0 %v495
  %694 = vmatprep.subr.bf16.mxu0 0
  %695 = vmatpush2.bf16.msra.mxu0 %v494
  %696 = vmatprep.mubr.bf16.mxu0 %v187
  %697 = vmatmul.mubr.bf16.gmra.mxu0 %v186
  %v698 = vpop.f32.mrf.mxu0
  %v699 = vadd.f32 %v658, %v698
  %v700 = vpop.f32.mrf.mxu0
  %v701 = vpop.f32.mrf.mxu0
  %v702 = vadd.f32 %v661, %v701
  %v703 = vpop.f32.mrf.mxu0
  %704 = vdwg.mxu0
  %705 = vmatprep.subr.bf16.mxu0 0
  %706 = vmatpush1.bf16.msra.mxu0 %v509
  %707 = vmatprep.subr.bf16.mxu0 0
  %708 = vmatpush1.bf16.msra.mxu0 %v508
  %709 = vmatprep.subr.bf16.mxu0 0
  %710 = vmatpush1.bf16.msra.mxu0 %v507
  %711 = vmatprep.subr.bf16.mxu0 0
  %712 = vmatpush1.bf16.msra.mxu0 %v506
  %713 = vmatprep.subr.bf16.mxu0 0
  %714 = vmatpush1.bf16.msra.mxu0 %v505
  %715 = vmatprep.subr.bf16.mxu0 0
  %716 = vmatpush1.bf16.msra.mxu0 %v504
  %717 = vmatprep.subr.bf16.mxu0 0
  %718 = vmatpush1.bf16.msra.mxu0 %v503
  %719 = vmatprep.subr.bf16.mxu0 0
  %720 = vmatpush1.bf16.msra.mxu0 %v502
  %721 = vmatprep.subr.bf16.mxu0 0
  %722 = vmatpush2.bf16.msra.mxu0 %v517
  %723 = vmatprep.subr.bf16.mxu0 0
  %724 = vmatpush2.bf16.msra.mxu0 %v516
  %725 = vmatprep.subr.bf16.mxu0 0
  %726 = vmatpush2.bf16.msra.mxu0 %v515
  %727 = vmatprep.subr.bf16.mxu0 0
  %728 = vmatpush2.bf16.msra.mxu0 %v514
  %729 = vmatprep.subr.bf16.mxu0 0
  %730 = vmatpush2.bf16.msra.mxu0 %v513
  %731 = vmatprep.subr.bf16.mxu0 0
  %732 = vmatpush2.bf16.msra.mxu0 %v512
  %733 = vmatprep.subr.bf16.mxu0 0
  %734 = vmatpush2.bf16.msra.mxu0 %v511
  %735 = vmatprep.subr.bf16.mxu0 0
  %736 = vmatpush2.bf16.msra.mxu0 %v510
  %737 = vmatprep.mubr.bf16.mxu0 %v189
  %738 = vmatmul.mubr.bf16.gmra.mxu0 %v188
  %v739 = vpop.f32.mrf.mxu0
  %v740 = vadd.f32 %v699, %v739
  %v741 = vpop.f32.mrf.mxu0
  %v742 = vpop.f32.mrf.mxu0
  %v743 = vadd.f32 %v702, %v742
  %v744 = vpop.f32.mrf.mxu0
  %745 = vdwg.mxu0
  %746 = vst [vmem:[%s3] sm:$0xff] %v740
  %747 = vst [vmem:[%s3 + $0x8] sm:$0xff] %v743
  // Predicated region
  $region14: #{_lambda_.9} parent=0 // pred_check
    _
  $region15: #{_lambda_.9} parent=0 // pred_check_branch
    %749 = sbr.rel (0) target = $region17
  $region16: #{_lambda_.9} parent=0 // pred_region
    _
  $region17: #{_lambda_.9} parent=0 // pred_fallthru
    _
  // Predicated region
  $region18: #{_lambda_.9} parent=0 // pred_check
    _
  $region19: #{_lambda_.9} parent=0 // pred_check_branch
    %751 = sbr.rel (0) target = $region21
  $region20: #{_lambda_.9} parent=0 // pred_region
    _
  $region21: #{_lambda_.9} parent=0 // pred_fallthru
    _

</llo_original>
